<compile_context>
chip_gen: v7x
topology: tpu7x:2x2x1
jax: 0.10.0
libtpu: 0.0.40
codegen_flags: <defaults>
</compile_context>

<pallas_src>
import math

import jax
import jax.numpy as jnp
from jax.experimental import pallas as pl
from jax.experimental.pallas import tpu as pltpu

_EPS = 1e-5
_LANE = 128
_VMEM_LIMIT = 32 * 1024 * 1024


# ----------------------------------------------------------------------------
# small helpers
# ----------------------------------------------------------------------------
def _round_up(x, m):
    return (x + m - 1) // m * m


def _pick_tm(rows):
    if rows >= 2048:
        return 512
    if rows >= 512:
        return 256
    return 128


def _tile_and_halo(wp, tm):
    """Row tile and halo (both multiples of 8, halo divides tile)."""
    halo = 2 * wp + 2
    hp = 8
    while hp < halo:
        hp *= 2
    if hp > tm or tm % hp != 0:
        tm = _round_up(max(tm, halo), _LANE)
        hp = tm
    return tm, hp


def _pad_last(a, target):
    d = target - a.shape[-1]
    if d == 0:
        return a
    return jnp.pad(a, [(0, 0)] * (a.ndim - 1) + [(0, d)])


# ----------------------------------------------------------------------------
# Pallas kernels
# ----------------------------------------------------------------------------
def _make_conv3x3_kernel(tm, hp, wp, relu, res_mode):
    """3x3 stride-1 conv as 9 row-shifted dots on a halo'd flat tile.

    res_mode: "none" | "add" (identity residual) | "proj" (1x1 projection).
    """
    offs = tuple(di * wp + dj for di in range(3) for dj in range(3))

    def kernel(*refs):
        if res_mode == "none":
            xm_ref, xh_ref, w_ref, b_ref, o_ref, buf_ref = refs
            r_ref = wr_ref = None
        elif res_mode == "add":
            xm_ref, xh_ref, w_ref, b_ref, r_ref, o_ref, buf_ref = refs
            wr_ref = None
        else:  # "proj"
            xm_ref, xh_ref, w_ref, b_ref, r_ref, wr_ref, o_ref, buf_ref = refs

        # assemble main tile + halo rows into one contiguous VMEM buffer
        buf_ref[pl.ds(0, tm), :] = xm_ref[...]
        buf_ref[pl.ds(tm, hp), :] = xh_ref[...]

        acc = jnp.dot(buf_ref[pl.ds(offs[0], tm), :], w_ref[0],
                      preferred_element_type=jnp.float32)
        for t in range(1, 9):
            acc = acc + jnp.dot(buf_ref[pl.ds(offs[t], tm), :], w_ref[t],
                                preferred_element_type=jnp.float32)

        acc = acc + b_ref[...]          # BN scale folded into weights; bias only
        if relu:
            acc = jnp.maximum(acc, 0.0)
        if res_mode == "add":
            acc = acc + r_ref[...].astype(jnp.float32)
        elif res_mode == "proj":
            acc = acc + jnp.dot(r_ref[...], wr_ref[...],
                                preferred_element_type=jnp.float32)
        o_ref[...] = acc.astype(o_ref.dtype)

    return kernel


def _matmul_bias_kernel(l_ref, w_ref, b_ref, o_ref):
    # strided stage-2: single matmul (projection folded along K) + bias
    acc = jnp.dot(l_ref[...], w_ref[...], preferred_element_type=jnp.float32)
    o_ref[...] = (acc + b_ref[...]).astype(o_ref.dtype)


# ----------------------------------------------------------------------------
# pallas_call wrappers
# ----------------------------------------------------------------------------
def _conv3x3_stride1(xf, w_taps, bias, *, wp, relu, res=None, wres=None,
                     out_dtype, tm):
    """Flat stride-1 3x3 conv (+fused BN bias, ReLU, residual).

    xf: (rows, Cin) flat reflection-padded activations (rows = N*Hp*Wp).
    w_taps: (9, Cin, Cp) per-tap weights (BN scale folded, Cp lane-padded).
    Output: (rows, Cp); rows at padded border positions are garbage and are
    discarded by the caller.
    """
    rows, cin = xf.shape
    cp = w_taps.shape[2]
    tm, hp = _tile_and_halo(wp, tm)
    rows_pad = _round_up(rows, tm)
    grid = rows_pad // tm
    step = tm // hp

    xf = jnp.pad(xf, ((0, rows_pad + hp - rows), (0, 0)))

    in_specs = [
        pl.BlockSpec((tm, cin), lambda i: (i, 0)),                     # main tile
        pl.BlockSpec((hp, cin), lambda i: ((i + 1) * step, 0)),        # halo rows
        pl.BlockSpec(w_taps.shape, lambda i: (0, 0, 0)),
        pl.BlockSpec((1, cp), lambda i: (0, 0)),
    ]
    args = [xf, xf, w_taps, bias]
    res_mode = "none"
    flops = 2 * rows_pad * cin * 9 * cp
    bytes_accessed = (xf.size * xf.dtype.itemsize
                      + w_taps.size * w_taps.dtype.itemsize
                      + rows_pad * cp * jnp.dtype(out_dtype).itemsize)
    if res is not None:
        res = jnp.pad(res, ((0, rows_pad - res.shape[0]), (0, 0)))
        in_specs.append(pl.BlockSpec((tm, res.shape[1]), lambda i: (i, 0)))
        args.append(res)
        bytes_accessed += res.size * res.dtype.itemsize
        if wres is None:
            res_mode = "add"
        else:
            res_mode = "proj"
            in_specs.append(pl.BlockSpec(wres.shape, lambda i: (0, 0)))
            args.append(wres)
            flops += 2 * rows_pad * wres.shape[0] * cp

    kernel = _make_conv3x3_kernel(tm, hp, wp, relu, res_mode)
    out = pl.pallas_call(
        kernel,
        out_shape=jax.ShapeDtypeStruct((rows_pad, cp), out_dtype),
        grid_spec=pltpu.PrefetchScalarGridSpec(
            num_scalar_prefetch=0,
            grid=(grid,),
            in_specs=in_specs,
            out_specs=pl.BlockSpec((tm, cp), lambda i: (i, 0)),
            scratch_shapes=[pltpu.VMEM((tm + hp, cin), xf.dtype)],
        ),
        compiler_params=pltpu.CompilerParams(
            dimension_semantics=("parallel",),
            vmem_limit_bytes=_VMEM_LIMIT),
        cost_estimate=pl.CostEstimate(flops=int(flops), transcendentals=0,
                                      bytes_accessed=int(bytes_accessed)),
    )(*args)
    return out[:rows]


def _matmul_bias(lhs, w, bias, *, out_dtype, tm=None):
    rows, k = lhs.shape
    cp = w.shape[1]
    if tm is None:
        tm = _pick_tm(rows)
    tm = min(tm, _round_up(rows, _LANE))
    rows_pad = _round_up(rows, tm)
    grid = rows_pad // tm
    lhs = jnp.pad(lhs, ((0, rows_pad - rows), (0, 0)))
    out = pl.pallas_call(
        _matmul_bias_kernel,
        out_shape=jax.ShapeDtypeStruct((rows_pad, cp), out_dtype),
        grid_spec=pltpu.PrefetchScalarGridSpec(
            num_scalar_prefetch=0,
            grid=(grid,),
            in_specs=[pl.BlockSpec((tm, k), lambda i: (i, 0)),
                      pl.BlockSpec((k, cp), lambda i: (0, 0)),
                      pl.BlockSpec((1, cp), lambda i: (0, 0))],
            out_specs=pl.BlockSpec((tm, cp), lambda i: (i, 0)),
        ),
        compiler_params=pltpu.CompilerParams(
            dimension_semantics=("parallel",),
            vmem_limit_bytes=_VMEM_LIMIT),
        cost_estimate=pl.CostEstimate(
            flops=int(2 * rows_pad * k * cp), transcendentals=0,
            bytes_accessed=int(lhs.size * lhs.dtype.itemsize
                               + w.size * w.dtype.itemsize
                               + rows_pad * cp * jnp.dtype(out_dtype).itemsize)),
    )(lhs, w, bias)
    return out[:rows]


# ----------------------------------------------------------------------------
# JAX glue: padding / im2col (strided path only) / parameter folding
# ----------------------------------------------------------------------------
def _reflection_pad1_nhwc(x):
    x = jnp.concatenate([x[:, 1:2], x, x[:, -2:-1]], axis=1)
    x = jnp.concatenate([x[:, :, 1:2], x, x[:, :, -2:-1]], axis=2)
    return x


def _im2col_3x3(xp, stride):
    # only used for the strided stage-2 (expansion is 9/stride^2, not 9x)
    n, hpad, wpad, c = xp.shape
    ho = (hpad - 3) // stride + 1
    wo = (wpad - 3) // stride + 1
    cols = []
    for i in range(3):
        for j in range(3):
            cols.append(xp[:, i:i + 1 + stride * (ho - 1):stride,
                           j:j + 1 + stride * (wo - 1):stride, :])
    patches = jnp.concatenate(cols, axis=-1)   # feature order (kh, kw, cin)
    return patches.reshape(n * ho * wo, 9 * c), (ho, wo)


def _fold_bn_into_weights(w_conv, b_conv, gamma, beta, mean, var, c_pad):
    # (Cout, Cin, 3, 3) -> per-tap (9, Cin, c_pad), BN scale folded into the
    # output columns; bias (1, c_pad) in f32.
    scale = gamma / jnp.sqrt(var + _EPS)
    w_taps = jnp.transpose(w_conv, (2, 3, 1, 0)).reshape(
        9, w_conv.shape[1], w_conv.shape[0])
    w_taps = w_taps * scale[None, None, :]
    bias = (b_conv - mean) * scale + beta
    return _pad_last(w_taps, c_pad), _pad_last(bias, c_pad).reshape(1, c_pad)


def residual_basic_block_forward(x_nchw, params, stride=1,
                                 compute_dtype=jnp.float32, tm=None):
    """Forward pass of ResidualBasicBlock. Input/output are NCHW float32."""
    x = jnp.transpose(x_nchw, (0, 2, 3, 1)).astype(jnp.float32)   # -> NHWC
    n, h, w, cin = x.shape
    cmid = params["w1"].shape[0]
    cout = params["w2"].shape[0]
    cm_p = _round_up(cmid, _LANE)
    co_p = _round_up(cout, _LANE)
    hpad, wpad = h + 2, w + 2
    rows1 = n * hpad * wpad
    tm1 = tm if tm is not None else _pick_tm(rows1)

    # --- stage 1: ReflectionPad(1) -> Conv3x3(s=1) -> BN -> ReLU (one kernel)
    w1_taps, bias1 = _fold_bn_into_weights(
        params["w1"], params["b1"], params["g1"], params["be1"],
        params["m1"], params["v1"], cm_p)
    xp = _reflection_pad1_nhwc(x).astype(compute_dtype)
    hmid_flat = _conv3x3_stride1(
        xp.reshape(rows1, cin), w1_taps.astype(compute_dtype), bias1,
        wp=wpad, relu=True, out_dtype=compute_dtype, tm=tm1)
    hmid = hmid_flat.reshape(n, hpad, wpad, cm_p)[:, :h, :w, :]
    # Dropout2d(p=0.0) is the identity.

    # --- stage 2: ReflectionPad(1) -> Conv3x3(stride) -> BN, + residual
    w2_taps, bias2 = _fold_bn_into_weights(
        params["w2"], params["b2"], params["g2"], params["be2"],
        params["m2"], params["v2"], co_p)
    w2_taps = jnp.pad(w2_taps, ((0, 0), (0, cm_p - cmid), (0, 0)))
    hp2 = _reflection_pad1_nhwc(hmid)          # (n, hpad, wpad, cm_p)

    use_proj = (cin != cout) or (stride != 1)
    if use_proj:
        w_res = _pad_last(params["wr"].reshape(cout, cin).T, co_p)  # (cin, co_p)
        bias2 = bias2 + _pad_last(params["br"], co_p).reshape(1, co_p)

    if stride == 1:
        # in-kernel 3x3 taps again; residual fused into the same kernel
        x_res = jnp.pad(x, ((0, 0), (0, 2), (0, 2), (0, 0)))  # align to padded grid
        if use_proj:
            out_flat = _conv3x3_stride1(
                hp2.reshape(rows1, cm_p), w2_taps.astype(compute_dtype), bias2,
                wp=wpad, relu=False,
                res=x_res.reshape(rows1, cin).astype(compute_dtype),
                wres=w_res.astype(compute_dtype),
                out_dtype=jnp.float32, tm=tm1)
        else:
            res_flat = _pad_last(x_res, co_p).reshape(rows1, co_p)
            out_flat = _conv3x3_stride1(
                hp2.reshape(rows1, cm_p), w2_taps.astype(compute_dtype), bias2,
                wp=wpad, relu=False,
                res=res_flat.astype(compute_dtype),
                out_dtype=jnp.float32, tm=tm1)
        out = out_flat.reshape(n, hpad, wpad, co_p)[:, :h, :w, :cout]
    else:
        # strided conv: wrapper im2col (9/stride^2 expansion) with the 1x1
        # projection folded into the same matmul along K -> a single dot.
        patches, (ho, wo) = _im2col_3x3(hp2, stride)
        res_pix = x[:, ::stride, ::stride, :].reshape(n * ho * wo, cin)
        lhs = jnp.concatenate(
            [patches, res_pix.astype(compute_dtype)], axis=1)
        w_full = jnp.concatenate(
            [w2_taps.reshape(9 * cm_p, co_p), w_res], axis=0).astype(compute_dtype)
        tm2 = tm if tm is not None else _pick_tm(n * ho * wo)
        out_flat = _matmul_bias(lhs, w_full, bias2,
                                out_dtype=jnp.float32, tm=tm2)
        out = out_flat.reshape(n, ho, wo, co_p)[..., :cout]

    return jnp.transpose(out, (0, 3, 1, 2))    # -> NCHW


# ----------------------------------------------------------------------------
# Deterministic parameter init (synthetic; shapes from the module __init__)
# ----------------------------------------------------------------------------
def init_params(key, in_features, out_features):
    cmid = out_features // 2
    ks = jax.random.split(key, 18)

    def wgt(k, shape, fan_in):
        return jax.random.normal(k, shape, jnp.float32) / math.sqrt(fan_in)

    return {
        "w1": wgt(ks[0], (cmid, in_features, 3, 3), in_features * 9),
        "b1": 0.1 * jax.random.normal(ks[1], (cmid,), jnp.float32),
        "g1": 1.0 + 0.1 * jax.random.normal(ks[2], (cmid,), jnp.float32),
        "be1": 0.1 * jax.random.normal(ks[3], (cmid,), jnp.float32),
        "m1": 0.1 * jax.random.normal(ks[4], (cmid,), jnp.float32),
        "v1": jax.random.uniform(ks[5], (cmid,), jnp.float32, 0.5, 1.5),
        "w2": wgt(ks[6], (out_features, cmid, 3, 3), cmid * 9),
        "b2": 0.1 * jax.random.normal(ks[7], (out_features,), jnp.float32),
        "g2": 1.0 + 0.1 * jax.random.normal(ks[8], (out_features,), jnp.float32),
        "be2": 0.1 * jax.random.normal(ks[9], (out_features,), jnp.float32),
        "m2": 0.1 * jax.random.normal(ks[10], (out_features,), jnp.float32),
        "v2": jax.random.uniform(ks[11], (out_features,), jnp.float32, 0.5, 1.5),
        "wr": wgt(ks[12], (out_features, in_features, 1, 1), in_features),
        "br": 0.1 * jax.random.normal(ks[13], (out_features,), jnp.float32),
    }


# ----------------------------------------------------------------------------
# Pure-JAX reference (numerical sanity check)
# ----------------------------------------------------------------------------
def _reference_forward(x_nchw, params, stride):
    def conv(x, w, b, s):
        y = jax.lax.conv_general_dilated(
            x, w, (s, s), "VALID",
            dimension_numbers=("NCHW", "OIHW", "NCHW"),
            precision=jax.lax.Precision.HIGHEST)
        return y + b[None, :, None, None]

    def bn(x, g, be, m, v):
        return ((x - m[None, :, None, None]) /
                jnp.sqrt(v[None, :, None, None] + _EPS)
                ) * g[None, :, None, None] + be[None, :, None, None]

    def rpad(x):
        return jnp.pad(x, ((0, 0), (0, 0), (1, 1), (1, 1)), mode="reflect")

    in_f = params["w1"].shape[1]
    out_f = params["w2"].shape[0]
    hmid = jax.nn.relu(bn(conv(rpad(x_nchw), params["w1"], params["b1"], 1),
                          params["g1"], params["be1"], params["m1"], params["v1"]))
    y = bn(conv(rpad(hmid), params["w2"], params["b2"], stride),
           params["g2"], params["be2"], params["m2"], params["v2"])
    if in_f != out_f or stride != 1:
        res = conv(x_nchw, params["wr"], params["br"], stride)
    else:
        res = x_nchw
    return res + y


# ----------------------------------------------------------------------------
if __name__ == "__main__":
    key = jax.random.PRNGKey(0)
    kx, kp, kp2, kx2, kp3, kx3 = jax.random.split(key, 6)

    # Case 1: projection residual, stride 2 (in != out)
    N, Cin, H, W = 2, 4, 16, 16
    Cout, stride = 8, 2
    x = jax.random.normal(kx, (N, Cin, H, W), jnp.float32)
    params = init_params(kp, Cin, Cout)
    out = jax.block_until_ready(residual_basic_block_forward(x, params, stride))
    ref = _reference_forward(x, params, stride)
    assert out.shape == ref.shape == (N, Cout, 8, 8)
    assert jnp.allclose(out, ref, rtol=2e-2, atol=2e-2), float(
        jnp.max(jnp.abs(out - ref)))

    # Case 2: identity residual (in == out, stride 1)
    params_id = init_params(kp2, Cout, Cout)
    x2 = jax.random.normal(kx2, (N, Cout, H, W), jnp.float32)
    out2 = jax.block_until_ready(residual_basic_block_forward(x2, params_id, 1))
    ref2 = _reference_forward(x2, params_id, 1)
    assert out2.shape == ref2.shape == (N, Cout, H, W)
    assert jnp.allclose(out2, ref2, rtol=2e-2, atol=2e-2), float(
        jnp.max(jnp.abs(out2 - ref2)))

    # Case 3: projection residual, stride 1 (in != out)
    params_p1 = init_params(kp3, Cin, Cout)
    x3 = jax.random.normal(kx3, (N, Cin, H, W), jnp.float32)
    out3 = jax.block_until_ready(residual_basic_block_forward(x3, params_p1, 1))
    ref3 = _reference_forward(x3, params_p1, 1)
    assert out3.shape == ref3.shape == (N, Cout, H, W)
    assert jnp.allclose(out3, ref3, rtol=2e-2, atol=2e-2), float(
        jnp.max(jnp.abs(out3 - ref3)))

    print("KERNEL_OK")
</pallas_src>

<mosaic_0001>
module attributes {stable_mosaic.version = 11 : i64} {
  func.func @kernel(%arg0: i32, %arg1: memref<256x4xf32, #tpu.memory_space<vmem>>, %arg2: memref<64x4xf32, #tpu.memory_space<vmem>>, %arg3: memref<9x4x128xf32, #tpu.memory_space<vmem>>, %arg4: memref<1x128xf32, #tpu.memory_space<vmem>>, %arg5: memref<256x128xf32, #tpu.memory_space<vmem>>, %arg6: memref<320x4xf32, #tpu.memory_space<vmem>>) attributes {dimension_semantics = [#tpu.dimension_semantics<parallel>], iteration_bounds = array<i64: 3>, scalar_prefetch = 0 : i64, scratch_operands = 1 : i64, tpu.core_type = #tpu.core_type<tc>, window_params = [{transform_indices = @transform_0, window_bounds = array<i64: 256, 4>}, {transform_indices = @transform_1, window_bounds = array<i64: 64, 4>}, {pipeline_mode = #tpu.pipeline_mode<synchronous>, transform_indices = @transform_2, window_bounds = array<i64: 9, 4, 128>}, {pipeline_mode = #tpu.pipeline_mode<synchronous>, transform_indices = @transform_3, window_bounds = array<i64: 1, 128>}, {transform_indices = @transform_4, window_bounds = array<i64: 256, 128>}]} {
    %c0 = arith.constant 0 : index
    %c0_0 = arith.constant 0 : index
    %0 = vector.load %arg1[%c0, %c0_0] : memref<256x4xf32, #tpu.memory_space<vmem>>, vector<256x4xf32>
    %c0_1 = arith.constant 0 : index
    %c0_2 = arith.constant 0 : index
    %1 = vector.load %arg6[%c0_1, %c0_2] : memref<320x4xf32, #tpu.memory_space<vmem>>, vector<256x4xf32>
    tpu.vector_store %arg6[%c0_1, %c0_2], %0 {strides = array<i32>} : memref<320x4xf32, #tpu.memory_space<vmem>>, vector<256x4xf32>,
    %c0_3 = arith.constant 0 : index
    %c0_4 = arith.constant 0 : index
    %2 = vector.load %arg2[%c0_3, %c0_4] : memref<64x4xf32, #tpu.memory_space<vmem>>, vector<64x4xf32>
    %c256 = arith.constant 256 : index
    %c0_5 = arith.constant 0 : index
    %3 = vector.load %arg6[%c256, %c0_5] : memref<320x4xf32, #tpu.memory_space<vmem>>, vector<64x4xf32>
    tpu.vector_store %arg6[%c256, %c0_5], %2 {strides = array<i32>} : memref<320x4xf32, #tpu.memory_space<vmem>>, vector<64x4xf32>,
    %c0_6 = arith.constant 0 : index
    %c0_7 = arith.constant 0 : index
    %4 = vector.load %arg6[%c0_6, %c0_7] : memref<320x4xf32, #tpu.memory_space<vmem>>, vector<256x4xf32>
    %c0_8 = arith.constant 0 : index
    %c0_9 = arith.constant 0 : index
    %c0_10 = arith.constant 0 : index
    %5 = vector.load %arg3[%c0_8, %c0_9, %c0_10] : memref<9x4x128xf32, #tpu.memory_space<vmem>>, vector<1x4x128xf32>
    %6 = vector.shape_cast %5 : vector<1x4x128xf32> to vector<4x128xf32>
    %cst = arith.constant dense<0.000000e+00> : vector<256x128xf32>
    %7 = tpu.matmul %4, %6, %cst {dimension_numbers = #tpu.dot_dimension_numbers<[1], [0], [0], [1], [0, 0, 1, 1], [], []>} : vector<256x4xf32>, vector<4x128xf32>, vector<256x128xf32> -> vector<256x128xf32>
    %c1 = arith.constant 1 : index
    %c0_11 = arith.constant 0 : index
    %8 = vector.load %arg6[%c1, %c0_11] : memref<320x4xf32, #tpu.memory_space<vmem>>, vector<256x4xf32>
    %c1_12 = arith.constant 1 : index
    %c0_13 = arith.constant 0 : index
    %c0_14 = arith.constant 0 : index
    %9 = vector.load %arg3[%c1_12, %c0_13, %c0_14] : memref<9x4x128xf32, #tpu.memory_space<vmem>>, vector<1x4x128xf32>
    %10 = vector.shape_cast %9 : vector<1x4x128xf32> to vector<4x128xf32>
    %cst_15 = arith.constant dense<0.000000e+00> : vector<256x128xf32>
    %11 = tpu.matmul %8, %10, %cst_15 {dimension_numbers = #tpu.dot_dimension_numbers<[1], [0], [0], [1], [0, 0, 1, 1], [], []>} : vector<256x4xf32>, vector<4x128xf32>, vector<256x128xf32> -> vector<256x128xf32>
    %12 = arith.addf %7, %11 : vector<256x128xf32>
    %c2 = arith.constant 2 : index
    %c0_16 = arith.constant 0 : index
    %13 = vector.load %arg6[%c2, %c0_16] : memref<320x4xf32, #tpu.memory_space<vmem>>, vector<256x4xf32>
    %c2_17 = arith.constant 2 : index
    %c0_18 = arith.constant 0 : index
    %c0_19 = arith.constant 0 : index
    %14 = vector.load %arg3[%c2_17, %c0_18, %c0_19] : memref<9x4x128xf32, #tpu.memory_space<vmem>>, vector<1x4x128xf32>
    %15 = vector.shape_cast %14 : vector<1x4x128xf32> to vector<4x128xf32>
    %cst_20 = arith.constant dense<0.000000e+00> : vector<256x128xf32>
    %16 = tpu.matmul %13, %15, %cst_20 {dimension_numbers = #tpu.dot_dimension_numbers<[1], [0], [0], [1], [0, 0, 1, 1], [], []>} : vector<256x4xf32>, vector<4x128xf32>, vector<256x128xf32> -> vector<256x128xf32>
    %17 = arith.addf %12, %16 : vector<256x128xf32>
    %c18 = arith.constant 18 : index
    %c0_21 = arith.constant 0 : index
    %18 = vector.load %arg6[%c18, %c0_21] : memref<320x4xf32, #tpu.memory_space<vmem>>, vector<256x4xf32>
    %c3 = arith.constant 3 : index
    %c0_22 = arith.constant 0 : index
    %c0_23 = arith.constant 0 : index
    %19 = vector.load %arg3[%c3, %c0_22, %c0_23] : memref<9x4x128xf32, #tpu.memory_space<vmem>>, vector<1x4x128xf32>
    %20 = vector.shape_cast %19 : vector<1x4x128xf32> to vector<4x128xf32>
    %cst_24 = arith.constant dense<0.000000e+00> : vector<256x128xf32>
    %21 = tpu.matmul %18, %20, %cst_24 {dimension_numbers = #tpu.dot_dimension_numbers<[1], [0], [0], [1], [0, 0, 1, 1], [], []>} : vector<256x4xf32>, vector<4x128xf32>, vector<256x128xf32> -> vector<256x128xf32>
    %22 = arith.addf %17, %21 : vector<256x128xf32>
    %c19 = arith.constant 19 : index
    %c0_25 = arith.constant 0 : index
    %23 = vector.load %arg6[%c19, %c0_25] : memref<320x4xf32, #tpu.memory_space<vmem>>, vector<256x4xf32>
    %c4 = arith.constant 4 : index
    %c0_26 = arith.constant 0 : index
    %c0_27 = arith.constant 0 : index
    %24 = vector.load %arg3[%c4, %c0_26, %c0_27] : memref<9x4x128xf32, #tpu.memory_space<vmem>>, vector<1x4x128xf32>
    %25 = vector.shape_cast %24 : vector<1x4x128xf32> to vector<4x128xf32>
    %cst_28 = arith.constant dense<0.000000e+00> : vector<256x128xf32>
    %26 = tpu.matmul %23, %25, %cst_28 {dimension_numbers = #tpu.dot_dimension_numbers<[1], [0], [0], [1], [0, 0, 1, 1], [], []>} : vector<256x4xf32>, vector<4x128xf32>, vector<256x128xf32> -> vector<256x128xf32>
    %27 = arith.addf %22, %26 : vector<256x128xf32>
    %c20 = arith.constant 20 : index
    %c0_29 = arith.constant 0 : index
    %28 = vector.load %arg6[%c20, %c0_29] : memref<320x4xf32, #tpu.memory_space<vmem>>, vector<256x4xf32>
    %c5 = arith.constant 5 : index
    %c0_30 = arith.constant 0 : index
    %c0_31 = arith.constant 0 : index
    %29 = vector.load %arg3[%c5, %c0_30, %c0_31] : memref<9x4x128xf32, #tpu.memory_space<vmem>>, vector<1x4x128xf32>
    %30 = vector.shape_cast %29 : vector<1x4x128xf32> to vector<4x128xf32>
    %cst_32 = arith.constant dense<0.000000e+00> : vector<256x128xf32>
    %31 = tpu.matmul %28, %30, %cst_32 {dimension_numbers = #tpu.dot_dimension_numbers<[1], [0], [0], [1], [0, 0, 1, 1], [], []>} : vector<256x4xf32>, vector<4x128xf32>, vector<256x128xf32> -> vector<256x128xf32>
    %32 = arith.addf %27, %31 : vector<256x128xf32>
    %c36 = arith.constant 36 : index
    %c0_33 = arith.constant 0 : index
    %33 = vector.load %arg6[%c36, %c0_33] : memref<320x4xf32, #tpu.memory_space<vmem>>, vector<256x4xf32>
    %c6 = arith.constant 6 : index
    %c0_34 = arith.constant 0 : index
    %c0_35 = arith.constant 0 : index
    %34 = vector.load %arg3[%c6, %c0_34, %c0_35] : memref<9x4x128xf32, #tpu.memory_space<vmem>>, vector<1x4x128xf32>
    %35 = vector.shape_cast %34 : vector<1x4x128xf32> to vector<4x128xf32>
    %cst_36 = arith.constant dense<0.000000e+00> : vector<256x128xf32>
    %36 = tpu.matmul %33, %35, %cst_36 {dimension_numbers = #tpu.dot_dimension_numbers<[1], [0], [0], [1], [0, 0, 1, 1], [], []>} : vector<256x4xf32>, vector<4x128xf32>, vector<256x128xf32> -> vector<256x128xf32>
    %37 = arith.addf %32, %36 : vector<256x128xf32>
    %c37 = arith.constant 37 : index
    %c0_37 = arith.constant 0 : index
    %38 = vector.load %arg6[%c37, %c0_37] : memref<320x4xf32, #tpu.memory_space<vmem>>, vector<256x4xf32>
    %c7 = arith.constant 7 : index
    %c0_38 = arith.constant 0 : index
    %c0_39 = arith.constant 0 : index
    %39 = vector.load %arg3[%c7, %c0_38, %c0_39] : memref<9x4x128xf32, #tpu.memory_space<vmem>>, vector<1x4x128xf32>
    %40 = vector.shape_cast %39 : vector<1x4x128xf32> to vector<4x128xf32>
    %cst_40 = arith.constant dense<0.000000e+00> : vector<256x128xf32>
    %41 = tpu.matmul %38, %40, %cst_40 {dimension_numbers = #tpu.dot_dimension_numbers<[1], [0], [0], [1], [0, 0, 1, 1], [], []>} : vector<256x4xf32>, vector<4x128xf32>, vector<256x128xf32> -> vector<256x128xf32>
    %42 = arith.addf %37, %41 : vector<256x128xf32>
    %c38 = arith.constant 38 : index
    %c0_41 = arith.constant 0 : index
    %43 = vector.load %arg6[%c38, %c0_41] : memref<320x4xf32, #tpu.memory_space<vmem>>, vector<256x4xf32>
    %c8 = arith.constant 8 : index
    %c0_42 = arith.constant 0 : index
    %c0_43 = arith.constant 0 : index
    %44 = vector.load %arg3[%c8, %c0_42, %c0_43] : memref<9x4x128xf32, #tpu.memory_space<vmem>>, vector<1x4x128xf32>
    %45 = vector.shape_cast %44 : vector<1x4x128xf32> to vector<4x128xf32>
    %cst_44 = arith.constant dense<0.000000e+00> : vector<256x128xf32>
    %46 = tpu.matmul %43, %45, %cst_44 {dimension_numbers = #tpu.dot_dimension_numbers<[1], [0], [0], [1], [0, 0, 1, 1], [], []>} : vector<256x4xf32>, vector<4x128xf32>, vector<256x128xf32> -> vector<256x128xf32>
    %47 = arith.addf %42, %46 : vector<256x128xf32>
    %c0_45 = arith.constant 0 : index
    %c0_46 = arith.constant 0 : index
    %48 = vector.load %arg4[%c0_45, %c0_46] : memref<1x128xf32, #tpu.memory_space<vmem>>, vector<1x128xf32>
    %49 = vector.broadcast %48 : vector<1x128xf32> to vector<256x128xf32>
    %50 = arith.addf %47, %49 : vector<256x128xf32>
    %cst_47 = arith.constant 0.000000e+00 : f32
    %51 = vector.broadcast %cst_47 : f32 to vector<256x128xf32>
    %52 = arith.maximumf %50, %51 : vector<256x128xf32>
    %c0_48 = arith.constant 0 : index
    %c0_49 = arith.constant 0 : index
    %53 = vector.load %arg5[%c0_48, %c0_49] : memref<256x128xf32, #tpu.memory_space<vmem>>, vector<256x128xf32>
    tpu.vector_store %arg5[%c0_48, %c0_49], %52 {strides = array<i32>} : memref<256x128xf32, #tpu.memory_space<vmem>>, vector<256x128xf32>,
    return
  }
  func.func @transform_0(%arg0: i32) -> (i32, i32) {
    %c0_i32 = arith.constant 0 : i32
    %c0_i32_0 = arith.constant 0 : i32
    return %arg0, %c0_i32 : i32, i32
  }
  func.func @transform_1(%arg0: i32) -> (i32, i32) {
    %c1_i32 = arith.constant 1 : i32
    %0 = arith.addi %arg0, %c1_i32 : i32
    %c4_i32 = arith.constant 4 : i32
    %1 = arith.muli %0, %c4_i32 : i32
    %c0_i32 = arith.constant 0 : i32
    %c0_i32_0 = arith.constant 0 : i32
    return %1, %c0_i32 : i32, i32
  }
  func.func @transform_2(%arg0: i32) -> (i32, i32, i32) {
    %c0_i32 = arith.constant 0 : i32
    %c0_i32_0 = arith.constant 0 : i32
    %c0_i32_1 = arith.constant 0 : i32
    %c0_i32_2 = arith.constant 0 : i32
    return %c0_i32, %c0_i32_0, %c0_i32_1 : i32, i32, i32
  }
  func.func @transform_3(%arg0: i32) -> (i32, i32) {
    %c0_i32 = arith.constant 0 : i32
    %c0_i32_0 = arith.constant 0 : i32
    %c0_i32_1 = arith.constant 0 : i32
    return %c0_i32, %c0_i32_0 : i32, i32
  }
  func.func @transform_4(%arg0: i32) -> (i32, i32) {
    %c0_i32 = arith.constant 0 : i32
    %c0_i32_0 = arith.constant 0 : i32
    return %arg0, %c0_i32 : i32, i32
  }
}

</mosaic_0001>

<llo_original>
// kernel: tpu_custom_call.1
$region0: #{tpu_custom_call.1}
  #allocation0 [shape = 'u32[]', space=smem, size = 0x4, offset = 0x4, fixed_abs, tag = 'smem constant byte address 0x4 - core index']
  #allocation1 [shape = 'u32[144,128]{1,0:T(1,128)}', space=vmem, size = 0x12000, scoped, tag = 'internal scratch']
  #allocation2 [shape = 'f32[320,4]{1,0:T(8,128)}', space=vmem, size = 0x28000, scoped, tag = 'scratch operand']
  %s0 = inlined_call_operand.vmem [shape: f32[832,4], index: 0, kind: input, shape index: {}]
  %s1 = inlined_call_operand.vmem [shape: f32[832,4], index: 1, kind: input, shape index: {}]
  %s2 = inlined_call_operand.vmem [shape: f32[9,4,128], index: 2, kind: input, shape index: {}]
  %s3 = inlined_call_operand.vmem [shape: f32[1,128], index: 3, kind: input, shape index: {}]
  %s4 = inlined_call_operand.hbm [shape: f32[768,128], index: 4, kind: output, shape index: {}]
  %s5 = sld [smem:[#allocation0]]
  $region49: #{tpu_custom_call.1} parent=0
    _
  %s7 = ssub.s32 1, %s5
  %s8 = scalar_select 0, %s7, %s5
  $region1: #{tpu_custom_call.1} parent=0
    #allocation3 [shape = 'u8[262144]{0}', space=vmem, size = 0x40000, scoped, tag = 'output window, operand 0']
    #allocation4 [shape = 's32[2]{0}', space=sflag, size = 0x8, scoped, tag = 'scoped memory for tpu_custom_call.1']
    %9 = vsyncpa [#allocation4], 0
    %s10 = scalar_lea.sflag [#allocation4], 1
    %11 = vsyncpa %s10, 0
    loop: start=0, step=1, limit=5
    $region2: #{tpu_custom_call.1} parent=1 // loop_pre_header
      _
    $region3: #{tpu_custom_call.1} parent=1 // loop_header
      %s13 = sphi 0, %s17
      %p14 = scmp.ge.s32.totalorder %s13, 5
      %s23 = sphi 0, %s25
      %s26 = sphi 0, %s23
      %s27 = sphi 0, %s26
      %s43 = sphi 0, %s27
      %s53 = sphi 0, %s55
      %s56 = sphi 0, %s53
      %s57 = sphi 0, %s56
      %s73 = sphi 0, %s57
      %s77 = sphi 0, %s77
      %s79 = sphi 0, %s77
      %s80 = sphi 0, %s79
      %s94 = sphi 0, %s80
      %s98 = sphi 0, %s98
      %s100 = sphi 0, %s98
      %s101 = sphi 0, %s100
      %s115 = sphi 0, %s101
      %s121 = sphi 0, %s123
      %s124 = sphi 0, %s121
      %s125 = sphi 0, %s124
      %s141 = sphi 0, %s125
    $region4: #{tpu_custom_call.1} parent=1 // loop_header_branch
      %16 = sbr.rel (%p14) target = $region8
    $region5: #{tpu_custom_call.1} parent=1 // loop_body
      %s18 = ssub.s32 %s13, 1
      %s19 = ssub.s32 %s13, 2
      %s20 = sadd.s32 %s13, 1
      %s21 = ssub.s32 %s13, %s20
      %p22 = scmp.eq.s32.totalorder %s21, 0
      %s24 = sadd.s32 %s23, 1
      %s25 = scalar_select %p22, %s23, %s24
      %p28 = pneg %p22
      %p29 = scmp.eq.s32.totalorder %s13, 2
      %p30 = por %p28, %p29
      %p31 = scmp.ne.s32.totalorder %s23, %s26
      %p32 = scmp.eq.s32.totalorder %s13, 0
      %p33 = por %p31, %p32
      %p34 = scmp.ne.s32.totalorder %s23, %s26
      %p35 = scmp.eq.s32.totalorder %s18, 2
      %p36 = por %p34, %p35
      %p37 = scmp.ne.s32.totalorder %s26, %s27
      %p38 = scmp.eq.s32.totalorder %s18, 0
      %p39 = por %p37, %p38
      %p40 = scmp.ne.s32.totalorder %s26, %s27
      %p41 = scmp.eq.s32.totalorder %s19, 2
      %p42 = por %p40, %p41
      %p44 = scmp.ne.s32.totalorder %s27, %s43
      %p45 = scmp.eq.s32.totalorder %s19, 0
      %p46 = por %p44, %p45
      %s47 = sadd.s32 %s13, 1
      %s48 = smul.u32 %s47, 4
      %s49 = sadd.s32 %s20, 1
      %s50 = smul.u32 %s49, 4
      %s51 = ssub.s32 %s48, %s50
      %p52 = scmp.eq.s32.totalorder %s51, 0
      %s54 = sadd.s32 %s53, 1
      %s55 = scalar_select %p52, %s53, %s54
      %p58 = pneg %p52
      %p59 = scmp.eq.s32.totalorder %s13, 2
      %p60 = por %p58, %p59
      %p61 = scmp.ne.s32.totalorder %s53, %s56
      %p62 = scmp.eq.s32.totalorder %s13, 0
      %p63 = por %p61, %p62
      %p64 = scmp.ne.s32.totalorder %s53, %s56
      %p65 = scmp.eq.s32.totalorder %s18, 2
      %p66 = por %p64, %p65
      %p67 = scmp.ne.s32.totalorder %s56, %s57
      %p68 = scmp.eq.s32.totalorder %s18, 0
      %p69 = por %p67, %p68
      %p70 = scmp.ne.s32.totalorder %s56, %s57
      %p71 = scmp.eq.s32.totalorder %s19, 2
      %p72 = por %p70, %p71
      %p74 = scmp.ne.s32.totalorder %s57, %s73
      %p75 = scmp.eq.s32.totalorder %s19, 0
      %p76 = por %p74, %p75
      %s78 = sadd.s32 %s77, 1
      %p81 = scmp.eq.s32.totalorder %s13, 2
      %p82 = scmp.ne.s32.totalorder %s77, %s79
      %p83 = scmp.eq.s32.totalorder %s13, 0
      %p84 = por %p82, %p83
      %p85 = scmp.ne.s32.totalorder %s77, %s79
      %p86 = scmp.eq.s32.totalorder %s18, 2
      %p87 = por %p85, %p86
      %p88 = scmp.ne.s32.totalorder %s79, %s80
      %p89 = scmp.eq.s32.totalorder %s18, 0
      %p90 = por %p88, %p89
      %p91 = scmp.ne.s32.totalorder %s79, %s80
      %p92 = scmp.eq.s32.totalorder %s19, 2
      %p93 = por %p91, %p92
      %p95 = scmp.ne.s32.totalorder %s80, %s94
      %p96 = scmp.eq.s32.totalorder %s19, 0
      %p97 = por %p95, %p96
      %s99 = sadd.s32 %s98, 1
      %p102 = scmp.eq.s32.totalorder %s13, 2
      %p103 = scmp.ne.s32.totalorder %s98, %s100
      %p104 = scmp.eq.s32.totalorder %s13, 0
      %p105 = por %p103, %p104
      %p106 = scmp.ne.s32.totalorder %s98, %s100
      %p107 = scmp.eq.s32.totalorder %s18, 2
      %p108 = por %p106, %p107
      %p109 = scmp.ne.s32.totalorder %s100, %s101
      %p110 = scmp.eq.s32.totalorder %s18, 0
      %p111 = por %p109, %p110
      %p112 = scmp.ne.s32.totalorder %s100, %s101
      %p113 = scmp.eq.s32.totalorder %s19, 2
      %p114 = por %p112, %p113
      %p116 = scmp.ne.s32.totalorder %s101, %s115
      %p117 = scmp.eq.s32.totalorder %s19, 0
      %p118 = por %p116, %p117
      %s119 = ssub.s32 %s13, %s20
      %p120 = scmp.eq.s32.totalorder %s119, 0
      %s122 = sadd.s32 %s121, 1
      %s123 = scalar_select %p120, %s121, %s122
      %p126 = pneg %p120
      %p127 = scmp.eq.s32.totalorder %s13, 2
      %p128 = por %p126, %p127
      %p129 = scmp.ne.s32.totalorder %s121, %s124
      %p130 = scmp.eq.s32.totalorder %s13, 0
      %p131 = por %p129, %p130
      %p132 = scmp.ne.s32.totalorder %s121, %s124
      %p133 = scmp.eq.s32.totalorder %s18, 2
      %p134 = por %p132, %p133
      %p135 = scmp.ne.s32.totalorder %s124, %s125
      %p136 = scmp.eq.s32.totalorder %s18, 0
      %p137 = por %p135, %p136
      %p138 = scmp.ne.s32.totalorder %s124, %s125
      %p139 = scmp.eq.s32.totalorder %s19, 2
      %p140 = por %p138, %p139
      %p142 = scmp.ne.s32.totalorder %s125, %s141
      %p143 = scmp.eq.s32.totalorder %s19, 0
      %p144 = por %p142, %p143
      %p145 = scmp.le.s32.totalorder 1, %s13
      %p146 = scmp.lt.s32.totalorder %s13, 4
      %p147 = pnand %p145, %p146
      %p148 = pneg %p147
      // Predicated region
      $region9: #{tpu_custom_call.1} parent=5 // pred_check
        _
      $region10: #{tpu_custom_call.1} parent=5 // pred_check_branch
        %150 = sbr.rel (%p147) target = $region12
      $region11: #{tpu_custom_call.1} parent=5 // pred_region
        %s151 = ssub.s32 %s13, 1
        // Predicated region
        $region13: #{tpu_custom_call.1} parent=11 // pred_check
          %p152 = pneg %p90
        $region14: #{tpu_custom_call.1} parent=11 // pred_check_branch
          %154 = sbr.rel (%p152) target = $region16
        $region15: #{tpu_custom_call.1} parent=11 // pred_region
          _
        $region16: #{tpu_custom_call.1} parent=11 // pred_fallthru
          _
        // Predicated region
        $region17: #{tpu_custom_call.1} parent=11 // pred_check
          %p155 = pneg %p111
        $region18: #{tpu_custom_call.1} parent=11 // pred_check_branch
          %157 = sbr.rel (%p155) target = $region20
        $region19: #{tpu_custom_call.1} parent=11 // pred_region
          _
        $region20: #{tpu_custom_call.1} parent=11 // pred_fallthru
          _
      $region12: #{tpu_custom_call.1} parent=5 // pred_fallthru
        _
      %p158 = scmp.lt.s32.totalorder %s13, 3
      // Predicated region
      $region21: #{tpu_custom_call.1} parent=5 // pred_check
        %p159 = pneg %p158
      $region22: #{tpu_custom_call.1} parent=5 // pred_check_branch
        %161 = sbr.rel (%p159) target = $region24
      $region23: #{tpu_custom_call.1} parent=5 // pred_region
        // Predicated region
        $region25: #{tpu_custom_call.1} parent=23 // pred_check
          %p162 = pneg %p33
        $region26: #{tpu_custom_call.1} parent=23 // pred_check_branch
          %164 = sbr.rel (%p162) target = $region28
        $region27: #{tpu_custom_call.1} parent=23 // pred_region
          %s165 = smul.u32 32, %s13
          %s166 = ssub.s32 104, %s165
          %p167 = scmp.lt.s32.totalorder %s166, 32
          %s168 = scalar_select %p167, %s166, 32
          %s169 = smul.u32 128, %s168
          %p170 = scmp.lt.s32.totalorder %s165, 103
          %s171 = scalar_select %p170, %s165, 103
          %s172 = smul.addr %s171, 8
          %s173 = scalar_lea.vmem %s0, %s172
          %s174 = smul.u32 32, %s13
          %s175 = ssub.s32 104, %s174
          %p176 = scmp.lt.s32.totalorder %s175, 32
          %s177 = scalar_select %p176, %s175, 32
          %s178 = smul.u32 128, %s177
        $region28: #{tpu_custom_call.1} parent=23 // pred_fallthru
          _
        // Predicated region
        $region29: #{tpu_custom_call.1} parent=23 // pred_check
          %p179 = pneg %p63
        $region30: #{tpu_custom_call.1} parent=23 // pred_check_branch
          %181 = sbr.rel (%p179) target = $region32
        $region31: #{tpu_custom_call.1} parent=23 // pred_region
          %s182 = sadd.s32 %s13, 1
          %s183 = smul.u32 %s182, 4
          %s184 = smul.u32 8, %s183
          %p185 = scmp.lt.s32.totalorder %s184, 103
          %s186 = scalar_select %p185, %s184, 103
          %s187 = smul.addr %s186, 8
          %s188 = scalar_lea.vmem %s1, %s187
          %s189 = sadd.s32 %s13, 1
          %s190 = smul.u32 %s189, 4
          %s191 = smul.u32 8, %s190
        $region32: #{tpu_custom_call.1} parent=23 // pred_fallthru
          _
      $region24: #{tpu_custom_call.1} parent=5 // pred_fallthru
        _
      %p192 = scmp.le.s32.totalorder 1, %s13
      %p193 = scmp.lt.s32.totalorder %s13, 4
      %p194 = pnand %p192, %p193
      %p195 = pneg %p194
      // Predicated region
      $region33: #{tpu_custom_call.1} parent=5 // pred_check
        _
      $region34: #{tpu_custom_call.1} parent=5 // pred_check_branch
        %197 = sbr.rel (%p194) target = $region36
      $region35: #{tpu_custom_call.1} parent=5 // pred_region
        %s198 = ssub.s32 %s13, 1
        %s199 = smul.u32 32, %s18
        %s200 = ssub.s32 104, %s199
        %p201 = scmp.lt.s32.totalorder %s200, 32
        %s202 = scalar_select %p201, %s200, 32
        %s203 = smul.u32 128, %s202
        %p204 = scmp.lt.s32.totalorder %s199, 103
        %s205 = scalar_select %p204, %s199, 103
        %s206 = smul.addr %s205, 8
        %s207 = scalar_lea.vmem %s0, %s206
        %p208 = pneg %p39
        %p209 = pneg %p36
        %s210 = sadd.s32 %s18, 1
        %s211 = smul.u32 %s210, 4
        %s212 = smul.u32 8, %s211
        %p213 = scmp.lt.s32.totalorder %s212, 103
        %s214 = scalar_select %p213, %s212, 103
        %s215 = smul.addr %s214, 8
        %s216 = scalar_lea.vmem %s1, %s215
        %p217 = pneg %p69
        %p218 = pneg %p66
        %p219 = pneg %p90
        %p220 = pneg %p87
        %p221 = pneg %p111
        %p222 = pneg %p108
        %p223 = pneg %p137
        %p224 = pneg %p134
        %s225 = sand.u32 %s124, 1
        %s226 = scalar_lea.sflag [#allocation4], %s225
        %s227 = sand.u32 %s124, 1
        %s228 = smul.addr %s227, 256
        %s229 = scalar_lea.vmem [#allocation3], %s228
        %s230 = smul.u32 32, %s18
        %s231 = ssub.s32 104, %s230
        %p232 = scmp.lt.s32.totalorder %s231, 32
        %s233 = scalar_select %p232, %s231, 32
        %s234 = smul.u32 128, %s233
        %p235 = scmp.lt.s32.totalorder %s230, 103
        %s236 = scalar_select %p235, %s230, 103
        %s237 = smul.addr %s236, 8
        %s238 = scalar_lea.vmem %s0, %s237
        %s239 = smul.u32 32, %s18
        %s240 = ssub.s32 104, %s239
        %p241 = scmp.lt.s32.totalorder %s240, 32
        %s242 = scalar_select %p241, %s240, 32
        %s243 = smul.u32 128, %s242
        %s244 = sadd.s32 %s18, 1
        %s245 = smul.u32 %s244, 4
        %s246 = smul.u32 8, %s245
        %p247 = scmp.lt.s32.totalorder %s246, 103
        %s248 = scalar_select %p247, %s246, 103
        %s249 = smul.addr %s248, 8
        %s250 = scalar_lea.vmem %s1, %s249
        %s251 = sadd.s32 %s18, 1
        %s252 = smul.u32 %s251, 4
        %s253 = smul.u32 8, %s252
        %s254 = smul.u32 32, %s18
        %v255 = vld [vmem:[%s238] sm:$0xff]
        %v256 = vld [vmem:[%s238 + $0x8] sm:$0xff]
        %v257 = vld [vmem:[%s238 + $0x10] sm:$0xff]
        %v258 = vld [vmem:[%s238 + $0x18] sm:$0xff]
        %v259 = vld [vmem:[%s238 + $0x20] sm:$0xff]
        %v260 = vld [vmem:[%s238 + $0x28] sm:$0xff]
        %v261 = vld [vmem:[%s238 + $0x30] sm:$0xff]
        %v262 = vld [vmem:[%s238 + $0x38] sm:$0xff]
        %v263 = vld [vmem:[%s238 + $0x40] sm:$0xff]
        %v264 = vld [vmem:[%s238 + $0x48] sm:$0xff]
        %v265 = vld [vmem:[%s238 + $0x50] sm:$0xff]
        %v266 = vld [vmem:[%s238 + $0x58] sm:$0xff]
        %v267 = vld [vmem:[%s238 + $0x60] sm:$0xff]
        %v268 = vld [vmem:[%s238 + $0x68] sm:$0xff]
        %v269 = vld [vmem:[%s238 + $0x70] sm:$0xff]
        %v270 = vld [vmem:[%s238 + $0x78] sm:$0xff]
        %v271 = vld [vmem:[%s238 + $0x80] sm:$0xff]
        %v272 = vld [vmem:[%s238 + $0x88] sm:$0xff]
        %v273 = vld [vmem:[%s238 + $0x90] sm:$0xff]
        %v274 = vld [vmem:[%s238 + $0x98] sm:$0xff]
        %v275 = vld [vmem:[%s238 + $0xa0] sm:$0xff]
        %v276 = vld [vmem:[%s238 + $0xa8] sm:$0xff]
        %v277 = vld [vmem:[%s238 + $0xb0] sm:$0xff]
        %v278 = vld [vmem:[%s238 + $0xb8] sm:$0xff]
        %v279 = vld [vmem:[%s238 + $0xc0] sm:$0xff]
        %v280 = vld [vmem:[%s238 + $0xc8] sm:$0xff]
        %v281 = vld [vmem:[%s238 + $0xd0] sm:$0xff]
        %v282 = vld [vmem:[%s238 + $0xd8] sm:$0xff]
        %v283 = vld [vmem:[%s238 + $0xe0] sm:$0xff]
        %v284 = vld [vmem:[%s238 + $0xe8] sm:$0xff]
        %v285 = vld [vmem:[%s238 + $0xf0] sm:$0xff]
        %v286 = vld [vmem:[%s238 + $0xf8] sm:$0xff]
        %vm287 = vcmask 31744
        %288 = vst.msk [vmem:[#allocation2] sm:$0xff] %vm287, %v255
        %289 = vst.msk [vmem:[#allocation2 + $0x8] sm:$0xff] %vm287, %v256
        %290 = vst.msk [vmem:[#allocation2 + $0x10] sm:$0xff] %vm287, %v257
        %291 = vst.msk [vmem:[#allocation2 + $0x18] sm:$0xff] %vm287, %v258
        %292 = vst.msk [vmem:[#allocation2 + $0x20] sm:$0xff] %vm287, %v259
        %293 = vst.msk [vmem:[#allocation2 + $0x28] sm:$0xff] %vm287, %v260
        %294 = vst.msk [vmem:[#allocation2 + $0x30] sm:$0xff] %vm287, %v261
        %295 = vst.msk [vmem:[#allocation2 + $0x38] sm:$0xff] %vm287, %v262
        %296 = vst.msk [vmem:[#allocation2 + $0x40] sm:$0xff] %vm287, %v263
        %297 = vst.msk [vmem:[#allocation2 + $0x48] sm:$0xff] %vm287, %v264
        %298 = vst.msk [vmem:[#allocation2 + $0x50] sm:$0xff] %vm287, %v265
        %299 = vst.msk [vmem:[#allocation2 + $0x58] sm:$0xff] %vm287, %v266
        %300 = vst.msk [vmem:[#allocation2 + $0x60] sm:$0xff] %vm287, %v267
        %301 = vst.msk [vmem:[#allocation2 + $0x68] sm:$0xff] %vm287, %v268
        %302 = vst.msk [vmem:[#allocation2 + $0x70] sm:$0xff] %vm287, %v269
        %303 = vst.msk [vmem:[#allocation2 + $0x78] sm:$0xff] %vm287, %v270
        %304 = vst.msk [vmem:[#allocation2 + $0x80] sm:$0xff] %vm287, %v271
        %305 = vst.msk [vmem:[#allocation2 + $0x88] sm:$0xff] %vm287, %v272
        %306 = vst.msk [vmem:[#allocation2 + $0x90] sm:$0xff] %vm287, %v273
        %307 = vst.msk [vmem:[#allocation2 + $0x98] sm:$0xff] %vm287, %v274
        %308 = vst.msk [vmem:[#allocation2 + $0xa0] sm:$0xff] %vm287, %v275
        %309 = vst.msk [vmem:[#allocation2 + $0xa8] sm:$0xff] %vm287, %v276
        %310 = vst.msk [vmem:[#allocation2 + $0xb0] sm:$0xff] %vm287, %v277
        %311 = vst.msk [vmem:[#allocation2 + $0xb8] sm:$0xff] %vm287, %v278
        %312 = vst.msk [vmem:[#allocation2 + $0xc0] sm:$0xff] %vm287, %v279
        %313 = vst.msk [vmem:[#allocation2 + $0xc8] sm:$0xff] %vm287, %v280
        %314 = vst.msk [vmem:[#allocation2 + $0xd0] sm:$0xff] %vm287, %v281
        %315 = vst.msk [vmem:[#allocation2 + $0xd8] sm:$0xff] %vm287, %v282
        %316 = vst.msk [vmem:[#allocation2 + $0xe0] sm:$0xff] %vm287, %v283
        %317 = vst.msk [vmem:[#allocation2 + $0xe8] sm:$0xff] %vm287, %v284
        %318 = vst.msk [vmem:[#allocation2 + $0xf0] sm:$0xff] %vm287, %v285
        %319 = vst.msk [vmem:[#allocation2 + $0xf8] sm:$0xff] %vm287, %v286
        %v320 = vld [vmem:[%s250] sm:$0xff]
        %v321 = vld [vmem:[%s250 + $0x8] sm:$0xff]
        %v322 = vld [vmem:[%s250 + $0x10] sm:$0xff]
        %v323 = vld [vmem:[%s250 + $0x18] sm:$0xff]
        %v324 = vld [vmem:[%s250 + $0x20] sm:$0xff]
        %v325 = vld [vmem:[%s250 + $0x28] sm:$0xff]
        %v326 = vld [vmem:[%s250 + $0x30] sm:$0xff]
        %v327 = vld [vmem:[%s250 + $0x38] sm:$0xff]
        %328 = vst.msk [vmem:[#allocation2 + $0x100] sm:$0xff] %vm287, %v320
        %329 = vst.msk [vmem:[#allocation2 + $0x108] sm:$0xff] %vm287, %v321
        %330 = vst.msk [vmem:[#allocation2 + $0x110] sm:$0xff] %vm287, %v322
        %331 = vst.msk [vmem:[#allocation2 + $0x118] sm:$0xff] %vm287, %v323
        %332 = vst.msk [vmem:[#allocation2 + $0x120] sm:$0xff] %vm287, %v324
        %333 = vst.msk [vmem:[#allocation2 + $0x128] sm:$0xff] %vm287, %v325
        %334 = vst.msk [vmem:[#allocation2 + $0x130] sm:$0xff] %vm287, %v326
        %335 = vst.msk [vmem:[#allocation2 + $0x138] sm:$0xff] %vm287, %v327
        %v336 = vld [vmem:[#allocation2] sm:$0xff]
        %v337 = vld [vmem:[#allocation2 + $0x8] sm:$0xff]
        %v338 = vld [vmem:[#allocation2 + $0x10] sm:$0xff]
        %v339 = vld [vmem:[#allocation2 + $0x18] sm:$0xff]
        %v340 = vld [vmem:[#allocation2 + $0x20] sm:$0xff]
        %v341 = vld [vmem:[#allocation2 + $0x28] sm:$0xff]
        %v342 = vld [vmem:[#allocation2 + $0x30] sm:$0xff]
        %v343 = vld [vmem:[#allocation2 + $0x38] sm:$0xff]
        %v344 = vld [vmem:[#allocation2 + $0x40] sm:$0xff]
        %v345 = vld [vmem:[#allocation2 + $0x48] sm:$0xff]
        %v346 = vld [vmem:[#allocation2 + $0x50] sm:$0xff]
        %v347 = vld [vmem:[#allocation2 + $0x58] sm:$0xff]
        %v348 = vld [vmem:[#allocation2 + $0x60] sm:$0xff]
        %v349 = vld [vmem:[#allocation2 + $0x68] sm:$0xff]
        %v350 = vld [vmem:[#allocation2 + $0x70] sm:$0xff]
        %v351 = vld [vmem:[#allocation2 + $0x78] sm:$0xff]
        %v352 = vld [vmem:[#allocation2 + $0x80] sm:$0xff]
        %v353 = vld [vmem:[#allocation2 + $0x88] sm:$0xff]
        %v354 = vld [vmem:[#allocation2 + $0x90] sm:$0xff]
        %v355 = vld [vmem:[#allocation2 + $0x98] sm:$0xff]
        %v356 = vld [vmem:[#allocation2 + $0xa0] sm:$0xff]
        %v357 = vld [vmem:[#allocation2 + $0xa8] sm:$0xff]
        %v358 = vld [vmem:[#allocation2 + $0xb0] sm:$0xff]
        %v359 = vld [vmem:[#allocation2 + $0xb8] sm:$0xff]
        %v360 = vld [vmem:[#allocation2 + $0xc0] sm:$0xff]
        %v361 = vld [vmem:[#allocation2 + $0xc8] sm:$0xff]
        %v362 = vld [vmem:[#allocation2 + $0xd0] sm:$0xff]
        %v363 = vld [vmem:[#allocation2 + $0xd8] sm:$0xff]
        %v364 = vld [vmem:[#allocation2 + $0xe0] sm:$0xff]
        %v365 = vld [vmem:[#allocation2 + $0xe8] sm:$0xff]
        %v366 = vld [vmem:[#allocation2 + $0xf0] sm:$0xff]
        %v367 = vld [vmem:[#allocation2 + $0xf8] sm:$0xff]
        %v368 = vld [vmem:[%s2] sm:$0xf]
        %v369 = vld [vmem:[#allocation2 + $0x1] sm:$0xff]
        %v370 = vld [vmem:[#allocation2 + $0x9] sm:$0xff]
        %v371 = vld [vmem:[#allocation2 + $0x11] sm:$0xff]
        %v372 = vld [vmem:[#allocation2 + $0x19] sm:$0xff]
        %v373 = vld [vmem:[#allocation2 + $0x21] sm:$0xff]
        %v374 = vld [vmem:[#allocation2 + $0x29] sm:$0xff]
        %v375 = vld [vmem:[#allocation2 + $0x31] sm:$0xff]
        %v376 = vld [vmem:[#allocation2 + $0x39] sm:$0xff]
        %v377 = vld [vmem:[#allocation2 + $0x41] sm:$0xff]
        %v378 = vld [vmem:[#allocation2 + $0x49] sm:$0xff]
        %v379 = vld [vmem:[#allocation2 + $0x51] sm:$0xff]
        %v380 = vld [vmem:[#allocation2 + $0x59] sm:$0xff]
        %v381 = vld [vmem:[#allocation2 + $0x61] sm:$0xff]
        %v382 = vld [vmem:[#allocation2 + $0x69] sm:$0xff]
        %v383 = vld [vmem:[#allocation2 + $0x71] sm:$0xff]
        %v384 = vld [vmem:[#allocation2 + $0x79] sm:$0xff]
        %v385 = vld [vmem:[#allocation2 + $0x81] sm:$0xff]
        %v386 = vld [vmem:[#allocation2 + $0x89] sm:$0xff]
        %v387 = vld [vmem:[#allocation2 + $0x91] sm:$0xff]
        %v388 = vld [vmem:[#allocation2 + $0x99] sm:$0xff]
        %v389 = vld [vmem:[#allocation2 + $0xa1] sm:$0xff]
        %v390 = vld [vmem:[#allocation2 + $0xa9] sm:$0xff]
        %v391 = vld [vmem:[#allocation2 + $0xb1] sm:$0xff]
        %v392 = vld [vmem:[#allocation2 + $0xb9] sm:$0xff]
        %v393 = vld [vmem:[#allocation2 + $0xc1] sm:$0xff]
        %v394 = vld [vmem:[#allocation2 + $0xc9] sm:$0xff]
        %v395 = vld [vmem:[#allocation2 + $0xd1] sm:$0xff]
        %v396 = vld [vmem:[#allocation2 + $0xd9] sm:$0xff]
        %v397 = vld [vmem:[#allocation2 + $0xe1] sm:$0xff]
        %v398 = vld [vmem:[#allocation2 + $0xe9] sm:$0xff]
        %v399 = vld [vmem:[#allocation2 + $0xf1] sm:$0xff]
        %v400 = vld [vmem:[#allocation2 + $0xf9] sm:$0xff]
        %s401 = scalar_lea.vmem %s2, 4
        %v402 = vld [vmem:[%s401] sm:$0xf]
        %v404 = vsel %vm287, %v369, 0
        %v407 = vsel %vm287, %v370, 0
        %v410 = vsel %vm287, %v371, 0
        %v413 = vsel %vm287, %v372, 0
        %v416 = vsel %vm287, %v373, 0
        %v419 = vsel %vm287, %v374, 0
        %v422 = vsel %vm287, %v375, 0
        %v425 = vsel %vm287, %v376, 0
        %v428 = vsel %vm287, %v377, 0
        %v431 = vsel %vm287, %v378, 0
        %v434 = vsel %vm287, %v379, 0
        %v437 = vsel %vm287, %v380, 0
        %v440 = vsel %vm287, %v381, 0
        %v443 = vsel %vm287, %v382, 0
        %v446 = vsel %vm287, %v383, 0
        %v449 = vsel %vm287, %v384, 0
        %v452 = vsel %vm287, %v385, 0
        %v455 = vsel %vm287, %v386, 0
        %v458 = vsel %vm287, %v387, 0
        %v461 = vsel %vm287, %v388, 0
        %v464 = vsel %vm287, %v389, 0
        %v467 = vsel %vm287, %v390, 0
        %v470 = vsel %vm287, %v391, 0
        %v473 = vsel %vm287, %v392, 0
        %v476 = vsel %vm287, %v393, 0
        %v479 = vsel %vm287, %v394, 0
        %v482 = vsel %vm287, %v395, 0
        %v485 = vsel %vm287, %v396, 0
        %v488 = vsel %vm287, %v397, 0
        %v491 = vsel %vm287, %v398, 0
        %v494 = vsel %vm287, %v399, 0
        %v497 = vsel %vm287, %v400, 0
        %vm499 = vcmask 1043456
        %v501 = vsel %vm499, %v402, 0
        %503 = vmatprep.subr.mxu0 0.0
        %504 = vmatpush1.msra.mxu0 %v501
        %505 = vmatprep.subr.mxu0 0.0
        %506 = vmatpush1.msra.mxu0 0.0
        %507 = vmatprep.subr.mxu0 0.0
        %508 = vmatpush1.msra.mxu0 0.0
        %509 = vmatprep.subr.mxu0 0.0
        %510 = vmatpush1.msra.mxu0 0.0
        %511 = vmatprep.subr.mxu0 0.0
        %512 = vmatpush1.msra.mxu0 0.0
        %513 = vmatprep.subr.mxu0 0.0
        %514 = vmatpush1.msra.mxu0 0.0
        %515 = vmatprep.subr.mxu0 0.0
        %516 = vmatpush1.msra.mxu0 0.0
        %517 = vmatprep.subr.mxu0 0.0
        %518 = vmatpush1.msra.mxu0 0.0
        %519 = vmatprep.subr.mxu0 0.0
        %520 = vmatpush1.msra.mxu0 0.0
        %521 = vmatprep.subr.mxu0 0.0
        %522 = vmatpush1.msra.mxu0 0.0
        %523 = vmatprep.subr.mxu0 0.0
        %524 = vmatpush1.msra.mxu0 0.0
        %525 = vmatprep.subr.mxu0 0.0
        %526 = vmatpush1.msra.mxu0 0.0
        %527 = vmatprep.subr.mxu0 0.0
        %528 = vmatpush1.msra.mxu0 0.0
        %529 = vmatprep.subr.mxu0 0.0
        %530 = vmatpush1.msra.mxu0 0.0
        %531 = vmatprep.subr.mxu0 0.0
        %532 = vmatpush1.msra.mxu0 0.0
        %533 = vmatprep.subr.mxu0 0.0
        %534 = vmatpush1.msra.mxu0 0.0
        %535 = vmatprep.subr.mxu0 0.0
        %536 = vmatpush1.msra.mxu0 0.0
        %537 = vmatprep.subr.mxu0 0.0
        %538 = vmatpush1.msra.mxu0 0.0
        %539 = vmatprep.subr.mxu0 0.0
        %540 = vmatpush1.msra.mxu0 0.0
        %541 = vmatprep.subr.mxu0 0.0
        %542 = vmatpush1.msra.mxu0 0.0
        %543 = vmatprep.subr.mxu0 0.0
        %544 = vmatpush1.msra.mxu0 0.0
        %545 = vmatprep.subr.mxu0 0.0
        %546 = vmatpush1.msra.mxu0 0.0
        %547 = vmatprep.subr.mxu0 0.0
        %548 = vmatpush1.msra.mxu0 0.0
        %549 = vmatprep.subr.mxu0 0.0
        %550 = vmatpush1.msra.mxu0 0.0
        %551 = vmatprep.subr.mxu0 0.0
        %552 = vmatpush1.msra.mxu0 0.0
        %553 = vmatprep.subr.mxu0 0.0
        %554 = vmatpush1.msra.mxu0 0.0
        %555 = vmatprep.subr.mxu0 0.0
        %556 = vmatpush1.msra.mxu0 0.0
        %557 = vmatprep.subr.mxu0 0.0
        %558 = vmatpush1.msra.mxu0 0.0
        %559 = vmatprep.subr.mxu0 0.0
        %560 = vmatpush1.msra.mxu0 0.0
        %561 = vmatprep.subr.mxu0 0.0
        %562 = vmatpush1.msra.mxu0 0.0
        %563 = vmatprep.subr.mxu0 0.0
        %564 = vmatpush1.msra.mxu0 0.0
        %565 = vmatprep.subr.mxu0 0.0
        %566 = vmatpush1.msra.mxu0 0.0
        %567 = vmatprep.mubr.f32.mxu0 0.0
        %568 = vmatmul.mubr.f32.gmra.mrb[0].mxu0 %v404
        %v569 = vpop.f32.mrb[0].mxu0
        %v570 = vadd.f32 0.0, %v569
        %v571 = vpop.f32.mrb[0].mxu0
        %572 = vmatprep.mubr.f32.mxu0 0.0
        %573 = vmatmul.mubr.f32.gmra.mrb[0].mxu0 %v407
        %v574 = vpop.f32.mrb[0].mxu0
        %v575 = vadd.f32 0.0, %v574
        %v576 = vpop.f32.mrb[0].mxu0
        %577 = vmatprep.mubr.f32.mxu0 0.0
        %578 = vmatmul.mubr.f32.gmra.mrb[0].mxu0 %v410
        %v579 = vpop.f32.mrb[0].mxu0
        %v580 = vadd.f32 0.0, %v579
        %v581 = vpop.f32.mrb[0].mxu0
        %582 = vmatprep.mubr.f32.mxu0 0.0
        %583 = vmatmul.mubr.f32.gmra.mrb[0].mxu0 %v413
        %v584 = vpop.f32.mrb[0].mxu0
        %v585 = vadd.f32 0.0, %v584
        %v586 = vpop.f32.mrb[0].mxu0
        %587 = vmatprep.mubr.f32.mxu0 0.0
        %588 = vmatmul.mubr.f32.gmra.mrb[0].mxu0 %v416
        %v589 = vpop.f32.mrb[0].mxu0
        %v590 = vadd.f32 0.0, %v589
        %v591 = vpop.f32.mrb[0].mxu0
        %592 = vmatprep.mubr.f32.mxu0 0.0
        %593 = vmatmul.mubr.f32.gmra.mrb[0].mxu0 %v419
        %v594 = vpop.f32.mrb[0].mxu0
        %v595 = vadd.f32 0.0, %v594
        %v596 = vpop.f32.mrb[0].mxu0
        %597 = vmatprep.mubr.f32.mxu0 0.0
        %598 = vmatmul.mubr.f32.gmra.mrb[0].mxu0 %v422
        %v599 = vpop.f32.mrb[0].mxu0
        %v600 = vadd.f32 0.0, %v599
        %v601 = vpop.f32.mrb[0].mxu0
        %602 = vmatprep.mubr.f32.mxu0 0.0
        %603 = vmatmul.mubr.f32.gmra.mrb[0].mxu0 %v425
        %v604 = vpop.f32.mrb[0].mxu0
        %v605 = vadd.f32 0.0, %v604
        %v606 = vpop.f32.mrb[0].mxu0
        %607 = vmatprep.mubr.f32.mxu0 0.0
        %608 = vmatmul.mubr.f32.gmra.mrb[0].mxu0 %v428
        %v609 = vpop.f32.mrb[0].mxu0
        %v610 = vadd.f32 0.0, %v609
        %v611 = vpop.f32.mrb[0].mxu0
        %612 = vmatprep.mubr.f32.mxu0 0.0
        %613 = vmatmul.mubr.f32.gmra.mrb[0].mxu0 %v431
        %v614 = vpop.f32.mrb[0].mxu0
        %v615 = vadd.f32 0.0, %v614
        %v616 = vpop.f32.mrb[0].mxu0
        %617 = vmatprep.mubr.f32.mxu0 0.0
        %618 = vmatmul.mubr.f32.gmra.mrb[0].mxu0 %v434
        %v619 = vpop.f32.mrb[0].mxu0
        %v620 = vadd.f32 0.0, %v619
        %v621 = vpop.f32.mrb[0].mxu0
        %622 = vmatprep.mubr.f32.mxu0 0.0
        %623 = vmatmul.mubr.f32.gmra.mrb[0].mxu0 %v437
        %v624 = vpop.f32.mrb[0].mxu0
        %v625 = vadd.f32 0.0, %v624
        %v626 = vpop.f32.mrb[0].mxu0
        %627 = vmatprep.mubr.f32.mxu0 0.0
        %628 = vmatmul.mubr.f32.gmra.mrb[0].mxu0 %v440
        %v629 = vpop.f32.mrb[0].mxu0
        %v630 = vadd.f32 0.0, %v629
        %v631 = vpop.f32.mrb[0].mxu0
        %632 = vmatprep.mubr.f32.mxu0 0.0
        %633 = vmatmul.mubr.f32.gmra.mrb[0].mxu0 %v443
        %v634 = vpop.f32.mrb[0].mxu0
        %v635 = vadd.f32 0.0, %v634
        %v636 = vpop.f32.mrb[0].mxu0
        %637 = vmatprep.mubr.f32.mxu0 0.0
        %638 = vmatmul.mubr.f32.gmra.mrb[0].mxu0 %v446
        %v639 = vpop.f32.mrb[0].mxu0
        %v640 = vadd.f32 0.0, %v639
        %v641 = vpop.f32.mrb[0].mxu0
        %642 = vmatprep.mubr.f32.mxu0 0.0
        %643 = vmatmul.mubr.f32.gmra.mrb[0].mxu0 %v449
        %v644 = vpop.f32.mrb[0].mxu0
        %v645 = vadd.f32 0.0, %v644
        %v646 = vpop.f32.mrb[0].mxu0
        %647 = vmatprep.mubr.f32.mxu0 0.0
        %648 = vmatmul.mubr.f32.gmra.mrb[0].mxu0 %v452
        %v649 = vpop.f32.mrb[0].mxu0
        %v650 = vadd.f32 0.0, %v649
        %v651 = vpop.f32.mrb[0].mxu0
        %652 = vmatprep.mubr.f32.mxu0 0.0
        %653 = vmatmul.mubr.f32.gmra.mrb[0].mxu0 %v455
        %v654 = vpop.f32.mrb[0].mxu0
        %v655 = vadd.f32 0.0, %v654
        %v656 = vpop.f32.mrb[0].mxu0
        %657 = vmatprep.mubr.f32.mxu0 0.0
        %658 = vmatmul.mubr.f32.gmra.mrb[0].mxu0 %v458
        %v659 = vpop.f32.mrb[0].mxu0
        %v660 = vadd.f32 0.0, %v659
        %v661 = vpop.f32.mrb[0].mxu0
        %662 = vmatprep.mubr.f32.mxu0 0.0
        %663 = vmatmul.mubr.f32.gmra.mrb[0].mxu0 %v461
        %v664 = vpop.f32.mrb[0].mxu0
        %v665 = vadd.f32 0.0, %v664
        %v666 = vpop.f32.mrb[0].mxu0
        %667 = vmatprep.mubr.f32.mxu0 0.0
        %668 = vmatmul.mubr.f32.gmra.mrb[0].mxu0 %v464
        %v669 = vpop.f32.mrb[0].mxu0
        %v670 = vadd.f32 0.0, %v669
        %v671 = vpop.f32.mrb[0].mxu0
        %672 = vmatprep.mubr.f32.mxu0 0.0
        %673 = vmatmul.mubr.f32.gmra.mrb[0].mxu0 %v467
        %v674 = vpop.f32.mrb[0].mxu0
        %v675 = vadd.f32 0.0, %v674
        %v676 = vpop.f32.mrb[0].mxu0
        %677 = vmatprep.mubr.f32.mxu0 0.0
        %678 = vmatmul.mubr.f32.gmra.mrb[0].mxu0 %v470
        %v679 = vpop.f32.mrb[0].mxu0
        %v680 = vadd.f32 0.0, %v679
        %v681 = vpop.f32.mrb[0].mxu0
        %682 = vmatprep.mubr.f32.mxu0 0.0
        %683 = vmatmul.mubr.f32.gmra.mrb[0].mxu0 %v473
        %v684 = vpop.f32.mrb[0].mxu0
        %v685 = vadd.f32 0.0, %v684
        %v686 = vpop.f32.mrb[0].mxu0
        %687 = vmatprep.mubr.f32.mxu0 0.0
        %688 = vmatmul.mubr.f32.gmra.mrb[0].mxu0 %v476
        %v689 = vpop.f32.mrb[0].mxu0
        %v690 = vadd.f32 0.0, %v689
        %v691 = vpop.f32.mrb[0].mxu0
        %692 = vmatprep.mubr.f32.mxu0 0.0
        %693 = vmatmul.mubr.f32.gmra.mrb[0].mxu0 %v479
        %v694 = vpop.f32.mrb[0].mxu0
        %v695 = vadd.f32 0.0, %v694
        %v696 = vpop.f32.mrb[0].mxu0
        %697 = vmatprep.mubr.f32.mxu0 0.0
        %698 = vmatmul.mubr.f32.gmra.mrb[0].mxu0 %v482
        %v699 = vpop.f32.mrb[0].mxu0
        %v700 = vadd.f32 0.0, %v699
        %v701 = vpop.f32.mrb[0].mxu0
        %702 = vmatprep.mubr.f32.mxu0 0.0
        %703 = vmatmul.mubr.f32.gmra.mrb[0].mxu0 %v485
        %v704 = vpop.f32.mrb[0].mxu0
        %v705 = vadd.f32 0.0, %v704
        %v706 = vpop.f32.mrb[0].mxu0
        %707 = vmatprep.mubr.f32.mxu0 0.0
        %708 = vmatmul.mubr.f32.gmra.mrb[0].mxu0 %v488
        %v709 = vpop.f32.mrb[0].mxu0
        %v710 = vadd.f32 0.0, %v709
        %v711 = vpop.f32.mrb[0].mxu0
        %712 = vmatprep.mubr.f32.mxu0 0.0
        %713 = vmatmul.mubr.f32.gmra.mrb[0].mxu0 %v491
        %v714 = vpop.f32.mrb[0].mxu0
        %v715 = vadd.f32 0.0, %v714
        %v716 = vpop.f32.mrb[0].mxu0
        %717 = vmatprep.mubr.f32.mxu0 0.0
        %718 = vmatmul.mubr.f32.gmra.mrb[0].mxu0 %v494
        %v719 = vpop.f32.mrb[0].mxu0
        %v720 = vadd.f32 0.0, %v719
        %v721 = vpop.f32.mrb[0].mxu0
        %722 = vmatprep.mubr.f32.mxu0 0.0
        %723 = vmatmul.mubr.f32.gmra.mrb[0].mxu0 %v497
        %v724 = vpop.f32.mrb[0].mxu0
        %v725 = vadd.f32 0.0, %v724
        %v726 = vpop.f32.mrb[0].mxu0
        %727 = vdwg.mxu0
        %v729 = vsel %vm287, %v336, 0
        %v732 = vsel %vm287, %v337, 0
        %v735 = vsel %vm287, %v338, 0
        %v738 = vsel %vm287, %v339, 0
        %v741 = vsel %vm287, %v340, 0
        %v744 = vsel %vm287, %v341, 0
        %v747 = vsel %vm287, %v342, 0
        %v750 = vsel %vm287, %v343, 0
        %v753 = vsel %vm287, %v344, 0
        %v756 = vsel %vm287, %v345, 0
        %v759 = vsel %vm287, %v346, 0
        %v762 = vsel %vm287, %v347, 0
        %v765 = vsel %vm287, %v348, 0
        %v768 = vsel %vm287, %v349, 0
        %v771 = vsel %vm287, %v350, 0
        %v774 = vsel %vm287, %v351, 0
        %v777 = vsel %vm287, %v352, 0
        %v780 = vsel %vm287, %v353, 0
        %v783 = vsel %vm287, %v354, 0
        %v786 = vsel %vm287, %v355, 0
        %v789 = vsel %vm287, %v356, 0
        %v792 = vsel %vm287, %v357, 0
        %v795 = vsel %vm287, %v358, 0
        %v798 = vsel %vm287, %v359, 0
        %v801 = vsel %vm287, %v360, 0
        %v804 = vsel %vm287, %v361, 0
        %v807 = vsel %vm287, %v362, 0
        %v810 = vsel %vm287, %v363, 0
        %v813 = vsel %vm287, %v364, 0
        %v816 = vsel %vm287, %v365, 0
        %v819 = vsel %vm287, %v366, 0
        %v822 = vsel %vm287, %v367, 0
        %v825 = vsel %vm499, %v368, 0
        %827 = vmatprep.subr.mxu0 0.0
        %828 = vmatpush1.msra.mxu0 %v825
        %829 = vmatprep.subr.mxu0 0.0
        %830 = vmatpush1.msra.mxu0 0.0
        %831 = vmatprep.subr.mxu0 0.0
        %832 = vmatpush1.msra.mxu0 0.0
        %833 = vmatprep.subr.mxu0 0.0
        %834 = vmatpush1.msra.mxu0 0.0
        %835 = vmatprep.subr.mxu0 0.0
        %836 = vmatpush1.msra.mxu0 0.0
        %837 = vmatprep.subr.mxu0 0.0
        %838 = vmatpush1.msra.mxu0 0.0
        %839 = vmatprep.subr.mxu0 0.0
        %840 = vmatpush1.msra.mxu0 0.0
        %841 = vmatprep.subr.mxu0 0.0
        %842 = vmatpush1.msra.mxu0 0.0
        %843 = vmatprep.subr.mxu0 0.0
        %844 = vmatpush1.msra.mxu0 0.0
        %845 = vmatprep.subr.mxu0 0.0
        %846 = vmatpush1.msra.mxu0 0.0
        %847 = vmatprep.subr.mxu0 0.0
        %848 = vmatpush1.msra.mxu0 0.0
        %849 = vmatprep.subr.mxu0 0.0
        %850 = vmatpush1.msra.mxu0 0.0
        %851 = vmatprep.subr.mxu0 0.0
        %852 = vmatpush1.msra.mxu0 0.0
        %853 = vmatprep.subr.mxu0 0.0
        %854 = vmatpush1.msra.mxu0 0.0
        %855 = vmatprep.subr.mxu0 0.0
        %856 = vmatpush1.msra.mxu0 0.0
        %857 = vmatprep.subr.mxu0 0.0
        %858 = vmatpush1.msra.mxu0 0.0
        %859 = vmatprep.subr.mxu0 0.0
        %860 = vmatpush1.msra.mxu0 0.0
        %861 = vmatprep.subr.mxu0 0.0
        %862 = vmatpush1.msra.mxu0 0.0
        %863 = vmatprep.subr.mxu0 0.0
        %864 = vmatpush1.msra.mxu0 0.0
        %865 = vmatprep.subr.mxu0 0.0
        %866 = vmatpush1.msra.mxu0 0.0
        %867 = vmatprep.subr.mxu0 0.0
        %868 = vmatpush1.msra.mxu0 0.0
        %869 = vmatprep.subr.mxu0 0.0
        %870 = vmatpush1.msra.mxu0 0.0
        %871 = vmatprep.subr.mxu0 0.0
        %872 = vmatpush1.msra.mxu0 0.0
        %873 = vmatprep.subr.mxu0 0.0
        %874 = vmatpush1.msra.mxu0 0.0
        %875 = vmatprep.subr.mxu0 0.0
        %876 = vmatpush1.msra.mxu0 0.0
        %877 = vmatprep.subr.mxu0 0.0
        %878 = vmatpush1.msra.mxu0 0.0
        %879 = vmatprep.subr.mxu0 0.0
        %880 = vmatpush1.msra.mxu0 0.0
        %881 = vmatprep.subr.mxu0 0.0
        %882 = vmatpush1.msra.mxu0 0.0
        %883 = vmatprep.subr.mxu0 0.0
        %884 = vmatpush1.msra.mxu0 0.0
        %885 = vmatprep.subr.mxu0 0.0
        %886 = vmatpush1.msra.mxu0 0.0
        %887 = vmatprep.subr.mxu0 0.0
        %888 = vmatpush1.msra.mxu0 0.0
        %889 = vmatprep.subr.mxu0 0.0
        %890 = vmatpush1.msra.mxu0 0.0
        %891 = vmatprep.mubr.f32.mxu0 0.0
        %892 = vmatmul.mubr.f32.gmra.mrb[0].mxu0 %v729
        %v893 = vpop.f32.mrb[0].mxu0
        %v894 = vadd.f32 %v570, %v893
        %v895 = vpop.f32.mrb[0].mxu0
        %896 = vmatprep.mubr.f32.mxu0 0.0
        %897 = vmatmul.mubr.f32.gmra.mrb[0].mxu0 %v732
        %v898 = vpop.f32.mrb[0].mxu0
        %v899 = vadd.f32 %v575, %v898
        %v900 = vpop.f32.mrb[0].mxu0
        %901 = vmatprep.mubr.f32.mxu0 0.0
        %902 = vmatmul.mubr.f32.gmra.mrb[0].mxu0 %v735
        %v903 = vpop.f32.mrb[0].mxu0
        %v904 = vadd.f32 %v580, %v903
        %v905 = vpop.f32.mrb[0].mxu0
        %906 = vmatprep.mubr.f32.mxu0 0.0
        %907 = vmatmul.mubr.f32.gmra.mrb[0].mxu0 %v738
        %v908 = vpop.f32.mrb[0].mxu0
        %v909 = vadd.f32 %v585, %v908
        %v910 = vpop.f32.mrb[0].mxu0
        %911 = vmatprep.mubr.f32.mxu0 0.0
        %912 = vmatmul.mubr.f32.gmra.mrb[0].mxu0 %v741
        %v913 = vpop.f32.mrb[0].mxu0
        %v914 = vadd.f32 %v590, %v913
        %v915 = vpop.f32.mrb[0].mxu0
        %916 = vmatprep.mubr.f32.mxu0 0.0
        %917 = vmatmul.mubr.f32.gmra.mrb[0].mxu0 %v744
        %v918 = vpop.f32.mrb[0].mxu0
        %v919 = vadd.f32 %v595, %v918
        %v920 = vpop.f32.mrb[0].mxu0
        %921 = vmatprep.mubr.f32.mxu0 0.0
        %922 = vmatmul.mubr.f32.gmra.mrb[0].mxu0 %v747
        %v923 = vpop.f32.mrb[0].mxu0
        %v924 = vadd.f32 %v600, %v923
        %v925 = vpop.f32.mrb[0].mxu0
        %926 = vmatprep.mubr.f32.mxu0 0.0
        %927 = vmatmul.mubr.f32.gmra.mrb[0].mxu0 %v750
        %v928 = vpop.f32.mrb[0].mxu0
        %v929 = vadd.f32 %v605, %v928
        %v930 = vpop.f32.mrb[0].mxu0
        %931 = vmatprep.mubr.f32.mxu0 0.0
        %932 = vmatmul.mubr.f32.gmra.mrb[0].mxu0 %v753
        %v933 = vpop.f32.mrb[0].mxu0
        %v934 = vadd.f32 %v610, %v933
        %v935 = vpop.f32.mrb[0].mxu0
        %936 = vmatprep.mubr.f32.mxu0 0.0
        %937 = vmatmul.mubr.f32.gmra.mrb[0].mxu0 %v756
        %v938 = vpop.f32.mrb[0].mxu0
        %v939 = vadd.f32 %v615, %v938
        %v940 = vpop.f32.mrb[0].mxu0
        %941 = vmatprep.mubr.f32.mxu0 0.0
        %942 = vmatmul.mubr.f32.gmra.mrb[0].mxu0 %v759
        %v943 = vpop.f32.mrb[0].mxu0
        %v944 = vadd.f32 %v620, %v943
        %v945 = vpop.f32.mrb[0].mxu0
        %946 = vmatprep.mubr.f32.mxu0 0.0
        %947 = vmatmul.mubr.f32.gmra.mrb[0].mxu0 %v762
        %v948 = vpop.f32.mrb[0].mxu0
        %v949 = vadd.f32 %v625, %v948
        %v950 = vpop.f32.mrb[0].mxu0
        %951 = vmatprep.mubr.f32.mxu0 0.0
        %952 = vmatmul.mubr.f32.gmra.mrb[0].mxu0 %v765
        %v953 = vpop.f32.mrb[0].mxu0
        %v954 = vadd.f32 %v630, %v953
        %v955 = vpop.f32.mrb[0].mxu0
        %956 = vmatprep.mubr.f32.mxu0 0.0
        %957 = vmatmul.mubr.f32.gmra.mrb[0].mxu0 %v768
        %v958 = vpop.f32.mrb[0].mxu0
        %v959 = vadd.f32 %v635, %v958
        %v960 = vpop.f32.mrb[0].mxu0
        %961 = vmatprep.mubr.f32.mxu0 0.0
        %962 = vmatmul.mubr.f32.gmra.mrb[0].mxu0 %v771
        %v963 = vpop.f32.mrb[0].mxu0
        %v964 = vadd.f32 %v640, %v963
        %v965 = vpop.f32.mrb[0].mxu0
        %966 = vmatprep.mubr.f32.mxu0 0.0
        %967 = vmatmul.mubr.f32.gmra.mrb[0].mxu0 %v774
        %v968 = vpop.f32.mrb[0].mxu0
        %v969 = vadd.f32 %v645, %v968
        %v970 = vpop.f32.mrb[0].mxu0
        %971 = vmatprep.mubr.f32.mxu0 0.0
        %972 = vmatmul.mubr.f32.gmra.mrb[0].mxu0 %v777
        %v973 = vpop.f32.mrb[0].mxu0
        %v974 = vadd.f32 %v650, %v973
        %v975 = vpop.f32.mrb[0].mxu0
        %976 = vmatprep.mubr.f32.mxu0 0.0
        %977 = vmatmul.mubr.f32.gmra.mrb[0].mxu0 %v780
        %v978 = vpop.f32.mrb[0].mxu0
        %v979 = vadd.f32 %v655, %v978
        %v980 = vpop.f32.mrb[0].mxu0
        %981 = vmatprep.mubr.f32.mxu0 0.0
        %982 = vmatmul.mubr.f32.gmra.mrb[0].mxu0 %v783
        %v983 = vpop.f32.mrb[0].mxu0
        %v984 = vadd.f32 %v660, %v983
        %v985 = vpop.f32.mrb[0].mxu0
        %986 = vmatprep.mubr.f32.mxu0 0.0
        %987 = vmatmul.mubr.f32.gmra.mrb[0].mxu0 %v786
        %v988 = vpop.f32.mrb[0].mxu0
        %v989 = vadd.f32 %v665, %v988
        %v990 = vpop.f32.mrb[0].mxu0
        %991 = vmatprep.mubr.f32.mxu0 0.0
        %992 = vmatmul.mubr.f32.gmra.mrb[0].mxu0 %v789
        %v993 = vpop.f32.mrb[0].mxu0
        %v994 = vadd.f32 %v670, %v993
        %v995 = vpop.f32.mrb[0].mxu0
        %996 = vmatprep.mubr.f32.mxu0 0.0
        %997 = vmatmul.mubr.f32.gmra.mrb[0].mxu0 %v792
        %v998 = vpop.f32.mrb[0].mxu0
        %v999 = vadd.f32 %v675, %v998
        %v1000 = vpop.f32.mrb[0].mxu0
        %1001 = vmatprep.mubr.f32.mxu0 0.0
        %1002 = vmatmul.mubr.f32.gmra.mrb[0].mxu0 %v795
        %v1003 = vpop.f32.mrb[0].mxu0
        %v1004 = vadd.f32 %v680, %v1003
        %v1005 = vpop.f32.mrb[0].mxu0
        %1006 = vmatprep.mubr.f32.mxu0 0.0
        %1007 = vmatmul.mubr.f32.gmra.mrb[0].mxu0 %v798
        %v1008 = vpop.f32.mrb[0].mxu0
        %v1009 = vadd.f32 %v685, %v1008
        %v1010 = vpop.f32.mrb[0].mxu0
        %1011 = vmatprep.mubr.f32.mxu0 0.0
        %1012 = vmatmul.mubr.f32.gmra.mrb[0].mxu0 %v801
        %v1013 = vpop.f32.mrb[0].mxu0
        %v1014 = vadd.f32 %v690, %v1013
        %v1015 = vpop.f32.mrb[0].mxu0
        %1016 = vmatprep.mubr.f32.mxu0 0.0
        %1017 = vmatmul.mubr.f32.gmra.mrb[0].mxu0 %v804
        %v1018 = vpop.f32.mrb[0].mxu0
        %v1019 = vadd.f32 %v695, %v1018
        %v1020 = vpop.f32.mrb[0].mxu0
        %1021 = vmatprep.mubr.f32.mxu0 0.0
        %1022 = vmatmul.mubr.f32.gmra.mrb[0].mxu0 %v807
        %v1023 = vpop.f32.mrb[0].mxu0
        %v1024 = vadd.f32 %v700, %v1023
        %v1025 = vpop.f32.mrb[0].mxu0
        %1026 = vmatprep.mubr.f32.mxu0 0.0
        %1027 = vmatmul.mubr.f32.gmra.mrb[0].mxu0 %v810
        %v1028 = vpop.f32.mrb[0].mxu0
        %v1029 = vadd.f32 %v705, %v1028
        %v1030 = vpop.f32.mrb[0].mxu0
        %1031 = vmatprep.mubr.f32.mxu0 0.0
        %1032 = vmatmul.mubr.f32.gmra.mrb[0].mxu0 %v813
        %v1033 = vpop.f32.mrb[0].mxu0
        %v1034 = vadd.f32 %v710, %v1033
        %v1035 = vpop.f32.mrb[0].mxu0
        %1036 = vmatprep.mubr.f32.mxu0 0.0
        %1037 = vmatmul.mubr.f32.gmra.mrb[0].mxu0 %v816
        %v1038 = vpop.f32.mrb[0].mxu0
        %v1039 = vadd.f32 %v715, %v1038
        %v1040 = vpop.f32.mrb[0].mxu0
        %1041 = vmatprep.mubr.f32.mxu0 0.0
        %1042 = vmatmul.mubr.f32.gmra.mrb[0].mxu0 %v819
        %v1043 = vpop.f32.mrb[0].mxu0
        %v1044 = vadd.f32 %v720, %v1043
        %v1045 = vpop.f32.mrb[0].mxu0
        %1046 = vmatprep.mubr.f32.mxu0 0.0
        %1047 = vmatmul.mubr.f32.gmra.mrb[0].mxu0 %v822
        %v1048 = vpop.f32.mrb[0].mxu0
        %v1049 = vadd.f32 %v725, %v1048
        %v1050 = vpop.f32.mrb[0].mxu0
        %1051 = vdwg.mxu0
        %v1052 = vld [vmem:[#allocation2 + $0x2] sm:$0xff]
        %v1053 = vld [vmem:[#allocation2 + $0xa] sm:$0xff]
        %v1054 = vld [vmem:[#allocation2 + $0x12] sm:$0xff]
        %v1055 = vld [vmem:[#allocation2 + $0x1a] sm:$0xff]
        %v1056 = vld [vmem:[#allocation2 + $0x22] sm:$0xff]
        %v1057 = vld [vmem:[#allocation2 + $0x2a] sm:$0xff]
        %v1058 = vld [vmem:[#allocation2 + $0x32] sm:$0xff]
        %v1059 = vld [vmem:[#allocation2 + $0x3a] sm:$0xff]
        %v1060 = vld [vmem:[#allocation2 + $0x42] sm:$0xff]
        %v1061 = vld [vmem:[#allocation2 + $0x4a] sm:$0xff]
        %v1062 = vld [vmem:[#allocation2 + $0x52] sm:$0xff]
        %v1063 = vld [vmem:[#allocation2 + $0x5a] sm:$0xff]
        %v1064 = vld [vmem:[#allocation2 + $0x62] sm:$0xff]
        %v1065 = vld [vmem:[#allocation2 + $0x6a] sm:$0xff]
        %v1066 = vld [vmem:[#allocation2 + $0x72] sm:$0xff]
        %v1067 = vld [vmem:[#allocation2 + $0x7a] sm:$0xff]
        %v1068 = vld [vmem:[#allocation2 + $0x82] sm:$0xff]
        %v1069 = vld [vmem:[#allocation2 + $0x8a] sm:$0xff]
        %v1070 = vld [vmem:[#allocation2 + $0x92] sm:$0xff]
        %v1071 = vld [vmem:[#allocation2 + $0x9a] sm:$0xff]
        %v1072 = vld [vmem:[#allocation2 + $0xa2] sm:$0xff]
        %v1073 = vld [vmem:[#allocation2 + $0xaa] sm:$0xff]
        %v1074 = vld [vmem:[#allocation2 + $0xb2] sm:$0xff]
        %v1075 = vld [vmem:[#allocation2 + $0xba] sm:$0xff]
        %v1076 = vld [vmem:[#allocation2 + $0xc2] sm:$0xff]
        %v1077 = vld [vmem:[#allocation2 + $0xca] sm:$0xff]
        %v1078 = vld [vmem:[#allocation2 + $0xd2] sm:$0xff]
        %v1079 = vld [vmem:[#allocation2 + $0xda] sm:$0xff]
        %v1080 = vld [vmem:[#allocation2 + $0xe2] sm:$0xff]
        %v1081 = vld [vmem:[#allocation2 + $0xea] sm:$0xff]
        %v1082 = vld [vmem:[#allocation2 + $0xf2] sm:$0xff]
        %v1083 = vld [vmem:[#allocation2 + $0xfa] sm:$0xff]
        %s1084 = scalar_lea.vmem %s2, 8
        %v1085 = vld [vmem:[%s1084] sm:$0xf]
        %v1087 = vsel %vm287, %v1052, 0
        %v1090 = vsel %vm287, %v1053, 0
        %v1093 = vsel %vm287, %v1054, 0
        %v1096 = vsel %vm287, %v1055, 0
        %v1099 = vsel %vm287, %v1056, 0
        %v1102 = vsel %vm287, %v1057, 0
        %v1105 = vsel %vm287, %v1058, 0
        %v1108 = vsel %vm287, %v1059, 0
        %v1111 = vsel %vm287, %v1060, 0
        %v1114 = vsel %vm287, %v1061, 0
        %v1117 = vsel %vm287, %v1062, 0
        %v1120 = vsel %vm287, %v1063, 0
        %v1123 = vsel %vm287, %v1064, 0
        %v1126 = vsel %vm287, %v1065, 0
        %v1129 = vsel %vm287, %v1066, 0
        %v1132 = vsel %vm287, %v1067, 0
        %v1135 = vsel %vm287, %v1068, 0
        %v1138 = vsel %vm287, %v1069, 0
        %v1141 = vsel %vm287, %v1070, 0
        %v1144 = vsel %vm287, %v1071, 0
        %v1147 = vsel %vm287, %v1072, 0
        %v1150 = vsel %vm287, %v1073, 0
        %v1153 = vsel %vm287, %v1074, 0
        %v1156 = vsel %vm287, %v1075, 0
        %v1159 = vsel %vm287, %v1076, 0
        %v1162 = vsel %vm287, %v1077, 0
        %v1165 = vsel %vm287, %v1078, 0
        %v1168 = vsel %vm287, %v1079, 0
        %v1171 = vsel %vm287, %v1080, 0
        %v1174 = vsel %vm287, %v1081, 0
        %v1177 = vsel %vm287, %v1082, 0
        %v1180 = vsel %vm287, %v1083, 0
        %v1183 = vsel %vm499, %v1085, 0
        %1185 = vmatprep.subr.mxu0 0.0
        %1186 = vmatpush1.msra.mxu0 %v1183
        %1187 = vmatprep.subr.mxu0 0.0
        %1188 = vmatpush1.msra.mxu0 0.0
        %1189 = vmatprep.subr.mxu0 0.0
        %1190 = vmatpush1.msra.mxu0 0.0
        %1191 = vmatprep.subr.mxu0 0.0
        %1192 = vmatpush1.msra.mxu0 0.0
        %1193 = vmatprep.subr.mxu0 0.0
        %1194 = vmatpush1.msra.mxu0 0.0
        %1195 = vmatprep.subr.mxu0 0.0
        %1196 = vmatpush1.msra.mxu0 0.0
        %1197 = vmatprep.subr.mxu0 0.0
        %1198 = vmatpush1.msra.mxu0 0.0
        %1199 = vmatprep.subr.mxu0 0.0
        %1200 = vmatpush1.msra.mxu0 0.0
        %1201 = vmatprep.subr.mxu0 0.0
        %1202 = vmatpush1.msra.mxu0 0.0
        %1203 = vmatprep.subr.mxu0 0.0
        %1204 = vmatpush1.msra.mxu0 0.0
        %1205 = vmatprep.subr.mxu0 0.0
        %1206 = vmatpush1.msra.mxu0 0.0
        %1207 = vmatprep.subr.mxu0 0.0
        %1208 = vmatpush1.msra.mxu0 0.0
        %1209 = vmatprep.subr.mxu0 0.0
        %1210 = vmatpush1.msra.mxu0 0.0
        %1211 = vmatprep.subr.mxu0 0.0
        %1212 = vmatpush1.msra.mxu0 0.0
        %1213 = vmatprep.subr.mxu0 0.0
        %1214 = vmatpush1.msra.mxu0 0.0
        %1215 = vmatprep.subr.mxu0 0.0
        %1216 = vmatpush1.msra.mxu0 0.0
        %1217 = vmatprep.subr.mxu0 0.0
        %1218 = vmatpush1.msra.mxu0 0.0
        %1219 = vmatprep.subr.mxu0 0.0
        %1220 = vmatpush1.msra.mxu0 0.0
        %1221 = vmatprep.subr.mxu0 0.0
        %1222 = vmatpush1.msra.mxu0 0.0
        %1223 = vmatprep.subr.mxu0 0.0
        %1224 = vmatpush1.msra.mxu0 0.0
        %1225 = vmatprep.subr.mxu0 0.0
        %1226 = vmatpush1.msra.mxu0 0.0
        %1227 = vmatprep.subr.mxu0 0.0
        %1228 = vmatpush1.msra.mxu0 0.0
        %1229 = vmatprep.subr.mxu0 0.0
        %1230 = vmatpush1.msra.mxu0 0.0
        %1231 = vmatprep.subr.mxu0 0.0
        %1232 = vmatpush1.msra.mxu0 0.0
        %1233 = vmatprep.subr.mxu0 0.0
        %1234 = vmatpush1.msra.mxu0 0.0
        %1235 = vmatprep.subr.mxu0 0.0
        %1236 = vmatpush1.msra.mxu0 0.0
        %1237 = vmatprep.subr.mxu0 0.0
        %1238 = vmatpush1.msra.mxu0 0.0
        %1239 = vmatprep.subr.mxu0 0.0
        %1240 = vmatpush1.msra.mxu0 0.0
        %1241 = vmatprep.subr.mxu0 0.0
        %1242 = vmatpush1.msra.mxu0 0.0
        %1243 = vmatprep.subr.mxu0 0.0
        %1244 = vmatpush1.msra.mxu0 0.0
        %1245 = vmatprep.subr.mxu0 0.0
        %1246 = vmatpush1.msra.mxu0 0.0
        %1247 = vmatprep.subr.mxu0 0.0
        %1248 = vmatpush1.msra.mxu0 0.0
        %1249 = vmatprep.mubr.f32.mxu0 0.0
        %1250 = vmatmul.mubr.f32.gmra.mrb[0].mxu0 %v1087
        %v1251 = vpop.f32.mrb[0].mxu0
        %v1252 = vadd.f32 0.0, %v1251
        %v1253 = vpop.f32.mrb[0].mxu0
        %1254 = vmatprep.mubr.f32.mxu0 0.0
        %1255 = vmatmul.mubr.f32.gmra.mrb[0].mxu0 %v1090
        %v1256 = vpop.f32.mrb[0].mxu0
        %v1257 = vadd.f32 0.0, %v1256
        %v1258 = vpop.f32.mrb[0].mxu0
        %1259 = vmatprep.mubr.f32.mxu0 0.0
        %1260 = vmatmul.mubr.f32.gmra.mrb[0].mxu0 %v1093
        %v1261 = vpop.f32.mrb[0].mxu0
        %v1262 = vadd.f32 0.0, %v1261
        %v1263 = vpop.f32.mrb[0].mxu0
        %1264 = vmatprep.mubr.f32.mxu0 0.0
        %1265 = vmatmul.mubr.f32.gmra.mrb[0].mxu0 %v1096
        %v1266 = vpop.f32.mrb[0].mxu0
        %v1267 = vadd.f32 0.0, %v1266
        %v1268 = vpop.f32.mrb[0].mxu0
        %1269 = vmatprep.mubr.f32.mxu0 0.0
        %1270 = vmatmul.mubr.f32.gmra.mrb[0].mxu0 %v1099
        %v1271 = vpop.f32.mrb[0].mxu0
        %v1272 = vadd.f32 0.0, %v1271
        %v1273 = vpop.f32.mrb[0].mxu0
        %1274 = vmatprep.mubr.f32.mxu0 0.0
        %1275 = vmatmul.mubr.f32.gmra.mrb[0].mxu0 %v1102
        %v1276 = vpop.f32.mrb[0].mxu0
        %v1277 = vadd.f32 0.0, %v1276
        %v1278 = vpop.f32.mrb[0].mxu0
        %1279 = vmatprep.mubr.f32.mxu0 0.0
        %1280 = vmatmul.mubr.f32.gmra.mrb[0].mxu0 %v1105
        %v1281 = vpop.f32.mrb[0].mxu0
        %v1282 = vadd.f32 0.0, %v1281
        %v1283 = vpop.f32.mrb[0].mxu0
        %1284 = vmatprep.mubr.f32.mxu0 0.0
        %1285 = vmatmul.mubr.f32.gmra.mrb[0].mxu0 %v1108
        %v1286 = vpop.f32.mrb[0].mxu0
        %v1287 = vadd.f32 0.0, %v1286
        %v1288 = vpop.f32.mrb[0].mxu0
        %1289 = vmatprep.mubr.f32.mxu0 0.0
        %1290 = vmatmul.mubr.f32.gmra.mrb[0].mxu0 %v1111
        %v1291 = vpop.f32.mrb[0].mxu0
        %v1292 = vadd.f32 0.0, %v1291
        %v1293 = vpop.f32.mrb[0].mxu0
        %1294 = vmatprep.mubr.f32.mxu0 0.0
        %1295 = vmatmul.mubr.f32.gmra.mrb[0].mxu0 %v1114
        %v1296 = vpop.f32.mrb[0].mxu0
        %v1297 = vadd.f32 0.0, %v1296
        %v1298 = vpop.f32.mrb[0].mxu0
        %1299 = vmatprep.mubr.f32.mxu0 0.0
        %1300 = vmatmul.mubr.f32.gmra.mrb[0].mxu0 %v1117
        %v1301 = vpop.f32.mrb[0].mxu0
        %v1302 = vadd.f32 0.0, %v1301
        %v1303 = vpop.f32.mrb[0].mxu0
        %1304 = vmatprep.mubr.f32.mxu0 0.0
        %1305 = vmatmul.mubr.f32.gmra.mrb[0].mxu0 %v1120
        %v1306 = vpop.f32.mrb[0].mxu0
        %v1307 = vadd.f32 0.0, %v1306
        %v1308 = vpop.f32.mrb[0].mxu0
        %1309 = vmatprep.mubr.f32.mxu0 0.0
        %1310 = vmatmul.mubr.f32.gmra.mrb[0].mxu0 %v1123
        %v1311 = vpop.f32.mrb[0].mxu0
        %v1312 = vadd.f32 0.0, %v1311
        %v1313 = vpop.f32.mrb[0].mxu0
        %1314 = vmatprep.mubr.f32.mxu0 0.0
        %1315 = vmatmul.mubr.f32.gmra.mrb[0].mxu0 %v1126
        %v1316 = vpop.f32.mrb[0].mxu0
        %v1317 = vadd.f32 0.0, %v1316
        %v1318 = vpop.f32.mrb[0].mxu0
        %1319 = vmatprep.mubr.f32.mxu0 0.0
        %1320 = vmatmul.mubr.f32.gmra.mrb[0].mxu0 %v1129
        %v1321 = vpop.f32.mrb[0].mxu0
        %v1322 = vadd.f32 0.0, %v1321
        %v1323 = vpop.f32.mrb[0].mxu0
        %1324 = vmatprep.mubr.f32.mxu0 0.0
        %1325 = vmatmul.mubr.f32.gmra.mrb[0].mxu0 %v1132
        %v1326 = vpop.f32.mrb[0].mxu0
        %v1327 = vadd.f32 0.0, %v1326
        %v1328 = vpop.f32.mrb[0].mxu0
        %1329 = vmatprep.mubr.f32.mxu0 0.0
        %1330 = vmatmul.mubr.f32.gmra.mrb[0].mxu0 %v1135
        %v1331 = vpop.f32.mrb[0].mxu0
        %v1332 = vadd.f32 0.0, %v1331
        %v1333 = vpop.f32.mrb[0].mxu0
        %1334 = vmatprep.mubr.f32.mxu0 0.0
        %1335 = vmatmul.mubr.f32.gmra.mrb[0].mxu0 %v1138
        %v1336 = vpop.f32.mrb[0].mxu0
        %v1337 = vadd.f32 0.0, %v1336
        %v1338 = vpop.f32.mrb[0].mxu0
        %1339 = vmatprep.mubr.f32.mxu0 0.0
        %1340 = vmatmul.mubr.f32.gmra.mrb[0].mxu0 %v1141
        %v1341 = vpop.f32.mrb[0].mxu0
        %v1342 = vadd.f32 0.0, %v1341
        %v1343 = vpop.f32.mrb[0].mxu0
        %1344 = vmatprep.mubr.f32.mxu0 0.0
        %1345 = vmatmul.mubr.f32.gmra.mrb[0].mxu0 %v1144
        %v1346 = vpop.f32.mrb[0].mxu0
        %v1347 = vadd.f32 0.0, %v1346
        %v1348 = vpop.f32.mrb[0].mxu0
        %1349 = vmatprep.mubr.f32.mxu0 0.0
        %1350 = vmatmul.mubr.f32.gmra.mrb[0].mxu0 %v1147
        %v1351 = vpop.f32.mrb[0].mxu0
        %v1352 = vadd.f32 0.0, %v1351
        %v1353 = vpop.f32.mrb[0].mxu0
        %1354 = vmatprep.mubr.f32.mxu0 0.0
        %1355 = vmatmul.mubr.f32.gmra.mrb[0].mxu0 %v1150
        %v1356 = vpop.f32.mrb[0].mxu0
        %v1357 = vadd.f32 0.0, %v1356
        %v1358 = vpop.f32.mrb[0].mxu0
        %1359 = vmatprep.mubr.f32.mxu0 0.0
        %1360 = vmatmul.mubr.f32.gmra.mrb[0].mxu0 %v1153
        %v1361 = vpop.f32.mrb[0].mxu0
        %v1362 = vadd.f32 0.0, %v1361
        %v1363 = vpop.f32.mrb[0].mxu0
        %1364 = vmatprep.mubr.f32.mxu0 0.0
        %1365 = vmatmul.mubr.f32.gmra.mrb[0].mxu0 %v1156
        %v1366 = vpop.f32.mrb[0].mxu0
        %v1367 = vadd.f32 0.0, %v1366
        %v1368 = vpop.f32.mrb[0].mxu0
        %1369 = vmatprep.mubr.f32.mxu0 0.0
        %1370 = vmatmul.mubr.f32.gmra.mrb[0].mxu0 %v1159
        %v1371 = vpop.f32.mrb[0].mxu0
        %v1372 = vadd.f32 0.0, %v1371
        %v1373 = vpop.f32.mrb[0].mxu0
        %1374 = vmatprep.mubr.f32.mxu0 0.0
        %1375 = vmatmul.mubr.f32.gmra.mrb[0].mxu0 %v1162
        %v1376 = vpop.f32.mrb[0].mxu0
        %v1377 = vadd.f32 0.0, %v1376
        %v1378 = vpop.f32.mrb[0].mxu0
        %1379 = vmatprep.mubr.f32.mxu0 0.0
        %1380 = vmatmul.mubr.f32.gmra.mrb[0].mxu0 %v1165
        %v1381 = vpop.f32.mrb[0].mxu0
        %v1382 = vadd.f32 0.0, %v1381
        %v1383 = vpop.f32.mrb[0].mxu0
        %1384 = vmatprep.mubr.f32.mxu0 0.0
        %1385 = vmatmul.mubr.f32.gmra.mrb[0].mxu0 %v1168
        %v1386 = vpop.f32.mrb[0].mxu0
        %v1387 = vadd.f32 0.0, %v1386
        %v1388 = vpop.f32.mrb[0].mxu0
        %1389 = vmatprep.mubr.f32.mxu0 0.0
        %1390 = vmatmul.mubr.f32.gmra.mrb[0].mxu0 %v1171
        %v1391 = vpop.f32.mrb[0].mxu0
        %v1392 = vadd.f32 0.0, %v1391
        %v1393 = vpop.f32.mrb[0].mxu0
        %1394 = vmatprep.mubr.f32.mxu0 0.0
        %1395 = vmatmul.mubr.f32.gmra.mrb[0].mxu0 %v1174
        %v1396 = vpop.f32.mrb[0].mxu0
        %v1397 = vadd.f32 0.0, %v1396
        %v1398 = vpop.f32.mrb[0].mxu0
        %1399 = vmatprep.mubr.f32.mxu0 0.0
        %1400 = vmatmul.mubr.f32.gmra.mrb[0].mxu0 %v1177
        %v1401 = vpop.f32.mrb[0].mxu0
        %v1402 = vadd.f32 0.0, %v1401
        %v1403 = vpop.f32.mrb[0].mxu0
        %1404 = vmatprep.mubr.f32.mxu0 0.0
        %1405 = vmatmul.mubr.f32.gmra.mrb[0].mxu0 %v1180
        %v1406 = vpop.f32.mrb[0].mxu0
        %v1407 = vadd.f32 0.0, %v1406
        %v1408 = vpop.f32.mrb[0].mxu0
        %1409 = vdwg.mxu0
        %v1410 = vadd.f32 %v894, %v1252
        %v1411 = vadd.f32 %v899, %v1257
        %v1412 = vadd.f32 %v904, %v1262
        %v1413 = vadd.f32 %v909, %v1267
        %v1414 = vadd.f32 %v914, %v1272
        %v1415 = vadd.f32 %v919, %v1277
        %v1416 = vadd.f32 %v924, %v1282
        %v1417 = vadd.f32 %v929, %v1287
        %v1418 = vadd.f32 %v934, %v1292
        %v1419 = vadd.f32 %v939, %v1297
        %v1420 = vadd.f32 %v944, %v1302
        %v1421 = vadd.f32 %v949, %v1307
        %v1422 = vadd.f32 %v954, %v1312
        %v1423 = vadd.f32 %v959, %v1317
        %v1424 = vadd.f32 %v964, %v1322
        %v1425 = vadd.f32 %v969, %v1327
        %v1426 = vadd.f32 %v974, %v1332
        %v1427 = vadd.f32 %v979, %v1337
        %v1428 = vadd.f32 %v984, %v1342
        %v1429 = vadd.f32 %v989, %v1347
        %v1430 = vadd.f32 %v994, %v1352
        %v1431 = vadd.f32 %v999, %v1357
        %v1432 = vadd.f32 %v1004, %v1362
        %v1433 = vadd.f32 %v1009, %v1367
        %v1434 = vadd.f32 %v1014, %v1372
        %v1435 = vadd.f32 %v1019, %v1377
        %v1436 = vadd.f32 %v1024, %v1382
        %v1437 = vadd.f32 %v1029, %v1387
        %v1438 = vadd.f32 %v1034, %v1392
        %v1439 = vadd.f32 %v1039, %v1397
        %v1440 = vadd.f32 %v1044, %v1402
        %v1441 = vadd.f32 %v1049, %v1407
        %v1442 = vld [vmem:[#allocation2 + $0x12] sm:$0xff]
        %v1443 = vld [vmem:[#allocation2 + $0x1a] sm:$0xff]
        %v1444 = vld [vmem:[#allocation2 + $0x22] sm:$0xff]
        %v1445 = vld [vmem:[#allocation2 + $0x2a] sm:$0xff]
        %v1446 = vld [vmem:[#allocation2 + $0x32] sm:$0xff]
        %v1447 = vld [vmem:[#allocation2 + $0x3a] sm:$0xff]
        %v1448 = vld [vmem:[#allocation2 + $0x42] sm:$0xff]
        %v1449 = vld [vmem:[#allocation2 + $0x4a] sm:$0xff]
        %v1450 = vld [vmem:[#allocation2 + $0x52] sm:$0xff]
        %v1451 = vld [vmem:[#allocation2 + $0x5a] sm:$0xff]
        %v1452 = vld [vmem:[#allocation2 + $0x62] sm:$0xff]
        %v1453 = vld [vmem:[#allocation2 + $0x6a] sm:$0xff]
        %v1454 = vld [vmem:[#allocation2 + $0x72] sm:$0xff]
        %v1455 = vld [vmem:[#allocation2 + $0x7a] sm:$0xff]
        %v1456 = vld [vmem:[#allocation2 + $0x82] sm:$0xff]
        %v1457 = vld [vmem:[#allocation2 + $0x8a] sm:$0xff]
        %v1458 = vld [vmem:[#allocation2 + $0x92] sm:$0xff]
        %v1459 = vld [vmem:[#allocation2 + $0x9a] sm:$0xff]
        %v1460 = vld [vmem:[#allocation2 + $0xa2] sm:$0xff]
        %v1461 = vld [vmem:[#allocation2 + $0xaa] sm:$0xff]
        %v1462 = vld [vmem:[#allocation2 + $0xb2] sm:$0xff]
        %v1463 = vld [vmem:[#allocation2 + $0xba] sm:$0xff]
        %v1464 = vld [vmem:[#allocation2 + $0xc2] sm:$0xff]
        %v1465 = vld [vmem:[#allocation2 + $0xca] sm:$0xff]
        %v1466 = vld [vmem:[#allocation2 + $0xd2] sm:$0xff]
        %v1467 = vld [vmem:[#allocation2 + $0xda] sm:$0xff]
        %v1468 = vld [vmem:[#allocation2 + $0xe2] sm:$0xff]
        %v1469 = vld [vmem:[#allocation2 + $0xea] sm:$0xff]
        %v1470 = vld [vmem:[#allocation2 + $0xf2] sm:$0xff]
        %v1471 = vld [vmem:[#allocation2 + $0xfa] sm:$0xff]
        %v1472 = vld [vmem:[#allocation2 + $0x102] sm:$0xff]
        %v1473 = vld [vmem:[#allocation2 + $0x10a] sm:$0xff]
        %s1474 = scalar_lea.vmem %s2, 12
        %v1475 = vld [vmem:[%s1474] sm:$0xf]
        %v1477 = vsel %vm287, %v1442, 0
        %v1480 = vsel %vm287, %v1443, 0
        %v1483 = vsel %vm287, %v1444, 0
        %v1486 = vsel %vm287, %v1445, 0
        %v1489 = vsel %vm287, %v1446, 0
        %v1492 = vsel %vm287, %v1447, 0
        %v1495 = vsel %vm287, %v1448, 0
        %v1498 = vsel %vm287, %v1449, 0
        %v1501 = vsel %vm287, %v1450, 0
        %v1504 = vsel %vm287, %v1451, 0
        %v1507 = vsel %vm287, %v1452, 0
        %v1510 = vsel %vm287, %v1453, 0
        %v1513 = vsel %vm287, %v1454, 0
        %v1516 = vsel %vm287, %v1455, 0
        %v1519 = vsel %vm287, %v1456, 0
        %v1522 = vsel %vm287, %v1457, 0
        %v1525 = vsel %vm287, %v1458, 0
        %v1528 = vsel %vm287, %v1459, 0
        %v1531 = vsel %vm287, %v1460, 0
        %v1534 = vsel %vm287, %v1461, 0
        %v1537 = vsel %vm287, %v1462, 0
        %v1540 = vsel %vm287, %v1463, 0
        %v1543 = vsel %vm287, %v1464, 0
        %v1546 = vsel %vm287, %v1465, 0
        %v1549 = vsel %vm287, %v1466, 0
        %v1552 = vsel %vm287, %v1467, 0
        %v1555 = vsel %vm287, %v1468, 0
        %v1558 = vsel %vm287, %v1469, 0
        %v1561 = vsel %vm287, %v1470, 0
        %v1564 = vsel %vm287, %v1471, 0
        %v1567 = vsel %vm287, %v1472, 0
        %v1570 = vsel %vm287, %v1473, 0
        %v1573 = vsel %vm499, %v1475, 0
        %1575 = vmatprep.subr.mxu0 0.0
        %1576 = vmatpush1.msra.mxu0 %v1573
        %1577 = vmatprep.subr.mxu0 0.0
        %1578 = vmatpush1.msra.mxu0 0.0
        %1579 = vmatprep.subr.mxu0 0.0
        %1580 = vmatpush1.msra.mxu0 0.0
        %1581 = vmatprep.subr.mxu0 0.0
        %1582 = vmatpush1.msra.mxu0 0.0
        %1583 = vmatprep.subr.mxu0 0.0
        %1584 = vmatpush1.msra.mxu0 0.0
        %1585 = vmatprep.subr.mxu0 0.0
        %1586 = vmatpush1.msra.mxu0 0.0
        %1587 = vmatprep.subr.mxu0 0.0
        %1588 = vmatpush1.msra.mxu0 0.0
        %1589 = vmatprep.subr.mxu0 0.0
        %1590 = vmatpush1.msra.mxu0 0.0
        %1591 = vmatprep.subr.mxu0 0.0
        %1592 = vmatpush1.msra.mxu0 0.0
        %1593 = vmatprep.subr.mxu0 0.0
        %1594 = vmatpush1.msra.mxu0 0.0
        %1595 = vmatprep.subr.mxu0 0.0
        %1596 = vmatpush1.msra.mxu0 0.0
        %1597 = vmatprep.subr.mxu0 0.0
        %1598 = vmatpush1.msra.mxu0 0.0
        %1599 = vmatprep.subr.mxu0 0.0
        %1600 = vmatpush1.msra.mxu0 0.0
        %1601 = vmatprep.subr.mxu0 0.0
        %1602 = vmatpush1.msra.mxu0 0.0
        %1603 = vmatprep.subr.mxu0 0.0
        %1604 = vmatpush1.msra.mxu0 0.0
        %1605 = vmatprep.subr.mxu0 0.0
        %1606 = vmatpush1.msra.mxu0 0.0
        %1607 = vmatprep.subr.mxu0 0.0
        %1608 = vmatpush1.msra.mxu0 0.0
        %1609 = vmatprep.subr.mxu0 0.0
        %1610 = vmatpush1.msra.mxu0 0.0
        %1611 = vmatprep.subr.mxu0 0.0
        %1612 = vmatpush1.msra.mxu0 0.0
        %1613 = vmatprep.subr.mxu0 0.0
        %1614 = vmatpush1.msra.mxu0 0.0
        %1615 = vmatprep.subr.mxu0 0.0
        %1616 = vmatpush1.msra.mxu0 0.0
        %1617 = vmatprep.subr.mxu0 0.0
        %1618 = vmatpush1.msra.mxu0 0.0
        %1619 = vmatprep.subr.mxu0 0.0
        %1620 = vmatpush1.msra.mxu0 0.0
        %1621 = vmatprep.subr.mxu0 0.0
        %1622 = vmatpush1.msra.mxu0 0.0
        %1623 = vmatprep.subr.mxu0 0.0
        %1624 = vmatpush1.msra.mxu0 0.0
        %1625 = vmatprep.subr.mxu0 0.0
        %1626 = vmatpush1.msra.mxu0 0.0
        %1627 = vmatprep.subr.mxu0 0.0
        %1628 = vmatpush1.msra.mxu0 0.0
        %1629 = vmatprep.subr.mxu0 0.0
        %1630 = vmatpush1.msra.mxu0 0.0
        %1631 = vmatprep.subr.mxu0 0.0
        %1632 = vmatpush1.msra.mxu0 0.0
        %1633 = vmatprep.subr.mxu0 0.0
        %1634 = vmatpush1.msra.mxu0 0.0
        %1635 = vmatprep.subr.mxu0 0.0
        %1636 = vmatpush1.msra.mxu0 0.0
        %1637 = vmatprep.subr.mxu0 0.0
        %1638 = vmatpush1.msra.mxu0 0.0
        %1639 = vmatprep.mubr.f32.mxu0 0.0
        %1640 = vmatmul.mubr.f32.gmra.mrb[0].mxu0 %v1477
        %v1641 = vpop.f32.mrb[0].mxu0
        %v1642 = vadd.f32 0.0, %v1641
        %v1643 = vpop.f32.mrb[0].mxu0
        %1644 = vmatprep.mubr.f32.mxu0 0.0
        %1645 = vmatmul.mubr.f32.gmra.mrb[0].mxu0 %v1480
        %v1646 = vpop.f32.mrb[0].mxu0
        %v1647 = vadd.f32 0.0, %v1646
        %v1648 = vpop.f32.mrb[0].mxu0
        %1649 = vmatprep.mubr.f32.mxu0 0.0
        %1650 = vmatmul.mubr.f32.gmra.mrb[0].mxu0 %v1483
        %v1651 = vpop.f32.mrb[0].mxu0
        %v1652 = vadd.f32 0.0, %v1651
        %v1653 = vpop.f32.mrb[0].mxu0
        %1654 = vmatprep.mubr.f32.mxu0 0.0
        %1655 = vmatmul.mubr.f32.gmra.mrb[0].mxu0 %v1486
        %v1656 = vpop.f32.mrb[0].mxu0
        %v1657 = vadd.f32 0.0, %v1656
        %v1658 = vpop.f32.mrb[0].mxu0
        %1659 = vmatprep.mubr.f32.mxu0 0.0
        %1660 = vmatmul.mubr.f32.gmra.mrb[0].mxu0 %v1489
        %v1661 = vpop.f32.mrb[0].mxu0
        %v1662 = vadd.f32 0.0, %v1661
        %v1663 = vpop.f32.mrb[0].mxu0
        %1664 = vmatprep.mubr.f32.mxu0 0.0
        %1665 = vmatmul.mubr.f32.gmra.mrb[0].mxu0 %v1492
        %v1666 = vpop.f32.mrb[0].mxu0
        %v1667 = vadd.f32 0.0, %v1666
        %v1668 = vpop.f32.mrb[0].mxu0
        %1669 = vmatprep.mubr.f32.mxu0 0.0
        %1670 = vmatmul.mubr.f32.gmra.mrb[0].mxu0 %v1495
        %v1671 = vpop.f32.mrb[0].mxu0
        %v1672 = vadd.f32 0.0, %v1671
        %v1673 = vpop.f32.mrb[0].mxu0
        %1674 = vmatprep.mubr.f32.mxu0 0.0
        %1675 = vmatmul.mubr.f32.gmra.mrb[0].mxu0 %v1498
        %v1676 = vpop.f32.mrb[0].mxu0
        %v1677 = vadd.f32 0.0, %v1676
        %v1678 = vpop.f32.mrb[0].mxu0
        %1679 = vmatprep.mubr.f32.mxu0 0.0
        %1680 = vmatmul.mubr.f32.gmra.mrb[0].mxu0 %v1501
        %v1681 = vpop.f32.mrb[0].mxu0
        %v1682 = vadd.f32 0.0, %v1681
        %v1683 = vpop.f32.mrb[0].mxu0
        %1684 = vmatprep.mubr.f32.mxu0 0.0
        %1685 = vmatmul.mubr.f32.gmra.mrb[0].mxu0 %v1504
        %v1686 = vpop.f32.mrb[0].mxu0
        %v1687 = vadd.f32 0.0, %v1686
        %v1688 = vpop.f32.mrb[0].mxu0
        %1689 = vmatprep.mubr.f32.mxu0 0.0
        %1690 = vmatmul.mubr.f32.gmra.mrb[0].mxu0 %v1507
        %v1691 = vpop.f32.mrb[0].mxu0
        %v1692 = vadd.f32 0.0, %v1691
        %v1693 = vpop.f32.mrb[0].mxu0
        %1694 = vmatprep.mubr.f32.mxu0 0.0
        %1695 = vmatmul.mubr.f32.gmra.mrb[0].mxu0 %v1510
        %v1696 = vpop.f32.mrb[0].mxu0
        %v1697 = vadd.f32 0.0, %v1696
        %v1698 = vpop.f32.mrb[0].mxu0
        %1699 = vmatprep.mubr.f32.mxu0 0.0
        %1700 = vmatmul.mubr.f32.gmra.mrb[0].mxu0 %v1513
        %v1701 = vpop.f32.mrb[0].mxu0
        %v1702 = vadd.f32 0.0, %v1701
        %v1703 = vpop.f32.mrb[0].mxu0
        %1704 = vmatprep.mubr.f32.mxu0 0.0
        %1705 = vmatmul.mubr.f32.gmra.mrb[0].mxu0 %v1516
        %v1706 = vpop.f32.mrb[0].mxu0
        %v1707 = vadd.f32 0.0, %v1706
        %v1708 = vpop.f32.mrb[0].mxu0
        %1709 = vmatprep.mubr.f32.mxu0 0.0
        %1710 = vmatmul.mubr.f32.gmra.mrb[0].mxu0 %v1519
        %v1711 = vpop.f32.mrb[0].mxu0
        %v1712 = vadd.f32 0.0, %v1711
        %v1713 = vpop.f32.mrb[0].mxu0
        %1714 = vmatprep.mubr.f32.mxu0 0.0
        %1715 = vmatmul.mubr.f32.gmra.mrb[0].mxu0 %v1522
        %v1716 = vpop.f32.mrb[0].mxu0
        %v1717 = vadd.f32 0.0, %v1716
        %v1718 = vpop.f32.mrb[0].mxu0
        %1719 = vmatprep.mubr.f32.mxu0 0.0
        %1720 = vmatmul.mubr.f32.gmra.mrb[0].mxu0 %v1525
        %v1721 = vpop.f32.mrb[0].mxu0
        %v1722 = vadd.f32 0.0, %v1721
        %v1723 = vpop.f32.mrb[0].mxu0
        %1724 = vmatprep.mubr.f32.mxu0 0.0
        %1725 = vmatmul.mubr.f32.gmra.mrb[0].mxu0 %v1528
        %v1726 = vpop.f32.mrb[0].mxu0
        %v1727 = vadd.f32 0.0, %v1726
        %v1728 = vpop.f32.mrb[0].mxu0
        %1729 = vmatprep.mubr.f32.mxu0 0.0
        %1730 = vmatmul.mubr.f32.gmra.mrb[0].mxu0 %v1531
        %v1731 = vpop.f32.mrb[0].mxu0
        %v1732 = vadd.f32 0.0, %v1731
        %v1733 = vpop.f32.mrb[0].mxu0
        %1734 = vmatprep.mubr.f32.mxu0 0.0
        %1735 = vmatmul.mubr.f32.gmra.mrb[0].mxu0 %v1534
        %v1736 = vpop.f32.mrb[0].mxu0
        %v1737 = vadd.f32 0.0, %v1736
        %v1738 = vpop.f32.mrb[0].mxu0
        %1739 = vmatprep.mubr.f32.mxu0 0.0
        %1740 = vmatmul.mubr.f32.gmra.mrb[0].mxu0 %v1537
        %v1741 = vpop.f32.mrb[0].mxu0
        %v1742 = vadd.f32 0.0, %v1741
        %v1743 = vpop.f32.mrb[0].mxu0
        %1744 = vmatprep.mubr.f32.mxu0 0.0
        %1745 = vmatmul.mubr.f32.gmra.mrb[0].mxu0 %v1540
        %v1746 = vpop.f32.mrb[0].mxu0
        %v1747 = vadd.f32 0.0, %v1746
        %v1748 = vpop.f32.mrb[0].mxu0
        %1749 = vmatprep.mubr.f32.mxu0 0.0
        %1750 = vmatmul.mubr.f32.gmra.mrb[0].mxu0 %v1543
        %v1751 = vpop.f32.mrb[0].mxu0
        %v1752 = vadd.f32 0.0, %v1751
        %v1753 = vpop.f32.mrb[0].mxu0
        %1754 = vmatprep.mubr.f32.mxu0 0.0
        %1755 = vmatmul.mubr.f32.gmra.mrb[0].mxu0 %v1546
        %v1756 = vpop.f32.mrb[0].mxu0
        %v1757 = vadd.f32 0.0, %v1756
        %v1758 = vpop.f32.mrb[0].mxu0
        %1759 = vmatprep.mubr.f32.mxu0 0.0
        %1760 = vmatmul.mubr.f32.gmra.mrb[0].mxu0 %v1549
        %v1761 = vpop.f32.mrb[0].mxu0
        %v1762 = vadd.f32 0.0, %v1761
        %v1763 = vpop.f32.mrb[0].mxu0
        %1764 = vmatprep.mubr.f32.mxu0 0.0
        %1765 = vmatmul.mubr.f32.gmra.mrb[0].mxu0 %v1552
        %v1766 = vpop.f32.mrb[0].mxu0
        %v1767 = vadd.f32 0.0, %v1766
        %v1768 = vpop.f32.mrb[0].mxu0
        %1769 = vmatprep.mubr.f32.mxu0 0.0
        %1770 = vmatmul.mubr.f32.gmra.mrb[0].mxu0 %v1555
        %v1771 = vpop.f32.mrb[0].mxu0
        %v1772 = vadd.f32 0.0, %v1771
        %v1773 = vpop.f32.mrb[0].mxu0
        %1774 = vmatprep.mubr.f32.mxu0 0.0
        %1775 = vmatmul.mubr.f32.gmra.mrb[0].mxu0 %v1558
        %v1776 = vpop.f32.mrb[0].mxu0
        %v1777 = vadd.f32 0.0, %v1776
        %v1778 = vpop.f32.mrb[0].mxu0
        %1779 = vmatprep.mubr.f32.mxu0 0.0
        %1780 = vmatmul.mubr.f32.gmra.mrb[0].mxu0 %v1561
        %v1781 = vpop.f32.mrb[0].mxu0
        %v1782 = vadd.f32 0.0, %v1781
        %v1783 = vpop.f32.mrb[0].mxu0
        %1784 = vmatprep.mubr.f32.mxu0 0.0
        %1785 = vmatmul.mubr.f32.gmra.mrb[0].mxu0 %v1564
        %v1786 = vpop.f32.mrb[0].mxu0
        %v1787 = vadd.f32 0.0, %v1786
        %v1788 = vpop.f32.mrb[0].mxu0
        %1789 = vmatprep.mubr.f32.mxu0 0.0
        %1790 = vmatmul.mubr.f32.gmra.mrb[0].mxu0 %v1567
        %v1791 = vpop.f32.mrb[0].mxu0
        %v1792 = vadd.f32 0.0, %v1791
        %v1793 = vpop.f32.mrb[0].mxu0
        %1794 = vmatprep.mubr.f32.mxu0 0.0
        %1795 = vmatmul.mubr.f32.gmra.mrb[0].mxu0 %v1570
        %v1796 = vpop.f32.mrb[0].mxu0
        %v1797 = vadd.f32 0.0, %v1796
        %v1798 = vpop.f32.mrb[0].mxu0
        %1799 = vdwg.mxu0
        %v1800 = vadd.f32 %v1410, %v1642
        %v1801 = vadd.f32 %v1411, %v1647
        %v1802 = vadd.f32 %v1412, %v1652
        %v1803 = vadd.f32 %v1413, %v1657
        %v1804 = vadd.f32 %v1414, %v1662
        %v1805 = vadd.f32 %v1415, %v1667
        %v1806 = vadd.f32 %v1416, %v1672
        %v1807 = vadd.f32 %v1417, %v1677
        %v1808 = vadd.f32 %v1418, %v1682
        %v1809 = vadd.f32 %v1419, %v1687
        %v1810 = vadd.f32 %v1420, %v1692
        %v1811 = vadd.f32 %v1421, %v1697
        %v1812 = vadd.f32 %v1422, %v1702
        %v1813 = vadd.f32 %v1423, %v1707
        %v1814 = vadd.f32 %v1424, %v1712
        %v1815 = vadd.f32 %v1425, %v1717
        %v1816 = vadd.f32 %v1426, %v1722
        %v1817 = vadd.f32 %v1427, %v1727
        %v1818 = vadd.f32 %v1428, %v1732
        %v1819 = vadd.f32 %v1429, %v1737
        %v1820 = vadd.f32 %v1430, %v1742
        %v1821 = vadd.f32 %v1431, %v1747
        %v1822 = vadd.f32 %v1432, %v1752
        %v1823 = vadd.f32 %v1433, %v1757
        %v1824 = vadd.f32 %v1434, %v1762
        %v1825 = vadd.f32 %v1435, %v1767
        %v1826 = vadd.f32 %v1436, %v1772
        %v1827 = vadd.f32 %v1437, %v1777
        %v1828 = vadd.f32 %v1438, %v1782
        %v1829 = vadd.f32 %v1439, %v1787
        %v1830 = vadd.f32 %v1440, %v1792
        %v1831 = vadd.f32 %v1441, %v1797
        %v1832 = vld [vmem:[#allocation2 + $0x13] sm:$0xff]
        %v1833 = vld [vmem:[#allocation2 + $0x1b] sm:$0xff]
        %v1834 = vld [vmem:[#allocation2 + $0x23] sm:$0xff]
        %v1835 = vld [vmem:[#allocation2 + $0x2b] sm:$0xff]
        %v1836 = vld [vmem:[#allocation2 + $0x33] sm:$0xff]
        %v1837 = vld [vmem:[#allocation2 + $0x3b] sm:$0xff]
        %v1838 = vld [vmem:[#allocation2 + $0x43] sm:$0xff]
        %v1839 = vld [vmem:[#allocation2 + $0x4b] sm:$0xff]
        %v1840 = vld [vmem:[#allocation2 + $0x53] sm:$0xff]
        %v1841 = vld [vmem:[#allocation2 + $0x5b] sm:$0xff]
        %v1842 = vld [vmem:[#allocation2 + $0x63] sm:$0xff]
        %v1843 = vld [vmem:[#allocation2 + $0x6b] sm:$0xff]
        %v1844 = vld [vmem:[#allocation2 + $0x73] sm:$0xff]
        %v1845 = vld [vmem:[#allocation2 + $0x7b] sm:$0xff]
        %v1846 = vld [vmem:[#allocation2 + $0x83] sm:$0xff]
        %v1847 = vld [vmem:[#allocation2 + $0x8b] sm:$0xff]
        %v1848 = vld [vmem:[#allocation2 + $0x93] sm:$0xff]
        %v1849 = vld [vmem:[#allocation2 + $0x9b] sm:$0xff]
        %v1850 = vld [vmem:[#allocation2 + $0xa3] sm:$0xff]
        %v1851 = vld [vmem:[#allocation2 + $0xab] sm:$0xff]
        %v1852 = vld [vmem:[#allocation2 + $0xb3] sm:$0xff]
        %v1853 = vld [vmem:[#allocation2 + $0xbb] sm:$0xff]
        %v1854 = vld [vmem:[#allocation2 + $0xc3] sm:$0xff]
        %v1855 = vld [vmem:[#allocation2 + $0xcb] sm:$0xff]
        %v1856 = vld [vmem:[#allocation2 + $0xd3] sm:$0xff]
        %v1857 = vld [vmem:[#allocation2 + $0xdb] sm:$0xff]
        %v1858 = vld [vmem:[#allocation2 + $0xe3] sm:$0xff]
        %v1859 = vld [vmem:[#allocation2 + $0xeb] sm:$0xff]
        %v1860 = vld [vmem:[#allocation2 + $0xf3] sm:$0xff]
        %v1861 = vld [vmem:[#allocation2 + $0xfb] sm:$0xff]
        %v1862 = vld [vmem:[#allocation2 + $0x103] sm:$0xff]
        %v1863 = vld [vmem:[#allocation2 + $0x10b] sm:$0xff]
        %s1864 = scalar_lea.vmem %s2, 16
        %v1865 = vld [vmem:[%s1864] sm:$0xf]
        %v1867 = vsel %vm287, %v1832, 0
        %v1870 = vsel %vm287, %v1833, 0
        %v1873 = vsel %vm287, %v1834, 0
        %v1876 = vsel %vm287, %v1835, 0
        %v1879 = vsel %vm287, %v1836, 0
        %v1882 = vsel %vm287, %v1837, 0
        %v1885 = vsel %vm287, %v1838, 0
        %v1888 = vsel %vm287, %v1839, 0
        %v1891 = vsel %vm287, %v1840, 0
        %v1894 = vsel %vm287, %v1841, 0
        %v1897 = vsel %vm287, %v1842, 0
        %v1900 = vsel %vm287, %v1843, 0
        %v1903 = vsel %vm287, %v1844, 0
        %v1906 = vsel %vm287, %v1845, 0
        %v1909 = vsel %vm287, %v1846, 0
        %v1912 = vsel %vm287, %v1847, 0
        %v1915 = vsel %vm287, %v1848, 0
        %v1918 = vsel %vm287, %v1849, 0
        %v1921 = vsel %vm287, %v1850, 0
        %v1924 = vsel %vm287, %v1851, 0
        %v1927 = vsel %vm287, %v1852, 0
        %v1930 = vsel %vm287, %v1853, 0
        %v1933 = vsel %vm287, %v1854, 0
        %v1936 = vsel %vm287, %v1855, 0
        %v1939 = vsel %vm287, %v1856, 0
        %v1942 = vsel %vm287, %v1857, 0
        %v1945 = vsel %vm287, %v1858, 0
        %v1948 = vsel %vm287, %v1859, 0
        %v1951 = vsel %vm287, %v1860, 0
        %v1954 = vsel %vm287, %v1861, 0
        %v1957 = vsel %vm287, %v1862, 0
        %v1960 = vsel %vm287, %v1863, 0
        %v1963 = vsel %vm499, %v1865, 0
        %1965 = vmatprep.subr.mxu0 0.0
        %1966 = vmatpush1.msra.mxu0 %v1963
        %1967 = vmatprep.subr.mxu0 0.0
        %1968 = vmatpush1.msra.mxu0 0.0
        %1969 = vmatprep.subr.mxu0 0.0
        %1970 = vmatpush1.msra.mxu0 0.0
        %1971 = vmatprep.subr.mxu0 0.0
        %1972 = vmatpush1.msra.mxu0 0.0
        %1973 = vmatprep.subr.mxu0 0.0
        %1974 = vmatpush1.msra.mxu0 0.0
        %1975 = vmatprep.subr.mxu0 0.0
        %1976 = vmatpush1.msra.mxu0 0.0
        %1977 = vmatprep.subr.mxu0 0.0
        %1978 = vmatpush1.msra.mxu0 0.0
        %1979 = vmatprep.subr.mxu0 0.0
        %1980 = vmatpush1.msra.mxu0 0.0
        %1981 = vmatprep.subr.mxu0 0.0
        %1982 = vmatpush1.msra.mxu0 0.0
        %1983 = vmatprep.subr.mxu0 0.0
        %1984 = vmatpush1.msra.mxu0 0.0
        %1985 = vmatprep.subr.mxu0 0.0
        %1986 = vmatpush1.msra.mxu0 0.0
        %1987 = vmatprep.subr.mxu0 0.0
        %1988 = vmatpush1.msra.mxu0 0.0
        %1989 = vmatprep.subr.mxu0 0.0
        %1990 = vmatpush1.msra.mxu0 0.0
        %1991 = vmatprep.subr.mxu0 0.0
        %1992 = vmatpush1.msra.mxu0 0.0
        %1993 = vmatprep.subr.mxu0 0.0
        %1994 = vmatpush1.msra.mxu0 0.0
        %1995 = vmatprep.subr.mxu0 0.0
        %1996 = vmatpush1.msra.mxu0 0.0
        %1997 = vmatprep.subr.mxu0 0.0
        %1998 = vmatpush1.msra.mxu0 0.0
        %1999 = vmatprep.subr.mxu0 0.0
        %2000 = vmatpush1.msra.mxu0 0.0
        %2001 = vmatprep.subr.mxu0 0.0
        %2002 = vmatpush1.msra.mxu0 0.0
        %2003 = vmatprep.subr.mxu0 0.0
        %2004 = vmatpush1.msra.mxu0 0.0
        %2005 = vmatprep.subr.mxu0 0.0
        %2006 = vmatpush1.msra.mxu0 0.0
        %2007 = vmatprep.subr.mxu0 0.0
        %2008 = vmatpush1.msra.mxu0 0.0
        %2009 = vmatprep.subr.mxu0 0.0
        %2010 = vmatpush1.msra.mxu0 0.0
        %2011 = vmatprep.subr.mxu0 0.0
        %2012 = vmatpush1.msra.mxu0 0.0
        %2013 = vmatprep.subr.mxu0 0.0
        %2014 = vmatpush1.msra.mxu0 0.0
        %2015 = vmatprep.subr.mxu0 0.0
        %2016 = vmatpush1.msra.mxu0 0.0
        %2017 = vmatprep.subr.mxu0 0.0
        %2018 = vmatpush1.msra.mxu0 0.0
        %2019 = vmatprep.subr.mxu0 0.0
        %2020 = vmatpush1.msra.mxu0 0.0
        %2021 = vmatprep.subr.mxu0 0.0
        %2022 = vmatpush1.msra.mxu0 0.0
        %2023 = vmatprep.subr.mxu0 0.0
        %2024 = vmatpush1.msra.mxu0 0.0
        %2025 = vmatprep.subr.mxu0 0.0
        %2026 = vmatpush1.msra.mxu0 0.0
        %2027 = vmatprep.subr.mxu0 0.0
        %2028 = vmatpush1.msra.mxu0 0.0
        %2029 = vmatprep.mubr.f32.mxu0 0.0
        %2030 = vmatmul.mubr.f32.gmra.mrb[0].mxu0 %v1867
        %v2031 = vpop.f32.mrb[0].mxu0
        %v2032 = vadd.f32 0.0, %v2031
        %v2033 = vpop.f32.mrb[0].mxu0
        %2034 = vmatprep.mubr.f32.mxu0 0.0
        %2035 = vmatmul.mubr.f32.gmra.mrb[0].mxu0 %v1870
        %v2036 = vpop.f32.mrb[0].mxu0
        %v2037 = vadd.f32 0.0, %v2036
        %v2038 = vpop.f32.mrb[0].mxu0
        %2039 = vmatprep.mubr.f32.mxu0 0.0
        %2040 = vmatmul.mubr.f32.gmra.mrb[0].mxu0 %v1873
        %v2041 = vpop.f32.mrb[0].mxu0
        %v2042 = vadd.f32 0.0, %v2041
        %v2043 = vpop.f32.mrb[0].mxu0
        %2044 = vmatprep.mubr.f32.mxu0 0.0
        %2045 = vmatmul.mubr.f32.gmra.mrb[0].mxu0 %v1876
        %v2046 = vpop.f32.mrb[0].mxu0
        %v2047 = vadd.f32 0.0, %v2046
        %v2048 = vpop.f32.mrb[0].mxu0
        %2049 = vmatprep.mubr.f32.mxu0 0.0
        %2050 = vmatmul.mubr.f32.gmra.mrb[0].mxu0 %v1879
        %v2051 = vpop.f32.mrb[0].mxu0
        %v2052 = vadd.f32 0.0, %v2051
        %v2053 = vpop.f32.mrb[0].mxu0
        %2054 = vmatprep.mubr.f32.mxu0 0.0
        %2055 = vmatmul.mubr.f32.gmra.mrb[0].mxu0 %v1882
        %v2056 = vpop.f32.mrb[0].mxu0
        %v2057 = vadd.f32 0.0, %v2056
        %v2058 = vpop.f32.mrb[0].mxu0
        %2059 = vmatprep.mubr.f32.mxu0 0.0
        %2060 = vmatmul.mubr.f32.gmra.mrb[0].mxu0 %v1885
        %v2061 = vpop.f32.mrb[0].mxu0
        %v2062 = vadd.f32 0.0, %v2061
        %v2063 = vpop.f32.mrb[0].mxu0
        %2064 = vmatprep.mubr.f32.mxu0 0.0
        %2065 = vmatmul.mubr.f32.gmra.mrb[0].mxu0 %v1888
        %v2066 = vpop.f32.mrb[0].mxu0
        %v2067 = vadd.f32 0.0, %v2066
        %v2068 = vpop.f32.mrb[0].mxu0
        %2069 = vmatprep.mubr.f32.mxu0 0.0
        %2070 = vmatmul.mubr.f32.gmra.mrb[0].mxu0 %v1891
        %v2071 = vpop.f32.mrb[0].mxu0
        %v2072 = vadd.f32 0.0, %v2071
        %v2073 = vpop.f32.mrb[0].mxu0
        %2074 = vmatprep.mubr.f32.mxu0 0.0
        %2075 = vmatmul.mubr.f32.gmra.mrb[0].mxu0 %v1894
        %v2076 = vpop.f32.mrb[0].mxu0
        %v2077 = vadd.f32 0.0, %v2076
        %v2078 = vpop.f32.mrb[0].mxu0
        %2079 = vmatprep.mubr.f32.mxu0 0.0
        %2080 = vmatmul.mubr.f32.gmra.mrb[0].mxu0 %v1897
        %v2081 = vpop.f32.mrb[0].mxu0
        %v2082 = vadd.f32 0.0, %v2081
        %v2083 = vpop.f32.mrb[0].mxu0
        %2084 = vmatprep.mubr.f32.mxu0 0.0
        %2085 = vmatmul.mubr.f32.gmra.mrb[0].mxu0 %v1900
        %v2086 = vpop.f32.mrb[0].mxu0
        %v2087 = vadd.f32 0.0, %v2086
        %v2088 = vpop.f32.mrb[0].mxu0
        %2089 = vmatprep.mubr.f32.mxu0 0.0
        %2090 = vmatmul.mubr.f32.gmra.mrb[0].mxu0 %v1903
        %v2091 = vpop.f32.mrb[0].mxu0
        %v2092 = vadd.f32 0.0, %v2091
        %v2093 = vpop.f32.mrb[0].mxu0
        %2094 = vmatprep.mubr.f32.mxu0 0.0
        %2095 = vmatmul.mubr.f32.gmra.mrb[0].mxu0 %v1906
        %v2096 = vpop.f32.mrb[0].mxu0
        %v2097 = vadd.f32 0.0, %v2096
        %v2098 = vpop.f32.mrb[0].mxu0
        %2099 = vmatprep.mubr.f32.mxu0 0.0
        %2100 = vmatmul.mubr.f32.gmra.mrb[0].mxu0 %v1909
        %v2101 = vpop.f32.mrb[0].mxu0
        %v2102 = vadd.f32 0.0, %v2101
        %v2103 = vpop.f32.mrb[0].mxu0
        %2104 = vmatprep.mubr.f32.mxu0 0.0
        %2105 = vmatmul.mubr.f32.gmra.mrb[0].mxu0 %v1912
        %v2106 = vpop.f32.mrb[0].mxu0
        %v2107 = vadd.f32 0.0, %v2106
        %v2108 = vpop.f32.mrb[0].mxu0
        %2109 = vmatprep.mubr.f32.mxu0 0.0
        %2110 = vmatmul.mubr.f32.gmra.mrb[0].mxu0 %v1915
        %v2111 = vpop.f32.mrb[0].mxu0
        %v2112 = vadd.f32 0.0, %v2111
        %v2113 = vpop.f32.mrb[0].mxu0
        %2114 = vmatprep.mubr.f32.mxu0 0.0
        %2115 = vmatmul.mubr.f32.gmra.mrb[0].mxu0 %v1918
        %v2116 = vpop.f32.mrb[0].mxu0
        %v2117 = vadd.f32 0.0, %v2116
        %v2118 = vpop.f32.mrb[0].mxu0
        %2119 = vmatprep.mubr.f32.mxu0 0.0
        %2120 = vmatmul.mubr.f32.gmra.mrb[0].mxu0 %v1921
        %v2121 = vpop.f32.mrb[0].mxu0
        %v2122 = vadd.f32 0.0, %v2121
        %v2123 = vpop.f32.mrb[0].mxu0
        %2124 = vmatprep.mubr.f32.mxu0 0.0
        %2125 = vmatmul.mubr.f32.gmra.mrb[0].mxu0 %v1924
        %v2126 = vpop.f32.mrb[0].mxu0
        %v2127 = vadd.f32 0.0, %v2126
        %v2128 = vpop.f32.mrb[0].mxu0
        %2129 = vmatprep.mubr.f32.mxu0 0.0
        %2130 = vmatmul.mubr.f32.gmra.mrb[0].mxu0 %v1927
        %v2131 = vpop.f32.mrb[0].mxu0
        %v2132 = vadd.f32 0.0, %v2131
        %v2133 = vpop.f32.mrb[0].mxu0
        %2134 = vmatprep.mubr.f32.mxu0 0.0
        %2135 = vmatmul.mubr.f32.gmra.mrb[0].mxu0 %v1930
        %v2136 = vpop.f32.mrb[0].mxu0
        %v2137 = vadd.f32 0.0, %v2136
        %v2138 = vpop.f32.mrb[0].mxu0
        %2139 = vmatprep.mubr.f32.mxu0 0.0
        %2140 = vmatmul.mubr.f32.gmra.mrb[0].mxu0 %v1933
        %v2141 = vpop.f32.mrb[0].mxu0
        %v2142 = vadd.f32 0.0, %v2141
        %v2143 = vpop.f32.mrb[0].mxu0
        %2144 = vmatprep.mubr.f32.mxu0 0.0
        %2145 = vmatmul.mubr.f32.gmra.mrb[0].mxu0 %v1936
        %v2146 = vpop.f32.mrb[0].mxu0
        %v2147 = vadd.f32 0.0, %v2146
        %v2148 = vpop.f32.mrb[0].mxu0
        %2149 = vmatprep.mubr.f32.mxu0 0.0
        %2150 = vmatmul.mubr.f32.gmra.mrb[0].mxu0 %v1939
        %v2151 = vpop.f32.mrb[0].mxu0
        %v2152 = vadd.f32 0.0, %v2151
        %v2153 = vpop.f32.mrb[0].mxu0
        %2154 = vmatprep.mubr.f32.mxu0 0.0
        %2155 = vmatmul.mubr.f32.gmra.mrb[0].mxu0 %v1942
        %v2156 = vpop.f32.mrb[0].mxu0
        %v2157 = vadd.f32 0.0, %v2156
        %v2158 = vpop.f32.mrb[0].mxu0
        %2159 = vmatprep.mubr.f32.mxu0 0.0
        %2160 = vmatmul.mubr.f32.gmra.mrb[0].mxu0 %v1945
        %v2161 = vpop.f32.mrb[0].mxu0
        %v2162 = vadd.f32 0.0, %v2161
        %v2163 = vpop.f32.mrb[0].mxu0
        %2164 = vmatprep.mubr.f32.mxu0 0.0
        %2165 = vmatmul.mubr.f32.gmra.mrb[0].mxu0 %v1948
        %v2166 = vpop.f32.mrb[0].mxu0
        %v2167 = vadd.f32 0.0, %v2166
        %v2168 = vpop.f32.mrb[0].mxu0
        %2169 = vmatprep.mubr.f32.mxu0 0.0
        %2170 = vmatmul.mubr.f32.gmra.mrb[0].mxu0 %v1951
        %v2171 = vpop.f32.mrb[0].mxu0
        %v2172 = vadd.f32 0.0, %v2171
        %v2173 = vpop.f32.mrb[0].mxu0
        %2174 = vmatprep.mubr.f32.mxu0 0.0
        %2175 = vmatmul.mubr.f32.gmra.mrb[0].mxu0 %v1954
        %v2176 = vpop.f32.mrb[0].mxu0
        %v2177 = vadd.f32 0.0, %v2176
        %v2178 = vpop.f32.mrb[0].mxu0
        %2179 = vmatprep.mubr.f32.mxu0 0.0
        %2180 = vmatmul.mubr.f32.gmra.mrb[0].mxu0 %v1957
        %v2181 = vpop.f32.mrb[0].mxu0
        %v2182 = vadd.f32 0.0, %v2181
        %v2183 = vpop.f32.mrb[0].mxu0
        %2184 = vmatprep.mubr.f32.mxu0 0.0
        %2185 = vmatmul.mubr.f32.gmra.mrb[0].mxu0 %v1960
        %v2186 = vpop.f32.mrb[0].mxu0
        %v2187 = vadd.f32 0.0, %v2186
        %v2188 = vpop.f32.mrb[0].mxu0
        %2189 = vdwg.mxu0
        %v2190 = vadd.f32 %v1800, %v2032
        %v2191 = vadd.f32 %v1801, %v2037
        %v2192 = vadd.f32 %v1802, %v2042
        %v2193 = vadd.f32 %v1803, %v2047
        %v2194 = vadd.f32 %v1804, %v2052
        %v2195 = vadd.f32 %v1805, %v2057
        %v2196 = vadd.f32 %v1806, %v2062
        %v2197 = vadd.f32 %v1807, %v2067
        %v2198 = vadd.f32 %v1808, %v2072
        %v2199 = vadd.f32 %v1809, %v2077
        %v2200 = vadd.f32 %v1810, %v2082
        %v2201 = vadd.f32 %v1811, %v2087
        %v2202 = vadd.f32 %v1812, %v2092
        %v2203 = vadd.f32 %v1813, %v2097
        %v2204 = vadd.f32 %v1814, %v2102
        %v2205 = vadd.f32 %v1815, %v2107
        %v2206 = vadd.f32 %v1816, %v2112
        %v2207 = vadd.f32 %v1817, %v2117
        %v2208 = vadd.f32 %v1818, %v2122
        %v2209 = vadd.f32 %v1819, %v2127
        %v2210 = vadd.f32 %v1820, %v2132
        %v2211 = vadd.f32 %v1821, %v2137
        %v2212 = vadd.f32 %v1822, %v2142
        %v2213 = vadd.f32 %v1823, %v2147
        %v2214 = vadd.f32 %v1824, %v2152
        %v2215 = vadd.f32 %v1825, %v2157
        %v2216 = vadd.f32 %v1826, %v2162
        %v2217 = vadd.f32 %v1827, %v2167
        %v2218 = vadd.f32 %v1828, %v2172
        %v2219 = vadd.f32 %v1829, %v2177
        %v2220 = vadd.f32 %v1830, %v2182
        %v2221 = vadd.f32 %v1831, %v2187
        %v2222 = vld [vmem:[#allocation2 + $0x14] sm:$0xff]
        %v2223 = vld [vmem:[#allocation2 + $0x1c] sm:$0xff]
        %v2224 = vld [vmem:[#allocation2 + $0x24] sm:$0xff]
        %v2225 = vld [vmem:[#allocation2 + $0x2c] sm:$0xff]
        %v2226 = vld [vmem:[#allocation2 + $0x34] sm:$0xff]
        %v2227 = vld [vmem:[#allocation2 + $0x3c] sm:$0xff]
        %v2228 = vld [vmem:[#allocation2 + $0x44] sm:$0xff]
        %v2229 = vld [vmem:[#allocation2 + $0x4c] sm:$0xff]
        %v2230 = vld [vmem:[#allocation2 + $0x54] sm:$0xff]
        %v2231 = vld [vmem:[#allocation2 + $0x5c] sm:$0xff]
        %v2232 = vld [vmem:[#allocation2 + $0x64] sm:$0xff]
        %v2233 = vld [vmem:[#allocation2 + $0x6c] sm:$0xff]
        %v2234 = vld [vmem:[#allocation2 + $0x74] sm:$0xff]
        %v2235 = vld [vmem:[#allocation2 + $0x7c] sm:$0xff]
        %v2236 = vld [vmem:[#allocation2 + $0x84] sm:$0xff]
        %v2237 = vld [vmem:[#allocation2 + $0x8c] sm:$0xff]
        %v2238 = vld [vmem:[#allocation2 + $0x94] sm:$0xff]
        %v2239 = vld [vmem:[#allocation2 + $0x9c] sm:$0xff]
        %v2240 = vld [vmem:[#allocation2 + $0xa4] sm:$0xff]
        %v2241 = vld [vmem:[#allocation2 + $0xac] sm:$0xff]
        %v2242 = vld [vmem:[#allocation2 + $0xb4] sm:$0xff]
        %v2243 = vld [vmem:[#allocation2 + $0xbc] sm:$0xff]
        %v2244 = vld [vmem:[#allocation2 + $0xc4] sm:$0xff]
        %v2245 = vld [vmem:[#allocation2 + $0xcc] sm:$0xff]
        %v2246 = vld [vmem:[#allocation2 + $0xd4] sm:$0xff]
        %v2247 = vld [vmem:[#allocation2 + $0xdc] sm:$0xff]
        %v2248 = vld [vmem:[#allocation2 + $0xe4] sm:$0xff]
        %v2249 = vld [vmem:[#allocation2 + $0xec] sm:$0xff]
        %v2250 = vld [vmem:[#allocation2 + $0xf4] sm:$0xff]
        %v2251 = vld [vmem:[#allocation2 + $0xfc] sm:$0xff]
        %v2252 = vld [vmem:[#allocation2 + $0x104] sm:$0xff]
        %v2253 = vld [vmem:[#allocation2 + $0x10c] sm:$0xff]
        %s2254 = scalar_lea.vmem %s2, 20
        %v2255 = vld [vmem:[%s2254] sm:$0xf]
        %v2257 = vsel %vm287, %v2222, 0
        %v2260 = vsel %vm287, %v2223, 0
        %v2263 = vsel %vm287, %v2224, 0
        %v2266 = vsel %vm287, %v2225, 0
        %v2269 = vsel %vm287, %v2226, 0
        %v2272 = vsel %vm287, %v2227, 0
        %v2275 = vsel %vm287, %v2228, 0
        %v2278 = vsel %vm287, %v2229, 0
        %v2281 = vsel %vm287, %v2230, 0
        %v2284 = vsel %vm287, %v2231, 0
        %v2287 = vsel %vm287, %v2232, 0
        %v2290 = vsel %vm287, %v2233, 0
        %v2293 = vsel %vm287, %v2234, 0
        %v2296 = vsel %vm287, %v2235, 0
        %v2299 = vsel %vm287, %v2236, 0
        %v2302 = vsel %vm287, %v2237, 0
        %v2305 = vsel %vm287, %v2238, 0
        %v2308 = vsel %vm287, %v2239, 0
        %v2311 = vsel %vm287, %v2240, 0
        %v2314 = vsel %vm287, %v2241, 0
        %v2317 = vsel %vm287, %v2242, 0
        %v2320 = vsel %vm287, %v2243, 0
        %v2323 = vsel %vm287, %v2244, 0
        %v2326 = vsel %vm287, %v2245, 0
        %v2329 = vsel %vm287, %v2246, 0
        %v2332 = vsel %vm287, %v2247, 0
        %v2335 = vsel %vm287, %v2248, 0
        %v2338 = vsel %vm287, %v2249, 0
        %v2341 = vsel %vm287, %v2250, 0
        %v2344 = vsel %vm287, %v2251, 0
        %v2347 = vsel %vm287, %v2252, 0
        %v2350 = vsel %vm287, %v2253, 0
        %v2353 = vsel %vm499, %v2255, 0
        %2355 = vmatprep.subr.mxu0 0.0
        %2356 = vmatpush1.msra.mxu0 %v2353
        %2357 = vmatprep.subr.mxu0 0.0
        %2358 = vmatpush1.msra.mxu0 0.0
        %2359 = vmatprep.subr.mxu0 0.0
        %2360 = vmatpush1.msra.mxu0 0.0
        %2361 = vmatprep.subr.mxu0 0.0
        %2362 = vmatpush1.msra.mxu0 0.0
        %2363 = vmatprep.subr.mxu0 0.0
        %2364 = vmatpush1.msra.mxu0 0.0
        %2365 = vmatprep.subr.mxu0 0.0
        %2366 = vmatpush1.msra.mxu0 0.0
        %2367 = vmatprep.subr.mxu0 0.0
        %2368 = vmatpush1.msra.mxu0 0.0
        %2369 = vmatprep.subr.mxu0 0.0
        %2370 = vmatpush1.msra.mxu0 0.0
        %2371 = vmatprep.subr.mxu0 0.0
        %2372 = vmatpush1.msra.mxu0 0.0
        %2373 = vmatprep.subr.mxu0 0.0
        %2374 = vmatpush1.msra.mxu0 0.0
        %2375 = vmatprep.subr.mxu0 0.0
        %2376 = vmatpush1.msra.mxu0 0.0
        %2377 = vmatprep.subr.mxu0 0.0
        %2378 = vmatpush1.msra.mxu0 0.0
        %2379 = vmatprep.subr.mxu0 0.0
        %2380 = vmatpush1.msra.mxu0 0.0
        %2381 = vmatprep.subr.mxu0 0.0
        %2382 = vmatpush1.msra.mxu0 0.0
        %2383 = vmatprep.subr.mxu0 0.0
        %2384 = vmatpush1.msra.mxu0 0.0
        %2385 = vmatprep.subr.mxu0 0.0
        %2386 = vmatpush1.msra.mxu0 0.0
        %2387 = vmatprep.subr.mxu0 0.0
        %2388 = vmatpush1.msra.mxu0 0.0
        %2389 = vmatprep.subr.mxu0 0.0
        %2390 = vmatpush1.msra.mxu0 0.0
        %2391 = vmatprep.subr.mxu0 0.0
        %2392 = vmatpush1.msra.mxu0 0.0
        %2393 = vmatprep.subr.mxu0 0.0
        %2394 = vmatpush1.msra.mxu0 0.0
        %2395 = vmatprep.subr.mxu0 0.0
        %2396 = vmatpush1.msra.mxu0 0.0
        %2397 = vmatprep.subr.mxu0 0.0
        %2398 = vmatpush1.msra.mxu0 0.0
        %2399 = vmatprep.subr.mxu0 0.0
        %2400 = vmatpush1.msra.mxu0 0.0
        %2401 = vmatprep.subr.mxu0 0.0
        %2402 = vmatpush1.msra.mxu0 0.0
        %2403 = vmatprep.subr.mxu0 0.0
        %2404 = vmatpush1.msra.mxu0 0.0
        %2405 = vmatprep.subr.mxu0 0.0
        %2406 = vmatpush1.msra.mxu0 0.0
        %2407 = vmatprep.subr.mxu0 0.0
        %2408 = vmatpush1.msra.mxu0 0.0
        %2409 = vmatprep.subr.mxu0 0.0
        %2410 = vmatpush1.msra.mxu0 0.0
        %2411 = vmatprep.subr.mxu0 0.0
        %2412 = vmatpush1.msra.mxu0 0.0
        %2413 = vmatprep.subr.mxu0 0.0
        %2414 = vmatpush1.msra.mxu0 0.0
        %2415 = vmatprep.subr.mxu0 0.0
        %2416 = vmatpush1.msra.mxu0 0.0
        %2417 = vmatprep.subr.mxu0 0.0
        %2418 = vmatpush1.msra.mxu0 0.0
        %2419 = vmatprep.mubr.f32.mxu0 0.0
        %2420 = vmatmul.mubr.f32.gmra.mrb[0].mxu0 %v2257
        %v2421 = vpop.f32.mrb[0].mxu0
        %v2422 = vadd.f32 0.0, %v2421
        %v2423 = vpop.f32.mrb[0].mxu0
        %2424 = vmatprep.mubr.f32.mxu0 0.0
        %2425 = vmatmul.mubr.f32.gmra.mrb[0].mxu0 %v2260
        %v2426 = vpop.f32.mrb[0].mxu0
        %v2427 = vadd.f32 0.0, %v2426
        %v2428 = vpop.f32.mrb[0].mxu0
        %2429 = vmatprep.mubr.f32.mxu0 0.0
        %2430 = vmatmul.mubr.f32.gmra.mrb[0].mxu0 %v2263
        %v2431 = vpop.f32.mrb[0].mxu0
        %v2432 = vadd.f32 0.0, %v2431
        %v2433 = vpop.f32.mrb[0].mxu0
        %2434 = vmatprep.mubr.f32.mxu0 0.0
        %2435 = vmatmul.mubr.f32.gmra.mrb[0].mxu0 %v2266
        %v2436 = vpop.f32.mrb[0].mxu0
        %v2437 = vadd.f32 0.0, %v2436
        %v2438 = vpop.f32.mrb[0].mxu0
        %2439 = vmatprep.mubr.f32.mxu0 0.0
        %2440 = vmatmul.mubr.f32.gmra.mrb[0].mxu0 %v2269
        %v2441 = vpop.f32.mrb[0].mxu0
        %v2442 = vadd.f32 0.0, %v2441
        %v2443 = vpop.f32.mrb[0].mxu0
        %2444 = vmatprep.mubr.f32.mxu0 0.0
        %2445 = vmatmul.mubr.f32.gmra.mrb[0].mxu0 %v2272
        %v2446 = vpop.f32.mrb[0].mxu0
        %v2447 = vadd.f32 0.0, %v2446
        %v2448 = vpop.f32.mrb[0].mxu0
        %2449 = vmatprep.mubr.f32.mxu0 0.0
        %2450 = vmatmul.mubr.f32.gmra.mrb[0].mxu0 %v2275
        %v2451 = vpop.f32.mrb[0].mxu0
        %v2452 = vadd.f32 0.0, %v2451
        %v2453 = vpop.f32.mrb[0].mxu0
        %2454 = vmatprep.mubr.f32.mxu0 0.0
        %2455 = vmatmul.mubr.f32.gmra.mrb[0].mxu0 %v2278
        %v2456 = vpop.f32.mrb[0].mxu0
        %v2457 = vadd.f32 0.0, %v2456
        %v2458 = vpop.f32.mrb[0].mxu0
        %2459 = vmatprep.mubr.f32.mxu0 0.0
        %2460 = vmatmul.mubr.f32.gmra.mrb[0].mxu0 %v2281
        %v2461 = vpop.f32.mrb[0].mxu0
        %v2462 = vadd.f32 0.0, %v2461
        %v2463 = vpop.f32.mrb[0].mxu0
        %2464 = vmatprep.mubr.f32.mxu0 0.0
        %2465 = vmatmul.mubr.f32.gmra.mrb[0].mxu0 %v2284
        %v2466 = vpop.f32.mrb[0].mxu0
        %v2467 = vadd.f32 0.0, %v2466
        %v2468 = vpop.f32.mrb[0].mxu0
        %2469 = vmatprep.mubr.f32.mxu0 0.0
        %2470 = vmatmul.mubr.f32.gmra.mrb[0].mxu0 %v2287
        %v2471 = vpop.f32.mrb[0].mxu0
        %v2472 = vadd.f32 0.0, %v2471
        %v2473 = vpop.f32.mrb[0].mxu0
        %2474 = vmatprep.mubr.f32.mxu0 0.0
        %2475 = vmatmul.mubr.f32.gmra.mrb[0].mxu0 %v2290
        %v2476 = vpop.f32.mrb[0].mxu0
        %v2477 = vadd.f32 0.0, %v2476
        %v2478 = vpop.f32.mrb[0].mxu0
        %2479 = vmatprep.mubr.f32.mxu0 0.0
        %2480 = vmatmul.mubr.f32.gmra.mrb[0].mxu0 %v2293
        %v2481 = vpop.f32.mrb[0].mxu0
        %v2482 = vadd.f32 0.0, %v2481
        %v2483 = vpop.f32.mrb[0].mxu0
        %2484 = vmatprep.mubr.f32.mxu0 0.0
        %2485 = vmatmul.mubr.f32.gmra.mrb[0].mxu0 %v2296
        %v2486 = vpop.f32.mrb[0].mxu0
        %v2487 = vadd.f32 0.0, %v2486
        %v2488 = vpop.f32.mrb[0].mxu0
        %2489 = vmatprep.mubr.f32.mxu0 0.0
        %2490 = vmatmul.mubr.f32.gmra.mrb[0].mxu0 %v2299
        %v2491 = vpop.f32.mrb[0].mxu0
        %v2492 = vadd.f32 0.0, %v2491
        %v2493 = vpop.f32.mrb[0].mxu0
        %2494 = vmatprep.mubr.f32.mxu0 0.0
        %2495 = vmatmul.mubr.f32.gmra.mrb[0].mxu0 %v2302
        %v2496 = vpop.f32.mrb[0].mxu0
        %v2497 = vadd.f32 0.0, %v2496
        %v2498 = vpop.f32.mrb[0].mxu0
        %2499 = vmatprep.mubr.f32.mxu0 0.0
        %2500 = vmatmul.mubr.f32.gmra.mrb[0].mxu0 %v2305
        %v2501 = vpop.f32.mrb[0].mxu0
        %v2502 = vadd.f32 0.0, %v2501
        %v2503 = vpop.f32.mrb[0].mxu0
        %2504 = vmatprep.mubr.f32.mxu0 0.0
        %2505 = vmatmul.mubr.f32.gmra.mrb[0].mxu0 %v2308
        %v2506 = vpop.f32.mrb[0].mxu0
        %v2507 = vadd.f32 0.0, %v2506
        %v2508 = vpop.f32.mrb[0].mxu0
        %2509 = vmatprep.mubr.f32.mxu0 0.0
        %2510 = vmatmul.mubr.f32.gmra.mrb[0].mxu0 %v2311
        %v2511 = vpop.f32.mrb[0].mxu0
        %v2512 = vadd.f32 0.0, %v2511
        %v2513 = vpop.f32.mrb[0].mxu0
        %2514 = vmatprep.mubr.f32.mxu0 0.0
        %2515 = vmatmul.mubr.f32.gmra.mrb[0].mxu0 %v2314
        %v2516 = vpop.f32.mrb[0].mxu0
        %v2517 = vadd.f32 0.0, %v2516
        %v2518 = vpop.f32.mrb[0].mxu0
        %2519 = vmatprep.mubr.f32.mxu0 0.0
        %2520 = vmatmul.mubr.f32.gmra.mrb[0].mxu0 %v2317
        %v2521 = vpop.f32.mrb[0].mxu0
        %v2522 = vadd.f32 0.0, %v2521
        %v2523 = vpop.f32.mrb[0].mxu0
        %2524 = vmatprep.mubr.f32.mxu0 0.0
        %2525 = vmatmul.mubr.f32.gmra.mrb[0].mxu0 %v2320
        %v2526 = vpop.f32.mrb[0].mxu0
        %v2527 = vadd.f32 0.0, %v2526
        %v2528 = vpop.f32.mrb[0].mxu0
        %2529 = vmatprep.mubr.f32.mxu0 0.0
        %2530 = vmatmul.mubr.f32.gmra.mrb[0].mxu0 %v2323
        %v2531 = vpop.f32.mrb[0].mxu0
        %v2532 = vadd.f32 0.0, %v2531
        %v2533 = vpop.f32.mrb[0].mxu0
        %2534 = vmatprep.mubr.f32.mxu0 0.0
        %2535 = vmatmul.mubr.f32.gmra.mrb[0].mxu0 %v2326
        %v2536 = vpop.f32.mrb[0].mxu0
        %v2537 = vadd.f32 0.0, %v2536
        %v2538 = vpop.f32.mrb[0].mxu0
        %2539 = vmatprep.mubr.f32.mxu0 0.0
        %2540 = vmatmul.mubr.f32.gmra.mrb[0].mxu0 %v2329
        %v2541 = vpop.f32.mrb[0].mxu0
        %v2542 = vadd.f32 0.0, %v2541
        %v2543 = vpop.f32.mrb[0].mxu0
        %2544 = vmatprep.mubr.f32.mxu0 0.0
        %2545 = vmatmul.mubr.f32.gmra.mrb[0].mxu0 %v2332
        %v2546 = vpop.f32.mrb[0].mxu0
        %v2547 = vadd.f32 0.0, %v2546
        %v2548 = vpop.f32.mrb[0].mxu0
        %2549 = vmatprep.mubr.f32.mxu0 0.0
        %2550 = vmatmul.mubr.f32.gmra.mrb[0].mxu0 %v2335
        %v2551 = vpop.f32.mrb[0].mxu0
        %v2552 = vadd.f32 0.0, %v2551
        %v2553 = vpop.f32.mrb[0].mxu0
        %2554 = vmatprep.mubr.f32.mxu0 0.0
        %2555 = vmatmul.mubr.f32.gmra.mrb[0].mxu0 %v2338
        %v2556 = vpop.f32.mrb[0].mxu0
        %v2557 = vadd.f32 0.0, %v2556
        %v2558 = vpop.f32.mrb[0].mxu0
        %2559 = vmatprep.mubr.f32.mxu0 0.0
        %2560 = vmatmul.mubr.f32.gmra.mrb[0].mxu0 %v2341
        %v2561 = vpop.f32.mrb[0].mxu0
        %v2562 = vadd.f32 0.0, %v2561
        %v2563 = vpop.f32.mrb[0].mxu0
        %2564 = vmatprep.mubr.f32.mxu0 0.0
        %2565 = vmatmul.mubr.f32.gmra.mrb[0].mxu0 %v2344
        %v2566 = vpop.f32.mrb[0].mxu0
        %v2567 = vadd.f32 0.0, %v2566
        %v2568 = vpop.f32.mrb[0].mxu0
        %2569 = vmatprep.mubr.f32.mxu0 0.0
        %2570 = vmatmul.mubr.f32.gmra.mrb[0].mxu0 %v2347
        %v2571 = vpop.f32.mrb[0].mxu0
        %v2572 = vadd.f32 0.0, %v2571
        %v2573 = vpop.f32.mrb[0].mxu0
        %2574 = vmatprep.mubr.f32.mxu0 0.0
        %2575 = vmatmul.mubr.f32.gmra.mrb[0].mxu0 %v2350
        %v2576 = vpop.f32.mrb[0].mxu0
        %v2577 = vadd.f32 0.0, %v2576
        %v2578 = vpop.f32.mrb[0].mxu0
        %2579 = vdwg.mxu0
        %v2580 = vadd.f32 %v2190, %v2422
        %v2581 = vadd.f32 %v2191, %v2427
        %v2582 = vadd.f32 %v2192, %v2432
        %v2583 = vadd.f32 %v2193, %v2437
        %v2584 = vadd.f32 %v2194, %v2442
        %v2585 = vadd.f32 %v2195, %v2447
        %v2586 = vadd.f32 %v2196, %v2452
        %v2587 = vadd.f32 %v2197, %v2457
        %v2588 = vadd.f32 %v2198, %v2462
        %v2589 = vadd.f32 %v2199, %v2467
        %v2590 = vadd.f32 %v2200, %v2472
        %v2591 = vadd.f32 %v2201, %v2477
        %v2592 = vadd.f32 %v2202, %v2482
        %v2593 = vadd.f32 %v2203, %v2487
        %v2594 = vadd.f32 %v2204, %v2492
        %v2595 = vadd.f32 %v2205, %v2497
        %v2596 = vadd.f32 %v2206, %v2502
        %v2597 = vadd.f32 %v2207, %v2507
        %v2598 = vadd.f32 %v2208, %v2512
        %v2599 = vadd.f32 %v2209, %v2517
        %v2600 = vadd.f32 %v2210, %v2522
        %v2601 = vadd.f32 %v2211, %v2527
        %v2602 = vadd.f32 %v2212, %v2532
        %v2603 = vadd.f32 %v2213, %v2537
        %v2604 = vadd.f32 %v2214, %v2542
        %v2605 = vadd.f32 %v2215, %v2547
        %v2606 = vadd.f32 %v2216, %v2552
        %v2607 = vadd.f32 %v2217, %v2557
        %v2608 = vadd.f32 %v2218, %v2562
        %v2609 = vadd.f32 %v2219, %v2567
        %v2610 = vadd.f32 %v2220, %v2572
        %v2611 = vadd.f32 %v2221, %v2577
        %v2612 = vld [vmem:[#allocation2 + $0x24] sm:$0xff]
        %v2613 = vld [vmem:[#allocation2 + $0x2c] sm:$0xff]
        %v2614 = vld [vmem:[#allocation2 + $0x34] sm:$0xff]
        %v2615 = vld [vmem:[#allocation2 + $0x3c] sm:$0xff]
        %v2616 = vld [vmem:[#allocation2 + $0x44] sm:$0xff]
        %v2617 = vld [vmem:[#allocation2 + $0x4c] sm:$0xff]
        %v2618 = vld [vmem:[#allocation2 + $0x54] sm:$0xff]
        %v2619 = vld [vmem:[#allocation2 + $0x5c] sm:$0xff]
        %v2620 = vld [vmem:[#allocation2 + $0x64] sm:$0xff]
        %v2621 = vld [vmem:[#allocation2 + $0x6c] sm:$0xff]
        %v2622 = vld [vmem:[#allocation2 + $0x74] sm:$0xff]
        %v2623 = vld [vmem:[#allocation2 + $0x7c] sm:$0xff]
        %v2624 = vld [vmem:[#allocation2 + $0x84] sm:$0xff]
        %v2625 = vld [vmem:[#allocation2 + $0x8c] sm:$0xff]
        %v2626 = vld [vmem:[#allocation2 + $0x94] sm:$0xff]
        %v2627 = vld [vmem:[#allocation2 + $0x9c] sm:$0xff]
        %v2628 = vld [vmem:[#allocation2 + $0xa4] sm:$0xff]
        %v2629 = vld [vmem:[#allocation2 + $0xac] sm:$0xff]
        %v2630 = vld [vmem:[#allocation2 + $0xb4] sm:$0xff]
        %v2631 = vld [vmem:[#allocation2 + $0xbc] sm:$0xff]
        %v2632 = vld [vmem:[#allocation2 + $0xc4] sm:$0xff]
        %v2633 = vld [vmem:[#allocation2 + $0xcc] sm:$0xff]
        %v2634 = vld [vmem:[#allocation2 + $0xd4] sm:$0xff]
        %v2635 = vld [vmem:[#allocation2 + $0xdc] sm:$0xff]
        %v2636 = vld [vmem:[#allocation2 + $0xe4] sm:$0xff]
        %v2637 = vld [vmem:[#allocation2 + $0xec] sm:$0xff]
        %v2638 = vld [vmem:[#allocation2 + $0xf4] sm:$0xff]
        %v2639 = vld [vmem:[#allocation2 + $0xfc] sm:$0xff]
        %v2640 = vld [vmem:[#allocation2 + $0x104] sm:$0xff]
        %v2641 = vld [vmem:[#allocation2 + $0x10c] sm:$0xff]
        %v2642 = vld [vmem:[#allocation2 + $0x114] sm:$0xff]
        %v2643 = vld [vmem:[#allocation2 + $0x11c] sm:$0xff]
        %s2644 = scalar_lea.vmem %s2, 24
        %v2645 = vld [vmem:[%s2644] sm:$0xf]
        %v2647 = vsel %vm287, %v2612, 0
        %v2650 = vsel %vm287, %v2613, 0
        %v2653 = vsel %vm287, %v2614, 0
        %v2656 = vsel %vm287, %v2615, 0
        %v2659 = vsel %vm287, %v2616, 0
        %v2662 = vsel %vm287, %v2617, 0
        %v2665 = vsel %vm287, %v2618, 0
        %v2668 = vsel %vm287, %v2619, 0
        %v2671 = vsel %vm287, %v2620, 0
        %v2674 = vsel %vm287, %v2621, 0
        %v2677 = vsel %vm287, %v2622, 0
        %v2680 = vsel %vm287, %v2623, 0
        %v2683 = vsel %vm287, %v2624, 0
        %v2686 = vsel %vm287, %v2625, 0
        %v2689 = vsel %vm287, %v2626, 0
        %v2692 = vsel %vm287, %v2627, 0
        %v2695 = vsel %vm287, %v2628, 0
        %v2698 = vsel %vm287, %v2629, 0
        %v2701 = vsel %vm287, %v2630, 0
        %v2704 = vsel %vm287, %v2631, 0
        %v2707 = vsel %vm287, %v2632, 0
        %v2710 = vsel %vm287, %v2633, 0
        %v2713 = vsel %vm287, %v2634, 0
        %v2716 = vsel %vm287, %v2635, 0
        %v2719 = vsel %vm287, %v2636, 0
        %v2722 = vsel %vm287, %v2637, 0
        %v2725 = vsel %vm287, %v2638, 0
        %v2728 = vsel %vm287, %v2639, 0
        %v2731 = vsel %vm287, %v2640, 0
        %v2734 = vsel %vm287, %v2641, 0
        %v2737 = vsel %vm287, %v2642, 0
        %v2740 = vsel %vm287, %v2643, 0
        %v2743 = vsel %vm499, %v2645, 0
        %2745 = vmatprep.subr.mxu0 0.0
        %2746 = vmatpush1.msra.mxu0 %v2743
        %2747 = vmatprep.subr.mxu0 0.0
        %2748 = vmatpush1.msra.mxu0 0.0
        %2749 = vmatprep.subr.mxu0 0.0
        %2750 = vmatpush1.msra.mxu0 0.0
        %2751 = vmatprep.subr.mxu0 0.0
        %2752 = vmatpush1.msra.mxu0 0.0
        %2753 = vmatprep.subr.mxu0 0.0
        %2754 = vmatpush1.msra.mxu0 0.0
        %2755 = vmatprep.subr.mxu0 0.0
        %2756 = vmatpush1.msra.mxu0 0.0
        %2757 = vmatprep.subr.mxu0 0.0
        %2758 = vmatpush1.msra.mxu0 0.0
        %2759 = vmatprep.subr.mxu0 0.0
        %2760 = vmatpush1.msra.mxu0 0.0
        %2761 = vmatprep.subr.mxu0 0.0
        %2762 = vmatpush1.msra.mxu0 0.0
        %2763 = vmatprep.subr.mxu0 0.0
        %2764 = vmatpush1.msra.mxu0 0.0
        %2765 = vmatprep.subr.mxu0 0.0
        %2766 = vmatpush1.msra.mxu0 0.0
        %2767 = vmatprep.subr.mxu0 0.0
        %2768 = vmatpush1.msra.mxu0 0.0
        %2769 = vmatprep.subr.mxu0 0.0
        %2770 = vmatpush1.msra.mxu0 0.0
        %2771 = vmatprep.subr.mxu0 0.0
        %2772 = vmatpush1.msra.mxu0 0.0
        %2773 = vmatprep.subr.mxu0 0.0
        %2774 = vmatpush1.msra.mxu0 0.0
        %2775 = vmatprep.subr.mxu0 0.0
        %2776 = vmatpush1.msra.mxu0 0.0
        %2777 = vmatprep.subr.mxu0 0.0
        %2778 = vmatpush1.msra.mxu0 0.0
        %2779 = vmatprep.subr.mxu0 0.0
        %2780 = vmatpush1.msra.mxu0 0.0
        %2781 = vmatprep.subr.mxu0 0.0
        %2782 = vmatpush1.msra.mxu0 0.0
        %2783 = vmatprep.subr.mxu0 0.0
        %2784 = vmatpush1.msra.mxu0 0.0
        %2785 = vmatprep.subr.mxu0 0.0
        %2786 = vmatpush1.msra.mxu0 0.0
        %2787 = vmatprep.subr.mxu0 0.0
        %2788 = vmatpush1.msra.mxu0 0.0
        %2789 = vmatprep.subr.mxu0 0.0
        %2790 = vmatpush1.msra.mxu0 0.0
        %2791 = vmatprep.subr.mxu0 0.0
        %2792 = vmatpush1.msra.mxu0 0.0
        %2793 = vmatprep.subr.mxu0 0.0
        %2794 = vmatpush1.msra.mxu0 0.0
        %2795 = vmatprep.subr.mxu0 0.0
        %2796 = vmatpush1.msra.mxu0 0.0
        %2797 = vmatprep.subr.mxu0 0.0
        %2798 = vmatpush1.msra.mxu0 0.0
        %2799 = vmatprep.subr.mxu0 0.0
        %2800 = vmatpush1.msra.mxu0 0.0
        %2801 = vmatprep.subr.mxu0 0.0
        %2802 = vmatpush1.msra.mxu0 0.0
        %2803 = vmatprep.subr.mxu0 0.0
        %2804 = vmatpush1.msra.mxu0 0.0
        %2805 = vmatprep.subr.mxu0 0.0
        %2806 = vmatpush1.msra.mxu0 0.0
        %2807 = vmatprep.subr.mxu0 0.0
        %2808 = vmatpush1.msra.mxu0 0.0
        %2809 = vmatprep.mubr.f32.mxu0 0.0
        %2810 = vmatmul.mubr.f32.gmra.mrb[0].mxu0 %v2647
        %v2811 = vpop.f32.mrb[0].mxu0
        %v2812 = vadd.f32 0.0, %v2811
        %v2813 = vpop.f32.mrb[0].mxu0
        %2814 = vmatprep.mubr.f32.mxu0 0.0
        %2815 = vmatmul.mubr.f32.gmra.mrb[0].mxu0 %v2650
        %v2816 = vpop.f32.mrb[0].mxu0
        %v2817 = vadd.f32 0.0, %v2816
        %v2818 = vpop.f32.mrb[0].mxu0
        %2819 = vmatprep.mubr.f32.mxu0 0.0
        %2820 = vmatmul.mubr.f32.gmra.mrb[0].mxu0 %v2653
        %v2821 = vpop.f32.mrb[0].mxu0
        %v2822 = vadd.f32 0.0, %v2821
        %v2823 = vpop.f32.mrb[0].mxu0
        %2824 = vmatprep.mubr.f32.mxu0 0.0
        %2825 = vmatmul.mubr.f32.gmra.mrb[0].mxu0 %v2656
        %v2826 = vpop.f32.mrb[0].mxu0
        %v2827 = vadd.f32 0.0, %v2826
        %v2828 = vpop.f32.mrb[0].mxu0
        %2829 = vmatprep.mubr.f32.mxu0 0.0
        %2830 = vmatmul.mubr.f32.gmra.mrb[0].mxu0 %v2659
        %v2831 = vpop.f32.mrb[0].mxu0
        %v2832 = vadd.f32 0.0, %v2831
        %v2833 = vpop.f32.mrb[0].mxu0
        %2834 = vmatprep.mubr.f32.mxu0 0.0
        %2835 = vmatmul.mubr.f32.gmra.mrb[0].mxu0 %v2662
        %v2836 = vpop.f32.mrb[0].mxu0
        %v2837 = vadd.f32 0.0, %v2836
        %v2838 = vpop.f32.mrb[0].mxu0
        %2839 = vmatprep.mubr.f32.mxu0 0.0
        %2840 = vmatmul.mubr.f32.gmra.mrb[0].mxu0 %v2665
        %v2841 = vpop.f32.mrb[0].mxu0
        %v2842 = vadd.f32 0.0, %v2841
        %v2843 = vpop.f32.mrb[0].mxu0
        %2844 = vmatprep.mubr.f32.mxu0 0.0
        %2845 = vmatmul.mubr.f32.gmra.mrb[0].mxu0 %v2668
        %v2846 = vpop.f32.mrb[0].mxu0
        %v2847 = vadd.f32 0.0, %v2846
        %v2848 = vpop.f32.mrb[0].mxu0
        %2849 = vmatprep.mubr.f32.mxu0 0.0
        %2850 = vmatmul.mubr.f32.gmra.mrb[0].mxu0 %v2671
        %v2851 = vpop.f32.mrb[0].mxu0
        %v2852 = vadd.f32 0.0, %v2851
        %v2853 = vpop.f32.mrb[0].mxu0
        %2854 = vmatprep.mubr.f32.mxu0 0.0
        %2855 = vmatmul.mubr.f32.gmra.mrb[0].mxu0 %v2674
        %v2856 = vpop.f32.mrb[0].mxu0
        %v2857 = vadd.f32 0.0, %v2856
        %v2858 = vpop.f32.mrb[0].mxu0
        %2859 = vmatprep.mubr.f32.mxu0 0.0
        %2860 = vmatmul.mubr.f32.gmra.mrb[0].mxu0 %v2677
        %v2861 = vpop.f32.mrb[0].mxu0
        %v2862 = vadd.f32 0.0, %v2861
        %v2863 = vpop.f32.mrb[0].mxu0
        %2864 = vmatprep.mubr.f32.mxu0 0.0
        %2865 = vmatmul.mubr.f32.gmra.mrb[0].mxu0 %v2680
        %v2866 = vpop.f32.mrb[0].mxu0
        %v2867 = vadd.f32 0.0, %v2866
        %v2868 = vpop.f32.mrb[0].mxu0
        %2869 = vmatprep.mubr.f32.mxu0 0.0
        %2870 = vmatmul.mubr.f32.gmra.mrb[0].mxu0 %v2683
        %v2871 = vpop.f32.mrb[0].mxu0
        %v2872 = vadd.f32 0.0, %v2871
        %v2873 = vpop.f32.mrb[0].mxu0
        %2874 = vmatprep.mubr.f32.mxu0 0.0
        %2875 = vmatmul.mubr.f32.gmra.mrb[0].mxu0 %v2686
        %v2876 = vpop.f32.mrb[0].mxu0
        %v2877 = vadd.f32 0.0, %v2876
        %v2878 = vpop.f32.mrb[0].mxu0
        %2879 = vmatprep.mubr.f32.mxu0 0.0
        %2880 = vmatmul.mubr.f32.gmra.mrb[0].mxu0 %v2689
        %v2881 = vpop.f32.mrb[0].mxu0
        %v2882 = vadd.f32 0.0, %v2881
        %v2883 = vpop.f32.mrb[0].mxu0
        %2884 = vmatprep.mubr.f32.mxu0 0.0
        %2885 = vmatmul.mubr.f32.gmra.mrb[0].mxu0 %v2692
        %v2886 = vpop.f32.mrb[0].mxu0
        %v2887 = vadd.f32 0.0, %v2886
        %v2888 = vpop.f32.mrb[0].mxu0
        %2889 = vmatprep.mubr.f32.mxu0 0.0
        %2890 = vmatmul.mubr.f32.gmra.mrb[0].mxu0 %v2695
        %v2891 = vpop.f32.mrb[0].mxu0
        %v2892 = vadd.f32 0.0, %v2891
        %v2893 = vpop.f32.mrb[0].mxu0
        %2894 = vmatprep.mubr.f32.mxu0 0.0
        %2895 = vmatmul.mubr.f32.gmra.mrb[0].mxu0 %v2698
        %v2896 = vpop.f32.mrb[0].mxu0
        %v2897 = vadd.f32 0.0, %v2896
        %v2898 = vpop.f32.mrb[0].mxu0
        %2899 = vmatprep.mubr.f32.mxu0 0.0
        %2900 = vmatmul.mubr.f32.gmra.mrb[0].mxu0 %v2701
        %v2901 = vpop.f32.mrb[0].mxu0
        %v2902 = vadd.f32 0.0, %v2901
        %v2903 = vpop.f32.mrb[0].mxu0
        %2904 = vmatprep.mubr.f32.mxu0 0.0
        %2905 = vmatmul.mubr.f32.gmra.mrb[0].mxu0 %v2704
        %v2906 = vpop.f32.mrb[0].mxu0
        %v2907 = vadd.f32 0.0, %v2906
        %v2908 = vpop.f32.mrb[0].mxu0
        %2909 = vmatprep.mubr.f32.mxu0 0.0
        %2910 = vmatmul.mubr.f32.gmra.mrb[0].mxu0 %v2707
        %v2911 = vpop.f32.mrb[0].mxu0
        %v2912 = vadd.f32 0.0, %v2911
        %v2913 = vpop.f32.mrb[0].mxu0
        %2914 = vmatprep.mubr.f32.mxu0 0.0
        %2915 = vmatmul.mubr.f32.gmra.mrb[0].mxu0 %v2710
        %v2916 = vpop.f32.mrb[0].mxu0
        %v2917 = vadd.f32 0.0, %v2916
        %v2918 = vpop.f32.mrb[0].mxu0
        %2919 = vmatprep.mubr.f32.mxu0 0.0
        %2920 = vmatmul.mubr.f32.gmra.mrb[0].mxu0 %v2713
        %v2921 = vpop.f32.mrb[0].mxu0
        %v2922 = vadd.f32 0.0, %v2921
        %v2923 = vpop.f32.mrb[0].mxu0
        %2924 = vmatprep.mubr.f32.mxu0 0.0
        %2925 = vmatmul.mubr.f32.gmra.mrb[0].mxu0 %v2716
        %v2926 = vpop.f32.mrb[0].mxu0
        %v2927 = vadd.f32 0.0, %v2926
        %v2928 = vpop.f32.mrb[0].mxu0
        %2929 = vmatprep.mubr.f32.mxu0 0.0
        %2930 = vmatmul.mubr.f32.gmra.mrb[0].mxu0 %v2719
        %v2931 = vpop.f32.mrb[0].mxu0
        %v2932 = vadd.f32 0.0, %v2931
        %v2933 = vpop.f32.mrb[0].mxu0
        %2934 = vmatprep.mubr.f32.mxu0 0.0
        %2935 = vmatmul.mubr.f32.gmra.mrb[0].mxu0 %v2722
        %v2936 = vpop.f32.mrb[0].mxu0
        %v2937 = vadd.f32 0.0, %v2936
        %v2938 = vpop.f32.mrb[0].mxu0
        %2939 = vmatprep.mubr.f32.mxu0 0.0
        %2940 = vmatmul.mubr.f32.gmra.mrb[0].mxu0 %v2725
        %v2941 = vpop.f32.mrb[0].mxu0
        %v2942 = vadd.f32 0.0, %v2941
        %v2943 = vpop.f32.mrb[0].mxu0
        %2944 = vmatprep.mubr.f32.mxu0 0.0
        %2945 = vmatmul.mubr.f32.gmra.mrb[0].mxu0 %v2728
        %v2946 = vpop.f32.mrb[0].mxu0
        %v2947 = vadd.f32 0.0, %v2946
        %v2948 = vpop.f32.mrb[0].mxu0
        %2949 = vmatprep.mubr.f32.mxu0 0.0
        %2950 = vmatmul.mubr.f32.gmra.mrb[0].mxu0 %v2731
        %v2951 = vpop.f32.mrb[0].mxu0
        %v2952 = vadd.f32 0.0, %v2951
        %v2953 = vpop.f32.mrb[0].mxu0
        %2954 = vmatprep.mubr.f32.mxu0 0.0
        %2955 = vmatmul.mubr.f32.gmra.mrb[0].mxu0 %v2734
        %v2956 = vpop.f32.mrb[0].mxu0
        %v2957 = vadd.f32 0.0, %v2956
        %v2958 = vpop.f32.mrb[0].mxu0
        %2959 = vmatprep.mubr.f32.mxu0 0.0
        %2960 = vmatmul.mubr.f32.gmra.mrb[0].mxu0 %v2737
        %v2961 = vpop.f32.mrb[0].mxu0
        %v2962 = vadd.f32 0.0, %v2961
        %v2963 = vpop.f32.mrb[0].mxu0
        %2964 = vmatprep.mubr.f32.mxu0 0.0
        %2965 = vmatmul.mubr.f32.gmra.mrb[0].mxu0 %v2740
        %v2966 = vpop.f32.mrb[0].mxu0
        %v2967 = vadd.f32 0.0, %v2966
        %v2968 = vpop.f32.mrb[0].mxu0
        %2969 = vdwg.mxu0
        %v2970 = vadd.f32 %v2580, %v2812
        %v2971 = vadd.f32 %v2581, %v2817
        %v2972 = vadd.f32 %v2582, %v2822
        %v2973 = vadd.f32 %v2583, %v2827
        %v2974 = vadd.f32 %v2584, %v2832
        %v2975 = vadd.f32 %v2585, %v2837
        %v2976 = vadd.f32 %v2586, %v2842
        %v2977 = vadd.f32 %v2587, %v2847
        %v2978 = vadd.f32 %v2588, %v2852
        %v2979 = vadd.f32 %v2589, %v2857
        %v2980 = vadd.f32 %v2590, %v2862
        %v2981 = vadd.f32 %v2591, %v2867
        %v2982 = vadd.f32 %v2592, %v2872
        %v2983 = vadd.f32 %v2593, %v2877
        %v2984 = vadd.f32 %v2594, %v2882
        %v2985 = vadd.f32 %v2595, %v2887
        %v2986 = vadd.f32 %v2596, %v2892
        %v2987 = vadd.f32 %v2597, %v2897
        %v2988 = vadd.f32 %v2598, %v2902
        %v2989 = vadd.f32 %v2599, %v2907
        %v2990 = vadd.f32 %v2600, %v2912
        %v2991 = vadd.f32 %v2601, %v2917
        %v2992 = vadd.f32 %v2602, %v2922
        %v2993 = vadd.f32 %v2603, %v2927
        %v2994 = vadd.f32 %v2604, %v2932
        %v2995 = vadd.f32 %v2605, %v2937
        %v2996 = vadd.f32 %v2606, %v2942
        %v2997 = vadd.f32 %v2607, %v2947
        %v2998 = vadd.f32 %v2608, %v2952
        %v2999 = vadd.f32 %v2609, %v2957
        %v3000 = vadd.f32 %v2610, %v2962
        %v3001 = vadd.f32 %v2611, %v2967
        %v3002 = vld [vmem:[#allocation2 + $0x25] sm:$0xff]
        %v3003 = vld [vmem:[#allocation2 + $0x2d] sm:$0xff]
        %v3004 = vld [vmem:[#allocation2 + $0x35] sm:$0xff]
        %v3005 = vld [vmem:[#allocation2 + $0x3d] sm:$0xff]
        %v3006 = vld [vmem:[#allocation2 + $0x45] sm:$0xff]
        %v3007 = vld [vmem:[#allocation2 + $0x4d] sm:$0xff]
        %v3008 = vld [vmem:[#allocation2 + $0x55] sm:$0xff]
        %v3009 = vld [vmem:[#allocation2 + $0x5d] sm:$0xff]
        %v3010 = vld [vmem:[#allocation2 + $0x65] sm:$0xff]
        %v3011 = vld [vmem:[#allocation2 + $0x6d] sm:$0xff]
        %v3012 = vld [vmem:[#allocation2 + $0x75] sm:$0xff]
        %v3013 = vld [vmem:[#allocation2 + $0x7d] sm:$0xff]
        %v3014 = vld [vmem:[#allocation2 + $0x85] sm:$0xff]
        %v3015 = vld [vmem:[#allocation2 + $0x8d] sm:$0xff]
        %v3016 = vld [vmem:[#allocation2 + $0x95] sm:$0xff]
        %v3017 = vld [vmem:[#allocation2 + $0x9d] sm:$0xff]
        %v3018 = vld [vmem:[#allocation2 + $0xa5] sm:$0xff]
        %v3019 = vld [vmem:[#allocation2 + $0xad] sm:$0xff]
        %v3020 = vld [vmem:[#allocation2 + $0xb5] sm:$0xff]
        %v3021 = vld [vmem:[#allocation2 + $0xbd] sm:$0xff]
        %v3022 = vld [vmem:[#allocation2 + $0xc5] sm:$0xff]
        %v3023 = vld [vmem:[#allocation2 + $0xcd] sm:$0xff]
        %v3024 = vld [vmem:[#allocation2 + $0xd5] sm:$0xff]
        %v3025 = vld [vmem:[#allocation2 + $0xdd] sm:$0xff]
        %v3026 = vld [vmem:[#allocation2 + $0xe5] sm:$0xff]
        %v3027 = vld [vmem:[#allocation2 + $0xed] sm:$0xff]
        %v3028 = vld [vmem:[#allocation2 + $0xf5] sm:$0xff]
        %v3029 = vld [vmem:[#allocation2 + $0xfd] sm:$0xff]
        %v3030 = vld [vmem:[#allocation2 + $0x105] sm:$0xff]
        %v3031 = vld [vmem:[#allocation2 + $0x10d] sm:$0xff]
        %v3032 = vld [vmem:[#allocation2 + $0x115] sm:$0xff]
        %v3033 = vld [vmem:[#allocation2 + $0x11d] sm:$0xff]
        %s3034 = scalar_lea.vmem %s2, 28
        %v3035 = vld [vmem:[%s3034] sm:$0xf]
        %v3037 = vsel %vm287, %v3002, 0
        %v3040 = vsel %vm287, %v3003, 0
        %v3043 = vsel %vm287, %v3004, 0
        %v3046 = vsel %vm287, %v3005, 0
        %v3049 = vsel %vm287, %v3006, 0
        %v3052 = vsel %vm287, %v3007, 0
        %v3055 = vsel %vm287, %v3008, 0
        %v3058 = vsel %vm287, %v3009, 0
        %v3061 = vsel %vm287, %v3010, 0
        %v3064 = vsel %vm287, %v3011, 0
        %v3067 = vsel %vm287, %v3012, 0
        %v3070 = vsel %vm287, %v3013, 0
        %v3073 = vsel %vm287, %v3014, 0
        %v3076 = vsel %vm287, %v3015, 0
        %v3079 = vsel %vm287, %v3016, 0
        %v3082 = vsel %vm287, %v3017, 0
        %v3085 = vsel %vm287, %v3018, 0
        %v3088 = vsel %vm287, %v3019, 0
        %v3091 = vsel %vm287, %v3020, 0
        %v3094 = vsel %vm287, %v3021, 0
        %v3097 = vsel %vm287, %v3022, 0
        %v3100 = vsel %vm287, %v3023, 0
        %v3103 = vsel %vm287, %v3024, 0
        %v3106 = vsel %vm287, %v3025, 0
        %v3109 = vsel %vm287, %v3026, 0
        %v3112 = vsel %vm287, %v3027, 0
        %v3115 = vsel %vm287, %v3028, 0
        %v3118 = vsel %vm287, %v3029, 0
        %v3121 = vsel %vm287, %v3030, 0
        %v3124 = vsel %vm287, %v3031, 0
        %v3127 = vsel %vm287, %v3032, 0
        %v3130 = vsel %vm287, %v3033, 0
        %v3133 = vsel %vm499, %v3035, 0
        %3135 = vmatprep.subr.mxu0 0.0
        %3136 = vmatpush1.msra.mxu0 %v3133
        %3137 = vmatprep.subr.mxu0 0.0
        %3138 = vmatpush1.msra.mxu0 0.0
        %3139 = vmatprep.subr.mxu0 0.0
        %3140 = vmatpush1.msra.mxu0 0.0
        %3141 = vmatprep.subr.mxu0 0.0
        %3142 = vmatpush1.msra.mxu0 0.0
        %3143 = vmatprep.subr.mxu0 0.0
        %3144 = vmatpush1.msra.mxu0 0.0
        %3145 = vmatprep.subr.mxu0 0.0
        %3146 = vmatpush1.msra.mxu0 0.0
        %3147 = vmatprep.subr.mxu0 0.0
        %3148 = vmatpush1.msra.mxu0 0.0
        %3149 = vmatprep.subr.mxu0 0.0
        %3150 = vmatpush1.msra.mxu0 0.0
        %3151 = vmatprep.subr.mxu0 0.0
        %3152 = vmatpush1.msra.mxu0 0.0
        %3153 = vmatprep.subr.mxu0 0.0
        %3154 = vmatpush1.msra.mxu0 0.0
        %3155 = vmatprep.subr.mxu0 0.0
        %3156 = vmatpush1.msra.mxu0 0.0
        %3157 = vmatprep.subr.mxu0 0.0
        %3158 = vmatpush1.msra.mxu0 0.0
        %3159 = vmatprep.subr.mxu0 0.0
        %3160 = vmatpush1.msra.mxu0 0.0
        %3161 = vmatprep.subr.mxu0 0.0
        %3162 = vmatpush1.msra.mxu0 0.0
        %3163 = vmatprep.subr.mxu0 0.0
        %3164 = vmatpush1.msra.mxu0 0.0
        %3165 = vmatprep.subr.mxu0 0.0
        %3166 = vmatpush1.msra.mxu0 0.0
        %3167 = vmatprep.subr.mxu0 0.0
        %3168 = vmatpush1.msra.mxu0 0.0
        %3169 = vmatprep.subr.mxu0 0.0
        %3170 = vmatpush1.msra.mxu0 0.0
        %3171 = vmatprep.subr.mxu0 0.0
        %3172 = vmatpush1.msra.mxu0 0.0
        %3173 = vmatprep.subr.mxu0 0.0
        %3174 = vmatpush1.msra.mxu0 0.0
        %3175 = vmatprep.subr.mxu0 0.0
        %3176 = vmatpush1.msra.mxu0 0.0
        %3177 = vmatprep.subr.mxu0 0.0
        %3178 = vmatpush1.msra.mxu0 0.0
        %3179 = vmatprep.subr.mxu0 0.0
        %3180 = vmatpush1.msra.mxu0 0.0
        %3181 = vmatprep.subr.mxu0 0.0
        %3182 = vmatpush1.msra.mxu0 0.0
        %3183 = vmatprep.subr.mxu0 0.0
        %3184 = vmatpush1.msra.mxu0 0.0
        %3185 = vmatprep.subr.mxu0 0.0
        %3186 = vmatpush1.msra.mxu0 0.0
        %3187 = vmatprep.subr.mxu0 0.0
        %3188 = vmatpush1.msra.mxu0 0.0
        %3189 = vmatprep.subr.mxu0 0.0
        %3190 = vmatpush1.msra.mxu0 0.0
        %3191 = vmatprep.subr.mxu0 0.0
        %3192 = vmatpush1.msra.mxu0 0.0
        %3193 = vmatprep.subr.mxu0 0.0
        %3194 = vmatpush1.msra.mxu0 0.0
        %3195 = vmatprep.subr.mxu0 0.0
        %3196 = vmatpush1.msra.mxu0 0.0
        %3197 = vmatprep.subr.mxu0 0.0
        %3198 = vmatpush1.msra.mxu0 0.0
        %3199 = vmatprep.mubr.f32.mxu0 0.0
        %3200 = vmatmul.mubr.f32.gmra.mrb[0].mxu0 %v3037
        %v3201 = vpop.f32.mrb[0].mxu0
        %v3202 = vadd.f32 0.0, %v3201
        %v3203 = vpop.f32.mrb[0].mxu0
        %3204 = vmatprep.mubr.f32.mxu0 0.0
        %3205 = vmatmul.mubr.f32.gmra.mrb[0].mxu0 %v3040
        %v3206 = vpop.f32.mrb[0].mxu0
        %v3207 = vadd.f32 0.0, %v3206
        %v3208 = vpop.f32.mrb[0].mxu0
        %3209 = vmatprep.mubr.f32.mxu0 0.0
        %3210 = vmatmul.mubr.f32.gmra.mrb[0].mxu0 %v3043
        %v3211 = vpop.f32.mrb[0].mxu0
        %v3212 = vadd.f32 0.0, %v3211
        %v3213 = vpop.f32.mrb[0].mxu0
        %3214 = vmatprep.mubr.f32.mxu0 0.0
        %3215 = vmatmul.mubr.f32.gmra.mrb[0].mxu0 %v3046
        %v3216 = vpop.f32.mrb[0].mxu0
        %v3217 = vadd.f32 0.0, %v3216
        %v3218 = vpop.f32.mrb[0].mxu0
        %3219 = vmatprep.mubr.f32.mxu0 0.0
        %3220 = vmatmul.mubr.f32.gmra.mrb[0].mxu0 %v3049
        %v3221 = vpop.f32.mrb[0].mxu0
        %v3222 = vadd.f32 0.0, %v3221
        %v3223 = vpop.f32.mrb[0].mxu0
        %3224 = vmatprep.mubr.f32.mxu0 0.0
        %3225 = vmatmul.mubr.f32.gmra.mrb[0].mxu0 %v3052
        %v3226 = vpop.f32.mrb[0].mxu0
        %v3227 = vadd.f32 0.0, %v3226
        %v3228 = vpop.f32.mrb[0].mxu0
        %3229 = vmatprep.mubr.f32.mxu0 0.0
        %3230 = vmatmul.mubr.f32.gmra.mrb[0].mxu0 %v3055
        %v3231 = vpop.f32.mrb[0].mxu0
        %v3232 = vadd.f32 0.0, %v3231
        %v3233 = vpop.f32.mrb[0].mxu0
        %3234 = vmatprep.mubr.f32.mxu0 0.0
        %3235 = vmatmul.mubr.f32.gmra.mrb[0].mxu0 %v3058
        %v3236 = vpop.f32.mrb[0].mxu0
        %v3237 = vadd.f32 0.0, %v3236
        %v3238 = vpop.f32.mrb[0].mxu0
        %3239 = vmatprep.mubr.f32.mxu0 0.0
        %3240 = vmatmul.mubr.f32.gmra.mrb[0].mxu0 %v3061
        %v3241 = vpop.f32.mrb[0].mxu0
        %v3242 = vadd.f32 0.0, %v3241
        %v3243 = vpop.f32.mrb[0].mxu0
        %3244 = vmatprep.mubr.f32.mxu0 0.0
        %3245 = vmatmul.mubr.f32.gmra.mrb[0].mxu0 %v3064
        %v3246 = vpop.f32.mrb[0].mxu0
        %v3247 = vadd.f32 0.0, %v3246
        %v3248 = vpop.f32.mrb[0].mxu0
        %3249 = vmatprep.mubr.f32.mxu0 0.0
        %3250 = vmatmul.mubr.f32.gmra.mrb[0].mxu0 %v3067
        %v3251 = vpop.f32.mrb[0].mxu0
        %v3252 = vadd.f32 0.0, %v3251
        %v3253 = vpop.f32.mrb[0].mxu0
        %3254 = vmatprep.mubr.f32.mxu0 0.0
        %3255 = vmatmul.mubr.f32.gmra.mrb[0].mxu0 %v3070
        %v3256 = vpop.f32.mrb[0].mxu0
        %v3257 = vadd.f32 0.0, %v3256
        %v3258 = vpop.f32.mrb[0].mxu0
        %3259 = vmatprep.mubr.f32.mxu0 0.0
        %3260 = vmatmul.mubr.f32.gmra.mrb[0].mxu0 %v3073
        %v3261 = vpop.f32.mrb[0].mxu0
        %v3262 = vadd.f32 0.0, %v3261
        %v3263 = vpop.f32.mrb[0].mxu0
        %3264 = vmatprep.mubr.f32.mxu0 0.0
        %3265 = vmatmul.mubr.f32.gmra.mrb[0].mxu0 %v3076
        %v3266 = vpop.f32.mrb[0].mxu0
        %v3267 = vadd.f32 0.0, %v3266
        %v3268 = vpop.f32.mrb[0].mxu0
        %3269 = vmatprep.mubr.f32.mxu0 0.0
        %3270 = vmatmul.mubr.f32.gmra.mrb[0].mxu0 %v3079
        %v3271 = vpop.f32.mrb[0].mxu0
        %v3272 = vadd.f32 0.0, %v3271
        %v3273 = vpop.f32.mrb[0].mxu0
        %3274 = vmatprep.mubr.f32.mxu0 0.0
        %3275 = vmatmul.mubr.f32.gmra.mrb[0].mxu0 %v3082
        %v3276 = vpop.f32.mrb[0].mxu0
        %v3277 = vadd.f32 0.0, %v3276
        %v3278 = vpop.f32.mrb[0].mxu0
        %3279 = vmatprep.mubr.f32.mxu0 0.0
        %3280 = vmatmul.mubr.f32.gmra.mrb[0].mxu0 %v3085
        %v3281 = vpop.f32.mrb[0].mxu0
        %v3282 = vadd.f32 0.0, %v3281
        %v3283 = vpop.f32.mrb[0].mxu0
        %3284 = vmatprep.mubr.f32.mxu0 0.0
        %3285 = vmatmul.mubr.f32.gmra.mrb[0].mxu0 %v3088
        %v3286 = vpop.f32.mrb[0].mxu0
        %v3287 = vadd.f32 0.0, %v3286
        %v3288 = vpop.f32.mrb[0].mxu0
        %3289 = vmatprep.mubr.f32.mxu0 0.0
        %3290 = vmatmul.mubr.f32.gmra.mrb[0].mxu0 %v3091
        %v3291 = vpop.f32.mrb[0].mxu0
        %v3292 = vadd.f32 0.0, %v3291
        %v3293 = vpop.f32.mrb[0].mxu0
        %3294 = vmatprep.mubr.f32.mxu0 0.0
        %3295 = vmatmul.mubr.f32.gmra.mrb[0].mxu0 %v3094
        %v3296 = vpop.f32.mrb[0].mxu0
        %v3297 = vadd.f32 0.0, %v3296
        %v3298 = vpop.f32.mrb[0].mxu0
        %3299 = vmatprep.mubr.f32.mxu0 0.0
        %3300 = vmatmul.mubr.f32.gmra.mrb[0].mxu0 %v3097
        %v3301 = vpop.f32.mrb[0].mxu0
        %v3302 = vadd.f32 0.0, %v3301
        %v3303 = vpop.f32.mrb[0].mxu0
        %3304 = vmatprep.mubr.f32.mxu0 0.0
        %3305 = vmatmul.mubr.f32.gmra.mrb[0].mxu0 %v3100
        %v3306 = vpop.f32.mrb[0].mxu0
        %v3307 = vadd.f32 0.0, %v3306
        %v3308 = vpop.f32.mrb[0].mxu0
        %3309 = vmatprep.mubr.f32.mxu0 0.0
        %3310 = vmatmul.mubr.f32.gmra.mrb[0].mxu0 %v3103
        %v3311 = vpop.f32.mrb[0].mxu0
        %v3312 = vadd.f32 0.0, %v3311
        %v3313 = vpop.f32.mrb[0].mxu0
        %3314 = vmatprep.mubr.f32.mxu0 0.0
        %3315 = vmatmul.mubr.f32.gmra.mrb[0].mxu0 %v3106
        %v3316 = vpop.f32.mrb[0].mxu0
        %v3317 = vadd.f32 0.0, %v3316
        %v3318 = vpop.f32.mrb[0].mxu0
        %3319 = vmatprep.mubr.f32.mxu0 0.0
        %3320 = vmatmul.mubr.f32.gmra.mrb[0].mxu0 %v3109
        %v3321 = vpop.f32.mrb[0].mxu0
        %v3322 = vadd.f32 0.0, %v3321
        %v3323 = vpop.f32.mrb[0].mxu0
        %3324 = vmatprep.mubr.f32.mxu0 0.0
        %3325 = vmatmul.mubr.f32.gmra.mrb[0].mxu0 %v3112
        %v3326 = vpop.f32.mrb[0].mxu0
        %v3327 = vadd.f32 0.0, %v3326
        %v3328 = vpop.f32.mrb[0].mxu0
        %3329 = vmatprep.mubr.f32.mxu0 0.0
        %3330 = vmatmul.mubr.f32.gmra.mrb[0].mxu0 %v3115
        %v3331 = vpop.f32.mrb[0].mxu0
        %v3332 = vadd.f32 0.0, %v3331
        %v3333 = vpop.f32.mrb[0].mxu0
        %3334 = vmatprep.mubr.f32.mxu0 0.0
        %3335 = vmatmul.mubr.f32.gmra.mrb[0].mxu0 %v3118
        %v3336 = vpop.f32.mrb[0].mxu0
        %v3337 = vadd.f32 0.0, %v3336
        %v3338 = vpop.f32.mrb[0].mxu0
        %3339 = vmatprep.mubr.f32.mxu0 0.0
        %3340 = vmatmul.mubr.f32.gmra.mrb[0].mxu0 %v3121
        %v3341 = vpop.f32.mrb[0].mxu0
        %v3342 = vadd.f32 0.0, %v3341
        %v3343 = vpop.f32.mrb[0].mxu0
        %3344 = vmatprep.mubr.f32.mxu0 0.0
        %3345 = vmatmul.mubr.f32.gmra.mrb[0].mxu0 %v3124
        %v3346 = vpop.f32.mrb[0].mxu0
        %v3347 = vadd.f32 0.0, %v3346
        %v3348 = vpop.f32.mrb[0].mxu0
        %3349 = vmatprep.mubr.f32.mxu0 0.0
        %3350 = vmatmul.mubr.f32.gmra.mrb[0].mxu0 %v3127
        %v3351 = vpop.f32.mrb[0].mxu0
        %v3352 = vadd.f32 0.0, %v3351
        %v3353 = vpop.f32.mrb[0].mxu0
        %3354 = vmatprep.mubr.f32.mxu0 0.0
        %3355 = vmatmul.mubr.f32.gmra.mrb[0].mxu0 %v3130
        %v3356 = vpop.f32.mrb[0].mxu0
        %v3357 = vadd.f32 0.0, %v3356
        %v3358 = vpop.f32.mrb[0].mxu0
        %3359 = vdwg.mxu0
        %v3360 = vadd.f32 %v2970, %v3202
        %v3361 = vadd.f32 %v2971, %v3207
        %v3362 = vadd.f32 %v2972, %v3212
        %v3363 = vadd.f32 %v2973, %v3217
        %v3364 = vadd.f32 %v2974, %v3222
        %v3365 = vadd.f32 %v2975, %v3227
        %v3366 = vadd.f32 %v2976, %v3232
        %v3367 = vadd.f32 %v2977, %v3237
        %v3368 = vadd.f32 %v2978, %v3242
        %v3369 = vadd.f32 %v2979, %v3247
        %v3370 = vadd.f32 %v2980, %v3252
        %v3371 = vadd.f32 %v2981, %v3257
        %v3372 = vadd.f32 %v2982, %v3262
        %v3373 = vadd.f32 %v2983, %v3267
        %v3374 = vadd.f32 %v2984, %v3272
        %v3375 = vadd.f32 %v2985, %v3277
        %v3376 = vadd.f32 %v2986, %v3282
        %v3377 = vadd.f32 %v2987, %v3287
        %v3378 = vadd.f32 %v2988, %v3292
        %v3379 = vadd.f32 %v2989, %v3297
        %v3380 = vadd.f32 %v2990, %v3302
        %v3381 = vadd.f32 %v2991, %v3307
        %v3382 = vadd.f32 %v2992, %v3312
        %v3383 = vadd.f32 %v2993, %v3317
        %v3384 = vadd.f32 %v2994, %v3322
        %v3385 = vadd.f32 %v2995, %v3327
        %v3386 = vadd.f32 %v2996, %v3332
        %v3387 = vadd.f32 %v2997, %v3337
        %v3388 = vadd.f32 %v2998, %v3342
        %v3389 = vadd.f32 %v2999, %v3347
        %v3390 = vadd.f32 %v3000, %v3352
        %v3391 = vadd.f32 %v3001, %v3357
        %v3392 = vld [vmem:[#allocation2 + $0x26] sm:$0xff]
        %v3393 = vld [vmem:[#allocation2 + $0x2e] sm:$0xff]
        %v3394 = vld [vmem:[#allocation2 + $0x36] sm:$0xff]
        %v3395 = vld [vmem:[#allocation2 + $0x3e] sm:$0xff]
        %v3396 = vld [vmem:[#allocation2 + $0x46] sm:$0xff]
        %v3397 = vld [vmem:[#allocation2 + $0x4e] sm:$0xff]
        %v3398 = vld [vmem:[#allocation2 + $0x56] sm:$0xff]
        %v3399 = vld [vmem:[#allocation2 + $0x5e] sm:$0xff]
        %v3400 = vld [vmem:[#allocation2 + $0x66] sm:$0xff]
        %v3401 = vld [vmem:[#allocation2 + $0x6e] sm:$0xff]
        %v3402 = vld [vmem:[#allocation2 + $0x76] sm:$0xff]
        %v3403 = vld [vmem:[#allocation2 + $0x7e] sm:$0xff]
        %v3404 = vld [vmem:[#allocation2 + $0x86] sm:$0xff]
        %v3405 = vld [vmem:[#allocation2 + $0x8e] sm:$0xff]
        %v3406 = vld [vmem:[#allocation2 + $0x96] sm:$0xff]
        %v3407 = vld [vmem:[#allocation2 + $0x9e] sm:$0xff]
        %v3408 = vld [vmem:[#allocation2 + $0xa6] sm:$0xff]
        %v3409 = vld [vmem:[#allocation2 + $0xae] sm:$0xff]
        %v3410 = vld [vmem:[#allocation2 + $0xb6] sm:$0xff]
        %v3411 = vld [vmem:[#allocation2 + $0xbe] sm:$0xff]
        %v3412 = vld [vmem:[#allocation2 + $0xc6] sm:$0xff]
        %v3413 = vld [vmem:[#allocation2 + $0xce] sm:$0xff]
        %v3414 = vld [vmem:[#allocation2 + $0xd6] sm:$0xff]
        %v3415 = vld [vmem:[#allocation2 + $0xde] sm:$0xff]
        %v3416 = vld [vmem:[#allocation2 + $0xe6] sm:$0xff]
        %v3417 = vld [vmem:[#allocation2 + $0xee] sm:$0xff]
        %v3418 = vld [vmem:[#allocation2 + $0xf6] sm:$0xff]
        %v3419 = vld [vmem:[#allocation2 + $0xfe] sm:$0xff]
        %v3420 = vld [vmem:[#allocation2 + $0x106] sm:$0xff]
        %v3421 = vld [vmem:[#allocation2 + $0x10e] sm:$0xff]
        %v3422 = vld [vmem:[#allocation2 + $0x116] sm:$0xff]
        %v3423 = vld [vmem:[#allocation2 + $0x11e] sm:$0xff]
        %s3424 = scalar_lea.vmem %s2, 32
        %v3425 = vld [vmem:[%s3424] sm:$0xf]
        %v3427 = vsel %vm287, %v3392, 0
        %v3430 = vsel %vm287, %v3393, 0
        %v3433 = vsel %vm287, %v3394, 0
        %v3436 = vsel %vm287, %v3395, 0
        %v3439 = vsel %vm287, %v3396, 0
        %v3442 = vsel %vm287, %v3397, 0
        %v3445 = vsel %vm287, %v3398, 0
        %v3448 = vsel %vm287, %v3399, 0
        %v3451 = vsel %vm287, %v3400, 0
        %v3454 = vsel %vm287, %v3401, 0
        %v3457 = vsel %vm287, %v3402, 0
        %v3460 = vsel %vm287, %v3403, 0
        %v3463 = vsel %vm287, %v3404, 0
        %v3466 = vsel %vm287, %v3405, 0
        %v3469 = vsel %vm287, %v3406, 0
        %v3472 = vsel %vm287, %v3407, 0
        %v3475 = vsel %vm287, %v3408, 0
        %v3478 = vsel %vm287, %v3409, 0
        %v3481 = vsel %vm287, %v3410, 0
        %v3484 = vsel %vm287, %v3411, 0
        %v3487 = vsel %vm287, %v3412, 0
        %v3490 = vsel %vm287, %v3413, 0
        %v3493 = vsel %vm287, %v3414, 0
        %v3496 = vsel %vm287, %v3415, 0
        %v3499 = vsel %vm287, %v3416, 0
        %v3502 = vsel %vm287, %v3417, 0
        %v3505 = vsel %vm287, %v3418, 0
        %v3508 = vsel %vm287, %v3419, 0
        %v3511 = vsel %vm287, %v3420, 0
        %v3514 = vsel %vm287, %v3421, 0
        %v3517 = vsel %vm287, %v3422, 0
        %v3520 = vsel %vm287, %v3423, 0
        %v3523 = vsel %vm499, %v3425, 0
        %3525 = vmatprep.subr.mxu0 0.0
        %3526 = vmatpush1.msra.mxu0 %v3523
        %3527 = vmatprep.subr.mxu0 0.0
        %3528 = vmatpush1.msra.mxu0 0.0
        %3529 = vmatprep.subr.mxu0 0.0
        %3530 = vmatpush1.msra.mxu0 0.0
        %3531 = vmatprep.subr.mxu0 0.0
        %3532 = vmatpush1.msra.mxu0 0.0
        %3533 = vmatprep.subr.mxu0 0.0
        %3534 = vmatpush1.msra.mxu0 0.0
        %3535 = vmatprep.subr.mxu0 0.0
        %3536 = vmatpush1.msra.mxu0 0.0
        %3537 = vmatprep.subr.mxu0 0.0
        %3538 = vmatpush1.msra.mxu0 0.0
        %3539 = vmatprep.subr.mxu0 0.0
        %3540 = vmatpush1.msra.mxu0 0.0
        %3541 = vmatprep.subr.mxu0 0.0
        %3542 = vmatpush1.msra.mxu0 0.0
        %3543 = vmatprep.subr.mxu0 0.0
        %3544 = vmatpush1.msra.mxu0 0.0
        %3545 = vmatprep.subr.mxu0 0.0
        %3546 = vmatpush1.msra.mxu0 0.0
        %3547 = vmatprep.subr.mxu0 0.0
        %3548 = vmatpush1.msra.mxu0 0.0
        %3549 = vmatprep.subr.mxu0 0.0
        %3550 = vmatpush1.msra.mxu0 0.0
        %3551 = vmatprep.subr.mxu0 0.0
        %3552 = vmatpush1.msra.mxu0 0.0
        %3553 = vmatprep.subr.mxu0 0.0
        %3554 = vmatpush1.msra.mxu0 0.0
        %3555 = vmatprep.subr.mxu0 0.0
        %3556 = vmatpush1.msra.mxu0 0.0
        %3557 = vmatprep.subr.mxu0 0.0
        %3558 = vmatpush1.msra.mxu0 0.0
        %3559 = vmatprep.subr.mxu0 0.0
        %3560 = vmatpush1.msra.mxu0 0.0
        %3561 = vmatprep.subr.mxu0 0.0
        %3562 = vmatpush1.msra.mxu0 0.0
        %3563 = vmatprep.subr.mxu0 0.0
        %3564 = vmatpush1.msra.mxu0 0.0
        %3565 = vmatprep.subr.mxu0 0.0
        %3566 = vmatpush1.msra.mxu0 0.0
        %3567 = vmatprep.subr.mxu0 0.0
        %3568 = vmatpush1.msra.mxu0 0.0
        %3569 = vmatprep.subr.mxu0 0.0
        %3570 = vmatpush1.msra.mxu0 0.0
        %3571 = vmatprep.subr.mxu0 0.0
        %3572 = vmatpush1.msra.mxu0 0.0
        %3573 = vmatprep.subr.mxu0 0.0
        %3574 = vmatpush1.msra.mxu0 0.0
        %3575 = vmatprep.subr.mxu0 0.0
        %3576 = vmatpush1.msra.mxu0 0.0
        %3577 = vmatprep.subr.mxu0 0.0
        %3578 = vmatpush1.msra.mxu0 0.0
        %3579 = vmatprep.subr.mxu0 0.0
        %3580 = vmatpush1.msra.mxu0 0.0
        %3581 = vmatprep.subr.mxu0 0.0
        %3582 = vmatpush1.msra.mxu0 0.0
        %3583 = vmatprep.subr.mxu0 0.0
        %3584 = vmatpush1.msra.mxu0 0.0
        %3585 = vmatprep.subr.mxu0 0.0
        %3586 = vmatpush1.msra.mxu0 0.0
        %3587 = vmatprep.subr.mxu0 0.0
        %3588 = vmatpush1.msra.mxu0 0.0
        %3589 = vmatprep.mubr.f32.mxu0 0.0
        %3590 = vmatmul.mubr.f32.gmra.mrb[0].mxu0 %v3427
        %v3591 = vpop.f32.mrb[0].mxu0
        %v3592 = vadd.f32 0.0, %v3591
        %v3593 = vpop.f32.mrb[0].mxu0
        %3594 = vmatprep.mubr.f32.mxu0 0.0
        %3595 = vmatmul.mubr.f32.gmra.mrb[0].mxu0 %v3430
        %v3596 = vpop.f32.mrb[0].mxu0
        %v3597 = vadd.f32 0.0, %v3596
        %v3598 = vpop.f32.mrb[0].mxu0
        %3599 = vmatprep.mubr.f32.mxu0 0.0
        %3600 = vmatmul.mubr.f32.gmra.mrb[0].mxu0 %v3433
        %v3601 = vpop.f32.mrb[0].mxu0
        %v3602 = vadd.f32 0.0, %v3601
        %v3603 = vpop.f32.mrb[0].mxu0
        %3604 = vmatprep.mubr.f32.mxu0 0.0
        %3605 = vmatmul.mubr.f32.gmra.mrb[0].mxu0 %v3436
        %v3606 = vpop.f32.mrb[0].mxu0
        %v3607 = vadd.f32 0.0, %v3606
        %v3608 = vpop.f32.mrb[0].mxu0
        %3609 = vmatprep.mubr.f32.mxu0 0.0
        %3610 = vmatmul.mubr.f32.gmra.mrb[0].mxu0 %v3439
        %v3611 = vpop.f32.mrb[0].mxu0
        %v3612 = vadd.f32 0.0, %v3611
        %v3613 = vpop.f32.mrb[0].mxu0
        %3614 = vmatprep.mubr.f32.mxu0 0.0
        %3615 = vmatmul.mubr.f32.gmra.mrb[0].mxu0 %v3442
        %v3616 = vpop.f32.mrb[0].mxu0
        %v3617 = vadd.f32 0.0, %v3616
        %v3618 = vpop.f32.mrb[0].mxu0
        %3619 = vmatprep.mubr.f32.mxu0 0.0
        %3620 = vmatmul.mubr.f32.gmra.mrb[0].mxu0 %v3445
        %v3621 = vpop.f32.mrb[0].mxu0
        %v3622 = vadd.f32 0.0, %v3621
        %v3623 = vpop.f32.mrb[0].mxu0
        %3624 = vmatprep.mubr.f32.mxu0 0.0
        %3625 = vmatmul.mubr.f32.gmra.mrb[0].mxu0 %v3448
        %v3626 = vpop.f32.mrb[0].mxu0
        %v3627 = vadd.f32 0.0, %v3626
        %v3628 = vpop.f32.mrb[0].mxu0
        %3629 = vmatprep.mubr.f32.mxu0 0.0
        %3630 = vmatmul.mubr.f32.gmra.mrb[0].mxu0 %v3451
        %v3631 = vpop.f32.mrb[0].mxu0
        %v3632 = vadd.f32 0.0, %v3631
        %v3633 = vpop.f32.mrb[0].mxu0
        %3634 = vmatprep.mubr.f32.mxu0 0.0
        %3635 = vmatmul.mubr.f32.gmra.mrb[0].mxu0 %v3454
        %v3636 = vpop.f32.mrb[0].mxu0
        %v3637 = vadd.f32 0.0, %v3636
        %v3638 = vpop.f32.mrb[0].mxu0
        %3639 = vmatprep.mubr.f32.mxu0 0.0
        %3640 = vmatmul.mubr.f32.gmra.mrb[0].mxu0 %v3457
        %v3641 = vpop.f32.mrb[0].mxu0
        %v3642 = vadd.f32 0.0, %v3641
        %v3643 = vpop.f32.mrb[0].mxu0
        %3644 = vmatprep.mubr.f32.mxu0 0.0
        %3645 = vmatmul.mubr.f32.gmra.mrb[0].mxu0 %v3460
        %v3646 = vpop.f32.mrb[0].mxu0
        %v3647 = vadd.f32 0.0, %v3646
        %v3648 = vpop.f32.mrb[0].mxu0
        %3649 = vmatprep.mubr.f32.mxu0 0.0
        %3650 = vmatmul.mubr.f32.gmra.mrb[0].mxu0 %v3463
        %v3651 = vpop.f32.mrb[0].mxu0
        %v3652 = vadd.f32 0.0, %v3651
        %v3653 = vpop.f32.mrb[0].mxu0
        %3654 = vmatprep.mubr.f32.mxu0 0.0
        %3655 = vmatmul.mubr.f32.gmra.mrb[0].mxu0 %v3466
        %v3656 = vpop.f32.mrb[0].mxu0
        %v3657 = vadd.f32 0.0, %v3656
        %v3658 = vpop.f32.mrb[0].mxu0
        %3659 = vmatprep.mubr.f32.mxu0 0.0
        %3660 = vmatmul.mubr.f32.gmra.mrb[0].mxu0 %v3469
        %v3661 = vpop.f32.mrb[0].mxu0
        %v3662 = vadd.f32 0.0, %v3661
        %v3663 = vpop.f32.mrb[0].mxu0
        %3664 = vmatprep.mubr.f32.mxu0 0.0
        %3665 = vmatmul.mubr.f32.gmra.mrb[0].mxu0 %v3472
        %v3666 = vpop.f32.mrb[0].mxu0
        %v3667 = vadd.f32 0.0, %v3666
        %v3668 = vpop.f32.mrb[0].mxu0
        %3669 = vmatprep.mubr.f32.mxu0 0.0
        %3670 = vmatmul.mubr.f32.gmra.mrb[0].mxu0 %v3475
        %v3671 = vpop.f32.mrb[0].mxu0
        %v3672 = vadd.f32 0.0, %v3671
        %v3673 = vpop.f32.mrb[0].mxu0
        %3674 = vmatprep.mubr.f32.mxu0 0.0
        %3675 = vmatmul.mubr.f32.gmra.mrb[0].mxu0 %v3478
        %v3676 = vpop.f32.mrb[0].mxu0
        %v3677 = vadd.f32 0.0, %v3676
        %v3678 = vpop.f32.mrb[0].mxu0
        %3679 = vmatprep.mubr.f32.mxu0 0.0
        %3680 = vmatmul.mubr.f32.gmra.mrb[0].mxu0 %v3481
        %v3681 = vpop.f32.mrb[0].mxu0
        %v3682 = vadd.f32 0.0, %v3681
        %v3683 = vpop.f32.mrb[0].mxu0
        %3684 = vmatprep.mubr.f32.mxu0 0.0
        %3685 = vmatmul.mubr.f32.gmra.mrb[0].mxu0 %v3484
        %v3686 = vpop.f32.mrb[0].mxu0
        %v3687 = vadd.f32 0.0, %v3686
        %v3688 = vpop.f32.mrb[0].mxu0
        %3689 = vmatprep.mubr.f32.mxu0 0.0
        %3690 = vmatmul.mubr.f32.gmra.mrb[0].mxu0 %v3487
        %v3691 = vpop.f32.mrb[0].mxu0
        %v3692 = vadd.f32 0.0, %v3691
        %v3693 = vpop.f32.mrb[0].mxu0
        %3694 = vmatprep.mubr.f32.mxu0 0.0
        %3695 = vmatmul.mubr.f32.gmra.mrb[0].mxu0 %v3490
        %v3696 = vpop.f32.mrb[0].mxu0
        %v3697 = vadd.f32 0.0, %v3696
        %v3698 = vpop.f32.mrb[0].mxu0
        %3699 = vmatprep.mubr.f32.mxu0 0.0
        %3700 = vmatmul.mubr.f32.gmra.mrb[0].mxu0 %v3493
        %v3701 = vpop.f32.mrb[0].mxu0
        %v3702 = vadd.f32 0.0, %v3701
        %v3703 = vpop.f32.mrb[0].mxu0
        %3704 = vmatprep.mubr.f32.mxu0 0.0
        %3705 = vmatmul.mubr.f32.gmra.mrb[0].mxu0 %v3496
        %v3706 = vpop.f32.mrb[0].mxu0
        %v3707 = vadd.f32 0.0, %v3706
        %v3708 = vpop.f32.mrb[0].mxu0
        %3709 = vmatprep.mubr.f32.mxu0 0.0
        %3710 = vmatmul.mubr.f32.gmra.mrb[0].mxu0 %v3499
        %v3711 = vpop.f32.mrb[0].mxu0
        %v3712 = vadd.f32 0.0, %v3711
        %v3713 = vpop.f32.mrb[0].mxu0
        %3714 = vmatprep.mubr.f32.mxu0 0.0
        %3715 = vmatmul.mubr.f32.gmra.mrb[0].mxu0 %v3502
        %v3716 = vpop.f32.mrb[0].mxu0
        %v3717 = vadd.f32 0.0, %v3716
        %v3718 = vpop.f32.mrb[0].mxu0
        %3719 = vmatprep.mubr.f32.mxu0 0.0
        %3720 = vmatmul.mubr.f32.gmra.mrb[0].mxu0 %v3505
        %v3721 = vpop.f32.mrb[0].mxu0
        %v3722 = vadd.f32 0.0, %v3721
        %v3723 = vpop.f32.mrb[0].mxu0
        %3724 = vmatprep.mubr.f32.mxu0 0.0
        %3725 = vmatmul.mubr.f32.gmra.mrb[0].mxu0 %v3508
        %v3726 = vpop.f32.mrb[0].mxu0
        %v3727 = vadd.f32 0.0, %v3726
        %v3728 = vpop.f32.mrb[0].mxu0
        %3729 = vmatprep.mubr.f32.mxu0 0.0
        %3730 = vmatmul.mubr.f32.gmra.mrb[0].mxu0 %v3511
        %v3731 = vpop.f32.mrb[0].mxu0
        %v3732 = vadd.f32 0.0, %v3731
        %v3733 = vpop.f32.mrb[0].mxu0
        %3734 = vmatprep.mubr.f32.mxu0 0.0
        %3735 = vmatmul.mubr.f32.gmra.mrb[0].mxu0 %v3514
        %v3736 = vpop.f32.mrb[0].mxu0
        %v3737 = vadd.f32 0.0, %v3736
        %v3738 = vpop.f32.mrb[0].mxu0
        %3739 = vmatprep.mubr.f32.mxu0 0.0
        %3740 = vmatmul.mubr.f32.gmra.mrb[0].mxu0 %v3517
        %v3741 = vpop.f32.mrb[0].mxu0
        %v3742 = vadd.f32 0.0, %v3741
        %v3743 = vpop.f32.mrb[0].mxu0
        %3744 = vmatprep.mubr.f32.mxu0 0.0
        %3745 = vmatmul.mubr.f32.gmra.mrb[0].mxu0 %v3520
        %v3746 = vpop.f32.mrb[0].mxu0
        %v3747 = vadd.f32 0.0, %v3746
        %v3748 = vpop.f32.mrb[0].mxu0
        %3749 = vdwg.mxu0
        %v3750 = vadd.f32 %v3360, %v3592
        %v3751 = vadd.f32 %v3361, %v3597
        %v3752 = vadd.f32 %v3362, %v3602
        %v3753 = vadd.f32 %v3363, %v3607
        %v3754 = vadd.f32 %v3364, %v3612
        %v3755 = vadd.f32 %v3365, %v3617
        %v3756 = vadd.f32 %v3366, %v3622
        %v3757 = vadd.f32 %v3367, %v3627
        %v3758 = vadd.f32 %v3368, %v3632
        %v3759 = vadd.f32 %v3369, %v3637
        %v3760 = vadd.f32 %v3370, %v3642
        %v3761 = vadd.f32 %v3371, %v3647
        %v3762 = vadd.f32 %v3372, %v3652
        %v3763 = vadd.f32 %v3373, %v3657
        %v3764 = vadd.f32 %v3374, %v3662
        %v3765 = vadd.f32 %v3375, %v3667
        %v3766 = vadd.f32 %v3376, %v3672
        %v3767 = vadd.f32 %v3377, %v3677
        %v3768 = vadd.f32 %v3378, %v3682
        %v3769 = vadd.f32 %v3379, %v3687
        %v3770 = vadd.f32 %v3380, %v3692
        %v3771 = vadd.f32 %v3381, %v3697
        %v3772 = vadd.f32 %v3382, %v3702
        %v3773 = vadd.f32 %v3383, %v3707
        %v3774 = vadd.f32 %v3384, %v3712
        %v3775 = vadd.f32 %v3385, %v3717
        %v3776 = vadd.f32 %v3386, %v3722
        %v3777 = vadd.f32 %v3387, %v3727
        %v3778 = vadd.f32 %v3388, %v3732
        %v3779 = vadd.f32 %v3389, %v3737
        %v3780 = vadd.f32 %v3390, %v3742
        %v3781 = vadd.f32 %v3391, %v3747
        %v3782 = vld [vmem:[%s3] sm:$0x1]
        %v3784 = vlaneseq
        %v3785 = vshrl.u32 %v3784, 7
        %v3786 = vsub.s32 0, %v3785
        %v3787 = vrot.slane %v3782, %v3786
        %v3789 = vadd.f32 %v3750, %v3787
        %v3790 = vadd.f32 %v3751, %v3787
        %v3791 = vadd.f32 %v3752, %v3787
        %v3792 = vadd.f32 %v3753, %v3787
        %v3793 = vadd.f32 %v3754, %v3787
        %v3794 = vadd.f32 %v3755, %v3787
        %v3795 = vadd.f32 %v3756, %v3787
        %v3796 = vadd.f32 %v3757, %v3787
        %v3797 = vadd.f32 %v3758, %v3787
        %v3798 = vadd.f32 %v3759, %v3787
        %v3799 = vadd.f32 %v3760, %v3787
        %v3800 = vadd.f32 %v3761, %v3787
        %v3801 = vadd.f32 %v3762, %v3787
        %v3802 = vadd.f32 %v3763, %v3787
        %v3803 = vadd.f32 %v3764, %v3787
        %v3804 = vadd.f32 %v3765, %v3787
        %v3805 = vadd.f32 %v3766, %v3787
        %v3806 = vadd.f32 %v3767, %v3787
        %v3807 = vadd.f32 %v3768, %v3787
        %v3808 = vadd.f32 %v3769, %v3787
        %v3809 = vadd.f32 %v3770, %v3787
        %v3810 = vadd.f32 %v3771, %v3787
        %v3811 = vadd.f32 %v3772, %v3787
        %v3812 = vadd.f32 %v3773, %v3787
        %v3813 = vadd.f32 %v3774, %v3787
        %v3814 = vadd.f32 %v3775, %v3787
        %v3815 = vadd.f32 %v3776, %v3787
        %v3816 = vadd.f32 %v3777, %v3787
        %v3817 = vadd.f32 %v3778, %v3787
        %v3818 = vadd.f32 %v3779, %v3787
        %v3819 = vadd.f32 %v3780, %v3787
        %v3820 = vadd.f32 %v3781, %v3787
        %v3821 = vmax.f32 %v3789, 0.0
        %v3822 = vmax.f32 %v3790, 0.0
        %v3823 = vmax.f32 %v3791, 0.0
        %v3824 = vmax.f32 %v3792, 0.0
        %v3825 = vmax.f32 %v3793, 0.0
        %v3826 = vmax.f32 %v3794, 0.0
        %v3827 = vmax.f32 %v3795, 0.0
        %v3828 = vmax.f32 %v3796, 0.0
        %v3829 = vmax.f32 %v3797, 0.0
        %v3830 = vmax.f32 %v3798, 0.0
        %v3831 = vmax.f32 %v3799, 0.0
        %v3832 = vmax.f32 %v3800, 0.0
        %v3833 = vmax.f32 %v3801, 0.0
        %v3834 = vmax.f32 %v3802, 0.0
        %v3835 = vmax.f32 %v3803, 0.0
        %v3836 = vmax.f32 %v3804, 0.0
        %v3837 = vmax.f32 %v3805, 0.0
        %v3838 = vmax.f32 %v3806, 0.0
        %v3839 = vmax.f32 %v3807, 0.0
        %v3840 = vmax.f32 %v3808, 0.0
        %v3841 = vmax.f32 %v3809, 0.0
        %v3842 = vmax.f32 %v3810, 0.0
        %v3843 = vmax.f32 %v3811, 0.0
        %v3844 = vmax.f32 %v3812, 0.0
        %v3845 = vmax.f32 %v3813, 0.0
        %v3846 = vmax.f32 %v3814, 0.0
        %v3847 = vmax.f32 %v3815, 0.0
        %v3848 = vmax.f32 %v3816, 0.0
        %v3849 = vmax.f32 %v3817, 0.0
        %v3850 = vmax.f32 %v3818, 0.0
        %v3851 = vmax.f32 %v3819, 0.0
        %v3852 = vmax.f32 %v3820, 0.0
        %3853 = vst [vmem:[%s229] sm:$0xff] %v3821
        %3854 = vst [vmem:[%s229 + $0x8] sm:$0xff] %v3822
        %3855 = vst [vmem:[%s229 + $0x10] sm:$0xff] %v3823
        %3856 = vst [vmem:[%s229 + $0x18] sm:$0xff] %v3824
        %3857 = vst [vmem:[%s229 + $0x20] sm:$0xff] %v3825
        %3858 = vst [vmem:[%s229 + $0x28] sm:$0xff] %v3826
        %3859 = vst [vmem:[%s229 + $0x30] sm:$0xff] %v3827
        %3860 = vst [vmem:[%s229 + $0x38] sm:$0xff] %v3828
        %3861 = vst [vmem:[%s229 + $0x40] sm:$0xff] %v3829
        %3862 = vst [vmem:[%s229 + $0x48] sm:$0xff] %v3830
        %3863 = vst [vmem:[%s229 + $0x50] sm:$0xff] %v3831
        %3864 = vst [vmem:[%s229 + $0x58] sm:$0xff] %v3832
        %3865 = vst [vmem:[%s229 + $0x60] sm:$0xff] %v3833
        %3866 = vst [vmem:[%s229 + $0x68] sm:$0xff] %v3834
        %3867 = vst [vmem:[%s229 + $0x70] sm:$0xff] %v3835
        %3868 = vst [vmem:[%s229 + $0x78] sm:$0xff] %v3836
        %3869 = vst [vmem:[%s229 + $0x80] sm:$0xff] %v3837
        %3870 = vst [vmem:[%s229 + $0x88] sm:$0xff] %v3838
        %3871 = vst [vmem:[%s229 + $0x90] sm:$0xff] %v3839
        %3872 = vst [vmem:[%s229 + $0x98] sm:$0xff] %v3840
        %3873 = vst [vmem:[%s229 + $0xa0] sm:$0xff] %v3841
        %3874 = vst [vmem:[%s229 + $0xa8] sm:$0xff] %v3842
        %3875 = vst [vmem:[%s229 + $0xb0] sm:$0xff] %v3843
        %3876 = vst [vmem:[%s229 + $0xb8] sm:$0xff] %v3844
        %3877 = vst [vmem:[%s229 + $0xc0] sm:$0xff] %v3845
        %3878 = vst [vmem:[%s229 + $0xc8] sm:$0xff] %v3846
        %3879 = vst [vmem:[%s229 + $0xd0] sm:$0xff] %v3847
        %3880 = vst [vmem:[%s229 + $0xd8] sm:$0xff] %v3848
        %3881 = vst [vmem:[%s229 + $0xe0] sm:$0xff] %v3849
        %3882 = vst [vmem:[%s229 + $0xe8] sm:$0xff] %v3850
        %3883 = vst [vmem:[%s229 + $0xf0] sm:$0xff] %v3851
        %3884 = vst [vmem:[%s229 + $0xf8] sm:$0xff] %v3852
        %s3885 = sand.u32 %s124, 1
        %s3886 = scalar_lea.sflag [#allocation4], %s3885
        %s3887 = sand.u32 %s124, 1
        %s3888 = smul.addr %s3887, 256
        %s3889 = scalar_lea.vmem [#allocation3], %s3888
        // Predicated region
        $region37: #{tpu_custom_call.1} parent=35 // pred_check
          %p3890 = pneg %p134
        $region38: #{tpu_custom_call.1} parent=35 // pred_check_branch
          %3892 = sbr.rel (%p3890) target = $region40
        $region39: #{tpu_custom_call.1} parent=35 // pred_region
          %s3893 = smul.u32 32, %s18
          %s3895 = ssub.s32 4096, 4096
          %3896 = vsyncadd %s3886, %s3895
          %s3897 = smul.addr %s3893, 128
          %s3898 = scalar_lea.hbm %s4, %s3897
          %s3899 = sshll.u32 %s3889, 4
          %s3900 = int_to_ptr.vmem [resolvable:$true] %s3899
          %3905 = dma.vmem_to_hbm [thread:$0]  %s3900, 4096, %s3898, %s3886, 128, 128, 8
        $region40: #{tpu_custom_call.1} parent=35 // pred_fallthru
          _
      $region36: #{tpu_custom_call.1} parent=5 // pred_fallthru
        _
      %p3906 = scmp.le.s32.totalorder 2, %s13
      // Predicated region
      $region41: #{tpu_custom_call.1} parent=5 // pred_check
        %p3907 = pneg %p3906
      $region42: #{tpu_custom_call.1} parent=5 // pred_check_branch
        %3909 = sbr.rel (%p3907) target = $region44
      $region43: #{tpu_custom_call.1} parent=5 // pred_region
        %s3910 = ssub.s32 %s13, 2
        // Predicated region
        $region45: #{tpu_custom_call.1} parent=43 // pred_check
          %p3911 = pneg %p140
        $region46: #{tpu_custom_call.1} parent=43 // pred_check_branch
          %3913 = sbr.rel (%p3911) target = $region48
        $region47: #{tpu_custom_call.1} parent=43 // pred_region
          %s3914 = sand.u32 %s125, 1
          %s3915 = scalar_lea.sflag [#allocation4], %s3914
          %s3916 = sand.u32 %s125, 1
          %s3917 = smul.addr %s3916, 256
          %s3918 = scalar_lea.vmem [#allocation3], %s3917
          %3919 = dma.done %s3915, 4096
        $region48: #{tpu_custom_call.1} parent=43 // pred_fallthru
          _
      $region44: #{tpu_custom_call.1} parent=5 // pred_fallthru
        _
    $region6: #{tpu_custom_call.1} parent=1 // loop_footer
      %s17 = sadd.s32 1, %s13
    $region7: #{tpu_custom_call.1} parent=1 // loop_footer_branch
      %12 = sbr.rel target = $region3
    $region8: #{tpu_custom_call.1} parent=1 // loop_exit
      _
    %3920 = vsyncpa [#allocation4], 1
    %s3921 = scalar_lea.sflag [#allocation4], 1
    %3922 = vsyncpa %s3921, 1

</llo_original>
